<compile_context>
chip_gen: v7x
topology: tpu7x:2x2x1
jax: 0.10.0
libtpu: 0.0.40
codegen_flags: <defaults>
</compile_context>

<pallas_src>
import functools

import jax
import jax.numpy as jnp
from jax.experimental import pallas as pl
from jax.experimental.pallas import tpu as pltpu


def _layer_norm(z, w, b, eps=1e-5):
    mu = jnp.mean(z, axis=-1, keepdims=True)
    var = jnp.mean((z - mu) ** 2, axis=-1, keepdims=True)
    return (z - mu) * jax.lax.rsqrt(var + eps) * w + b


def transformer_block_kernel(n_head, return_attn,
                             x_ref, wqkv_ref, wp_ref, bp_ref,
                             ln1w_ref, ln1b_ref,
                             w1_ref, b1_ref, w2_ref, b2_ref,
                             fflnw_ref, fflnb_ref,
                             ln2w_ref, ln2b_ref,
                             *out_and_scratch):
    if return_attn:
        out_ref, attn_ref, heads_ref = out_and_scratch
    else:
        out_ref, heads_ref = out_and_scratch
        attn_ref = None

    bb, T, C = x_ref.shape
    H = n_head
    D = C // H
    M = bb * T
    scale = 1.0 / (C ** 0.5)          # module divides by channels**0.5 (= n_embd)
    mm_dtype = wqkv_ref.dtype         # bf16 MXU operands, f32 accumulation

    # Fold batch into matmul rows: (bb, T, C) -> (M, C).
    x = x_ref[...].astype(jnp.float32).reshape(M, C)

    # ---- fused QKV projection for all heads in one wide MXU matmul ----
    # column layout of wqkv: [Q_h0 | Q_h1 | ... | K_h0 | ... | V_h0 | ...]
    qkv = jnp.dot(x.astype(mm_dtype), wqkv_ref[...],
                  preferred_element_type=jnp.float32)             # (M, 3C)

    # positional iotas, hoisted out of the head loop
    pos_i = jax.lax.broadcasted_iota(jnp.int32, (1, T, 1), 1).astype(jnp.float32)
    pos_j = jax.lax.broadcasted_iota(jnp.int32, (1, 1, T), 2).astype(jnp.float32)
    pos_r = jax.lax.broadcasted_iota(jnp.int32, (1, T), 1).astype(jnp.float32)

    # TODO(synk): for realistic H (8-16) / T (>=1k) move heads onto a grid axis
    # (tiles the attn output + bounds live ranges) and add flash-style KV tiling;
    # at toy H=2 / T=8 the static loop is fine.
    for h in range(H):
        q = qkv[:, h * D:(h + 1) * D].reshape(bb, T, D)
        k = qkv[:, (H + h) * D:(H + h + 1) * D].reshape(bb, T, D)
        v = qkv[:, (2 * H + h) * D:(2 * H + h + 1) * D].reshape(bb, T, D)

        # scores for (q + pos)·(k + pos)^T, decomposed so the position-dominated
        # terms stay in f32 and only q·k goes through bf16 MXU operands; the
        # 1/sqrt(C) scale is folded into q and the small per-row vectors.
        s0 = jax.lax.dot_general(
            (q * scale).astype(mm_dtype), k.astype(mm_dtype),
            dimension_numbers=(((2,), (2,)), ((0,), (0,))),
            preferred_element_type=jnp.float32)                   # (bb, T, T)
        qsum = jnp.sum(q, axis=-1, keepdims=True) * scale         # (bb, T, 1)
        ksum = jnp.sum(k, axis=-1) * scale                        # (bb, T)
        kterm = (ksum + (D * scale) * pos_r).reshape(bb, 1, T)    # (bb, 1, T)
        s = s0 + pos_i * kterm + qsum * pos_j                     # (bb, T, T)

        # softmax in f32; divide replaced by approx reciprocal (EUP slot).
        # TODO(synk): on v6e/v7x the exp could run in bf16 for 2x EUP throughput.
        m = jnp.max(s, axis=-1, keepdims=True)
        e = jnp.exp(s - m)
        denom = jnp.sum(e, axis=-1, keepdims=True)
        attn = e * pl.reciprocal(denom, approx=True)
        if attn_ref is not None:
            attn_ref[:, h, :, :] = attn.astype(attn_ref.dtype)

        ho = jax.lax.dot_general(
            attn.astype(mm_dtype), v.astype(mm_dtype),
            dimension_numbers=(((2,), (1,)), ((0,), (0,))),
            preferred_element_type=jnp.float32)                   # (bb, T, D)

        # stash head output at its lane offset -> single K=C projection matmul below
        heads_ref[:, h * D:(h + 1) * D] = ho.reshape(M, D).astype(mm_dtype)

    # one full-depth (K = C) output projection instead of H small K = D dots
    y = jnp.dot(heads_ref[...], wp_ref[...],
                preferred_element_type=jnp.float32) + bp_ref[...]

    # residual + LayerNorm1 (elementwise math in f32; v5e has no bf16 VPU/EUP path)
    x1 = _layer_norm(x + y, ln1w_ref[...], ln1b_ref[...])

    # FeedForward: linear1 -> relu -> linear2 -> LN(ff + residual) (dropout = identity)
    # TODO(synk): at realistic sizes on v7x (64 MiB VMEM) tile the hidden dim via an
    # extra grid axis with tiled w1/w2 BlockSpecs + f32 accumulator instead of keeping
    # both FFN weights and the full (M, n_hidden) activation resident.
    h1 = jnp.maximum(
        jnp.dot(x1.astype(mm_dtype), w1_ref[...],
                preferred_element_type=jnp.float32) + b1_ref[...], 0.0)
    h2 = jnp.dot(h1.astype(mm_dtype), w2_ref[...],
                 preferred_element_type=jnp.float32) + b2_ref[...]
    ff = _layer_norm(h2 + x1, fflnw_ref[...], fflnb_ref[...])

    # residual + LayerNorm2
    out = _layer_norm(x1 + ff, ln2w_ref[...], ln2b_ref[...])
    out_ref[...] = out.reshape(bb, T, C).astype(out_ref.dtype)


def transformer_block(x, params, *, matmul_dtype=jnp.bfloat16, target_rows=512,
                      min_grid_steps=2, attn_dtype=jnp.bfloat16, return_attn=True):
    B, T, C = x.shape
    H = params["wq"].shape[0]

    # ---- one-time weight layout prep (in a real model: do at parameter init) ----
    def flat_heads(w):                   # (H, C, D) -> (C, H*D)
        return jnp.transpose(w, (1, 0, 2)).reshape(C, -1)

    wqkv = jnp.concatenate(
        [flat_heads(params["wq"]), flat_heads(params["wk"]), flat_heads(params["wv"])],
        axis=1).astype(matmul_dtype)     # (C, 3C)
    wp = params["wp"].astype(matmul_dtype)
    w1 = params["w1"].astype(matmul_dtype)
    w2 = params["w2"].astype(matmul_dtype)

    param_arrays = [wqkv, wp, params["bp"], params["ln1w"], params["ln1b"],
                    w1, params["b1"], w2, params["b2"],
                    params["fflnw"], params["fflnb"], params["ln2w"], params["ln2b"]]

    # Rows per grid step: big enough to feed the MXU, but keep >= min_grid_steps grid
    # steps (when B allows) so the "parallel" batch axis can use v7x's 2 TensorCores.
    bb = min(B, max(1, target_rows // T))
    bb = min(bb, max(1, B // min_grid_steps))
    while B % bb:
        bb -= 1
    grid = (B // bb,)

    # VMEM limit from the actual chip (~80% of capacity, leave headroom for Mosaic
    # internal scratch); fall back to the compiler default if the query fails.
    try:
        vmem_limit = int(0.8 * pltpu.get_tpu_info().vmem_capacity_bytes)
        vmem_limit = min(vmem_limit, 100 * 1024 * 1024)
    except Exception:  # pragma: no cover - info query not available
        vmem_limit = None
    cp_kwargs = {"dimension_semantics": ("parallel",)}
    if vmem_limit is not None:
        cp_kwargs["vmem_limit_bytes"] = vmem_limit

    out_shape = [jax.ShapeDtypeStruct((B, T, C), x.dtype)]
    out_specs = [pl.BlockSpec((bb, T, C), lambda b: (b, 0, 0))]
    if return_attn:
        # bf16 attention maps: halves the dominant HBM writeback vs f32.
        # TODO(synk): at realistic T/H also tile the head dim (grid axis) so this
        # block is (bb, 1, T, T) per step, and use a lane-dense layout for T < 128.
        out_shape.append(jax.ShapeDtypeStruct((B, H, T, T), attn_dtype))
        out_specs.append(pl.BlockSpec((bb, H, T, T), lambda b: (b, 0, 0, 0)))

    def build(single_buffer_weights):
        def weight_spec(arr):
            nd = arr.ndim
            idx = lambda b, _nd=nd: (0,) * _nd
            if single_buffer_weights:
                # grid-invariant weights/biases: no need for double buffers.
                return pl.BlockSpec(arr.shape, idx, pipeline_mode=pl.Buffered(1))
            return pl.BlockSpec(arr.shape, idx)

        in_specs = ([pl.BlockSpec((bb, T, C), lambda b: (b, 0, 0))]
                    + [weight_spec(a) for a in param_arrays])

        return pl.pallas_call(
            functools.partial(transformer_block_kernel, H, return_attn),
            grid=grid,
            in_specs=in_specs,
            out_specs=tuple(out_specs),
            out_shape=tuple(out_shape),
            scratch_shapes=[pltpu.VMEM((bb * T, C), matmul_dtype)],
            compiler_params=pltpu.CompilerParams(**cp_kwargs),
        )

    try:
        res = build(True)(x, *param_arrays)
    except Exception:
        # pipeline_mode=pl.Buffered(1) unsupported on this jax version ->
        # fall back to default (double-buffered) BlockSpecs.
        res = build(False)(x, *param_arrays)

    if return_attn:
        return res[0], res[1]
    return res[0], None


def make_params(key, n_head, n_embd, n_hidden):
    head_size = n_embd // n_head
    ks = jax.random.split(key, 8)
    s = 0.02
    params = {
        "wq": s * jax.random.normal(ks[0], (n_head, n_embd, head_size), jnp.float32),
        "wk": s * jax.random.normal(ks[1], (n_head, n_embd, head_size), jnp.float32),
        "wv": s * jax.random.normal(ks[2], (n_head, n_embd, head_size), jnp.float32),
        "wp": s * jax.random.normal(ks[3], (n_head * head_size, n_embd), jnp.float32),
        "bp": 0.01 * jnp.ones((1, n_embd), jnp.float32),
        "ln1w": jnp.ones((1, n_embd), jnp.float32),
        "ln1b": jnp.zeros((1, n_embd), jnp.float32),
        "w1": s * jax.random.normal(ks[4], (n_embd, n_hidden), jnp.float32),
        "b1": 0.01 * jnp.ones((1, n_hidden), jnp.float32),
        "w2": s * jax.random.normal(ks[5], (n_hidden, n_embd), jnp.float32),
        "b2": 0.01 * jnp.ones((1, n_embd), jnp.float32),
        "fflnw": jnp.ones((1, n_embd), jnp.float32),
        "fflnb": jnp.zeros((1, n_embd), jnp.float32),
        "ln2w": jnp.ones((1, n_embd), jnp.float32),
        "ln2b": jnp.zeros((1, n_embd), jnp.float32),
    }
    return params


def reference_jax(x, params):
    """Pure-JAX f32 reference (same semantics as the PyTorch module, eval mode)."""
    B, T, C = x.shape
    n_head = params["wq"].shape[0]
    pos = jnp.arange(T, dtype=jnp.float32)[None, :, None]
    heads, attns = [], []
    for h in range(n_head):
        q = x @ params["wq"][h] + pos
        k = x @ params["wk"][h] + pos
        v = x @ params["wv"][h]
        sc = (q @ jnp.swapaxes(k, -2, -1)) / (C ** 0.5)
        a = jax.nn.softmax(sc, axis=-1)
        attns.append(a)
        heads.append(a @ v)
    y = jnp.concatenate(heads, axis=-1) @ params["wp"] + params["bp"][0]

    def ln(z, w, b):
        mu = z.mean(-1, keepdims=True)
        var = ((z - mu) ** 2).mean(-1, keepdims=True)
        return (z - mu) / jnp.sqrt(var + 1e-5) * w[0] + b[0]

    x1 = ln(x + y, params["ln1w"], params["ln1b"])
    h1 = jnp.maximum(x1 @ params["w1"] + params["b1"][0], 0.0)
    h2 = h1 @ params["w2"] + params["b2"][0]
    ff = ln(h2 + x1, params["fflnw"], params["fflnb"])
    out = ln(x1 + ff, params["ln2w"], params["ln2b"])
    return out, jnp.stack(attns, axis=1)


if __name__ == "__main__":
    # Small shapes consistent with the module.
    B, T = 2, 8                  # batch, block_size (sequence)
    n_head, n_embd = 2, 32       # head_size = 16
    n_hidden = 64

    key = jax.random.PRNGKey(0)
    kx, kp = jax.random.split(key)
    x = jax.random.normal(kx, (B, T, n_embd), jnp.float32)
    params = make_params(kp, n_head, n_embd, n_hidden)

    out, attn_maps = transformer_block(x, params)
    jax.block_until_ready((out, attn_maps))

    ref_out, ref_attn = reference_jax(x, params)
    # bf16 matmul operands, bf16 attn-map storage and approx-reciprocal softmax
    # -> slightly looser tolerance than a pure-f32 comparison.
    assert jnp.allclose(out, ref_out, atol=2e-2, rtol=2e-2), \
        float(jnp.max(jnp.abs(out - ref_out)))
    attn_f32 = attn_maps.astype(jnp.float32)
    assert jnp.allclose(attn_f32, ref_attn, atol=2e-2, rtol=2e-2), \
        float(jnp.max(jnp.abs(attn_f32 - ref_attn)))

    # TODO(synk): decoder=True (causal mask) and alibi=True (RoPE + ALiBi bias) branches
    # are not exercised by the module's default constructor args and are not implemented.
    print("KERNEL_OK")
</pallas_src>

<mosaic_0001>
module attributes {stable_mosaic.version = 11 : i64} {
  func.func @transformer_block_kernel(%arg0: i32, %arg1: memref<1x8x32xf32, #tpu.memory_space<vmem>>, %arg2: memref<32x96xbf16, #tpu.memory_space<vmem>>, %arg3: memref<32x32xbf16, #tpu.memory_space<vmem>>, %arg4: memref<1x32xf32, #tpu.memory_space<vmem>>, %arg5: memref<1x32xf32, #tpu.memory_space<vmem>>, %arg6: memref<1x32xf32, #tpu.memory_space<vmem>>, %arg7: memref<32x64xbf16, #tpu.memory_space<vmem>>, %arg8: memref<1x64xf32, #tpu.memory_space<vmem>>, %arg9: memref<64x32xbf16, #tpu.memory_space<vmem>>, %arg10: memref<1x32xf32, #tpu.memory_space<vmem>>, %arg11: memref<1x32xf32, #tpu.memory_space<vmem>>, %arg12: memref<1x32xf32, #tpu.memory_space<vmem>>, %arg13: memref<1x32xf32, #tpu.memory_space<vmem>>, %arg14: memref<1x32xf32, #tpu.memory_space<vmem>>, %arg15: memref<1x8x32xf32, #tpu.memory_space<vmem>>, %arg16: memref<1x2x8x8xbf16, #tpu.memory_space<vmem>>, %arg17: memref<8x32xbf16, #tpu.memory_space<vmem>>) attributes {dimension_semantics = [#tpu.dimension_semantics<parallel>], iteration_bounds = array<i64: 2>, scalar_prefetch = 0 : i64, scratch_operands = 1 : i64, tpu.core_type = #tpu.core_type<tc>, window_params = [{transform_indices = @transform_0, window_bounds = array<i64: 1, 8, 32>}, {pipeline_mode = #tpu.pipeline_mode<synchronous>, transform_indices = @transform_1, window_bounds = array<i64: 32, 96>}, {pipeline_mode = #tpu.pipeline_mode<synchronous>, transform_indices = @transform_2, window_bounds = array<i64: 32, 32>}, {pipeline_mode = #tpu.pipeline_mode<synchronous>, transform_indices = @transform_3, window_bounds = array<i64: 1, 32>}, {pipeline_mode = #tpu.pipeline_mode<synchronous>, transform_indices = @transform_4, window_bounds = array<i64: 1, 32>}, {pipeline_mode = #tpu.pipeline_mode<synchronous>, transform_indices = @transform_5, window_bounds = array<i64: 1, 32>}, {pipeline_mode = #tpu.pipeline_mode<synchronous>, transform_indices = @transform_6, window_bounds = array<i64: 32, 64>}, {pipeline_mode = #tpu.pipeline_mode<synchronous>, transform_indices = @transform_7, window_bounds = array<i64: 1, 64>}, {pipeline_mode = #tpu.pipeline_mode<synchronous>, transform_indices = @transform_8, window_bounds = array<i64: 64, 32>}, {pipeline_mode = #tpu.pipeline_mode<synchronous>, transform_indices = @transform_9, window_bounds = array<i64: 1, 32>}, {pipeline_mode = #tpu.pipeline_mode<synchronous>, transform_indices = @transform_10, window_bounds = array<i64: 1, 32>}, {pipeline_mode = #tpu.pipeline_mode<synchronous>, transform_indices = @transform_11, window_bounds = array<i64: 1, 32>}, {pipeline_mode = #tpu.pipeline_mode<synchronous>, transform_indices = @transform_12, window_bounds = array<i64: 1, 32>}, {pipeline_mode = #tpu.pipeline_mode<synchronous>, transform_indices = @transform_13, window_bounds = array<i64: 1, 32>}, {transform_indices = @transform_14, window_bounds = array<i64: 1, 8, 32>}, {transform_indices = @transform_15, window_bounds = array<i64: 1, 2, 8, 8>}]} {
    %c0 = arith.constant 0 : index
    %c0_0 = arith.constant 0 : index
    %c0_1 = arith.constant 0 : index
    %0 = vector.load %arg1[%c0, %c0_0, %c0_1] : memref<1x8x32xf32, #tpu.memory_space<vmem>>, vector<1x8x32xf32>
    %1 = vector.shape_cast %0 : vector<1x8x32xf32> to vector<8x32xf32>
    %2 = arith.truncf %1 : vector<8x32xf32> to vector<8x32xbf16>
    %c0_2 = arith.constant 0 : index
    %c0_3 = arith.constant 0 : index
    %3 = vector.load %arg2[%c0_2, %c0_3] : memref<32x96xbf16, #tpu.memory_space<vmem>>, vector<32x96xbf16>
    %cst = arith.constant dense<0.000000e+00> : vector<8x96xf32>
    %4 = tpu.matmul %2, %3, %cst {dimension_numbers = #tpu.dot_dimension_numbers<[1], [0], [0], [1], [0, 0, 1, 1], [], []>} : vector<8x32xbf16>, vector<32x96xbf16>, vector<8x96xf32> -> vector<8x96xf32>
    %5 = tpu.iota {dimensions = array<i32: 1>} : vector<1x8x1xi32>
    %6 = arith.sitofp %5 : vector<1x8x1xi32> to vector<1x8x1xf32>
    %7 = tpu.iota {dimensions = array<i32: 2>} : vector<1x1x8xi32>
    %8 = arith.sitofp %7 : vector<1x1x8xi32> to vector<1x1x8xf32>
    %9 = tpu.iota {dimensions = array<i32: 1>} : vector<1x8xi32>
    %10 = arith.sitofp %9 : vector<1x8xi32> to vector<1x8xf32>
    %11 = vector.extract_strided_slice %4 {offsets = [0, 0], sizes = [8, 16], strides = [1, 1]} : vector<8x96xf32> to vector<8x16xf32>
    %12 = vector.shape_cast %11 : vector<8x16xf32> to vector<1x8x16xf32>
    %13 = vector.extract_strided_slice %4 {offsets = [0, 32], sizes = [8, 16], strides = [1, 1]} : vector<8x96xf32> to vector<8x16xf32>
    %14 = vector.shape_cast %13 : vector<8x16xf32> to vector<1x8x16xf32>
    %15 = vector.extract_strided_slice %4 {offsets = [0, 64], sizes = [8, 16], strides = [1, 1]} : vector<8x96xf32> to vector<8x16xf32>
    %16 = vector.shape_cast %15 : vector<8x16xf32> to vector<1x8x16xf32>
    %cst_4 = arith.constant 0.176776692 : f32
    %17 = vector.broadcast %cst_4 : f32 to vector<1x8x16xf32>
    %18 = arith.mulf %12, %17 : vector<1x8x16xf32>
    %19 = arith.truncf %18 : vector<1x8x16xf32> to vector<1x8x16xbf16>
    %20 = arith.truncf %14 : vector<1x8x16xf32> to vector<1x8x16xbf16>
    %cst_5 = arith.constant dense<0.000000e+00> : vector<1x8x8xf32>
    %21 = tpu.matmul %19, %20, %cst_5 {dimension_numbers = #tpu.dot_dimension_numbers<[2], [2], [1], [1], [0, 0, 0, 1, 1, 1], [0], [0]>} : vector<1x8x16xbf16>, vector<1x8x16xbf16>, vector<1x8x8xf32> -> vector<1x8x8xf32>
    %cst_6 = arith.constant dense<0.000000e+00> : vector<1x8xf32>
    %22 = vector.multi_reduction <add>, %12, %cst_6 [2] : vector<1x8x16xf32> to vector<1x8xf32>
    %23 = vector.shape_cast %22 : vector<1x8xf32> to vector<1x8x1xf32>
    %cst_7 = arith.constant 0.176776692 : f32
    %24 = vector.broadcast %cst_7 : f32 to vector<1x8x1xf32>
    %25 = arith.mulf %23, %24 : vector<1x8x1xf32>
    %cst_8 = arith.constant dense<0.000000e+00> : vector<1x8xf32>
    %26 = vector.multi_reduction <add>, %14, %cst_8 [2] : vector<1x8x16xf32> to vector<1x8xf32>
    %cst_9 = arith.constant 0.176776692 : f32
    %27 = vector.broadcast %cst_9 : f32 to vector<1x8xf32>
    %28 = arith.mulf %26, %27 : vector<1x8xf32>
    %cst_10 = arith.constant 2.82842708 : f32
    %29 = vector.broadcast %cst_10 : f32 to vector<1x8xf32>
    %30 = arith.mulf %29, %10 : vector<1x8xf32>
    %31 = arith.addf %28, %30 : vector<1x8xf32>
    %32 = vector.shape_cast %31 : vector<1x8xf32> to vector<1x1x8xf32>
    %33 = vector.broadcast %6 : vector<1x8x1xf32> to vector<1x8x8xf32>
    %34 = vector.broadcast %32 : vector<1x1x8xf32> to vector<1x8x8xf32>
    %35 = arith.mulf %33, %34 : vector<1x8x8xf32>
    %36 = arith.addf %21, %35 : vector<1x8x8xf32>
    %37 = vector.broadcast %25 : vector<1x8x1xf32> to vector<1x8x8xf32>
    %38 = vector.broadcast %8 : vector<1x1x8xf32> to vector<1x8x8xf32>
    %39 = arith.mulf %37, %38 : vector<1x8x8xf32>
    %40 = arith.addf %36, %39 : vector<1x8x8xf32>
    %cst_11 = arith.constant dense<0xFF800000> : vector<1x8xf32>
    %41 = vector.multi_reduction <maximumf>, %40, %cst_11 [2] : vector<1x8x8xf32> to vector<1x8xf32>
    %42 = vector.shape_cast %41 : vector<1x8xf32> to vector<1x8x1xf32>
    %43 = vector.broadcast %42 : vector<1x8x1xf32> to vector<1x8x8xf32>
    %44 = arith.subf %40, %43 : vector<1x8x8xf32>
    %45 = math.exp %44 : vector<1x8x8xf32>
    %cst_12 = arith.constant dense<0.000000e+00> : vector<1x8xf32>
    %46 = vector.multi_reduction <add>, %45, %cst_12 [2] : vector<1x8x8xf32> to vector<1x8xf32>
    %47 = vector.shape_cast %46 : vector<1x8xf32> to vector<1x8x1xf32>
    %48 = tpu.reciprocal %47 {approx = true} : vector<1x8x1xf32> -> vector<1x8x1xf32>
    %49 = vector.broadcast %48 : vector<1x8x1xf32> to vector<1x8x8xf32>
    %50 = arith.mulf %45, %49 : vector<1x8x8xf32>
    %51 = arith.truncf %50 : vector<1x8x8xf32> to vector<1x8x8xbf16>
    %c0_13 = arith.constant 0 : index
    %c0_14 = arith.constant 0 : index
    %c0_15 = arith.constant 0 : index
    %c0_16 = arith.constant 0 : index
    %52 = vector.load %arg16[%c0_13, %c0_14, %c0_15, %c0_16] : memref<1x2x8x8xbf16, #tpu.memory_space<vmem>>, vector<1x1x8x8xbf16>
    %53 = vector.shape_cast %52 : vector<1x1x8x8xbf16> to vector<1x8x8xbf16>
    %54 = vector.shape_cast %51 : vector<1x8x8xbf16> to vector<1x1x8x8xbf16>
    tpu.vector_store %arg16[%c0_13, %c0_14, %c0_15, %c0_16], %54 {strides = array<i32>} : memref<1x2x8x8xbf16, #tpu.memory_space<vmem>>, vector<1x1x8x8xbf16>,
    %55 = arith.truncf %50 : vector<1x8x8xf32> to vector<1x8x8xbf16>
    %56 = arith.truncf %16 : vector<1x8x16xf32> to vector<1x8x16xbf16>
    %cst_17 = arith.constant dense<0.000000e+00> : vector<1x8x16xf32>
    %57 = tpu.matmul %55, %56, %cst_17 {dimension_numbers = #tpu.dot_dimension_numbers<[2], [1], [1], [2], [0, 0, 0, 1, 1, 2], [0], [0]>} : vector<1x8x8xbf16>, vector<1x8x16xbf16>, vector<1x8x16xf32> -> vector<1x8x16xf32>
    %58 = vector.shape_cast %57 : vector<1x8x16xf32> to vector<8x16xf32>
    %59 = arith.truncf %58 : vector<8x16xf32> to vector<8x16xbf16>
    %c0_18 = arith.constant 0 : index
    %c0_19 = arith.constant 0 : index
    %60 = vector.load %arg17[%c0_18, %c0_19] : memref<8x32xbf16, #tpu.memory_space<vmem>>, vector<8x16xbf16>
    tpu.vector_store %arg17[%c0_18, %c0_19], %59 {strides = array<i32>} : memref<8x32xbf16, #tpu.memory_space<vmem>>, vector<8x16xbf16>,
    %61 = vector.extract_strided_slice %4 {offsets = [0, 16], sizes = [8, 16], strides = [1, 1]} : vector<8x96xf32> to vector<8x16xf32>
    %62 = vector.shape_cast %61 : vector<8x16xf32> to vector<1x8x16xf32>
    %63 = vector.extract_strided_slice %4 {offsets = [0, 48], sizes = [8, 16], strides = [1, 1]} : vector<8x96xf32> to vector<8x16xf32>
    %64 = vector.shape_cast %63 : vector<8x16xf32> to vector<1x8x16xf32>
    %65 = vector.extract_strided_slice %4 {offsets = [0, 80], sizes = [8, 16], strides = [1, 1]} : vector<8x96xf32> to vector<8x16xf32>
    %66 = vector.shape_cast %65 : vector<8x16xf32> to vector<1x8x16xf32>
    %cst_20 = arith.constant 0.176776692 : f32
    %67 = vector.broadcast %cst_20 : f32 to vector<1x8x16xf32>
    %68 = arith.mulf %62, %67 : vector<1x8x16xf32>
    %69 = arith.truncf %68 : vector<1x8x16xf32> to vector<1x8x16xbf16>
    %70 = arith.truncf %64 : vector<1x8x16xf32> to vector<1x8x16xbf16>
    %cst_21 = arith.constant dense<0.000000e+00> : vector<1x8x8xf32>
    %71 = tpu.matmul %69, %70, %cst_21 {dimension_numbers = #tpu.dot_dimension_numbers<[2], [2], [1], [1], [0, 0, 0, 1, 1, 1], [0], [0]>} : vector<1x8x16xbf16>, vector<1x8x16xbf16>, vector<1x8x8xf32> -> vector<1x8x8xf32>
    %cst_22 = arith.constant dense<0.000000e+00> : vector<1x8xf32>
    %72 = vector.multi_reduction <add>, %62, %cst_22 [2] : vector<1x8x16xf32> to vector<1x8xf32>
    %73 = vector.shape_cast %72 : vector<1x8xf32> to vector<1x8x1xf32>
    %cst_23 = arith.constant 0.176776692 : f32
    %74 = vector.broadcast %cst_23 : f32 to vector<1x8x1xf32>
    %75 = arith.mulf %73, %74 : vector<1x8x1xf32>
    %cst_24 = arith.constant dense<0.000000e+00> : vector<1x8xf32>
    %76 = vector.multi_reduction <add>, %64, %cst_24 [2] : vector<1x8x16xf32> to vector<1x8xf32>
    %cst_25 = arith.constant 0.176776692 : f32
    %77 = vector.broadcast %cst_25 : f32 to vector<1x8xf32>
    %78 = arith.mulf %76, %77 : vector<1x8xf32>
    %cst_26 = arith.constant 2.82842708 : f32
    %79 = vector.broadcast %cst_26 : f32 to vector<1x8xf32>
    %80 = arith.mulf %79, %10 : vector<1x8xf32>
    %81 = arith.addf %78, %80 : vector<1x8xf32>
    %82 = vector.shape_cast %81 : vector<1x8xf32> to vector<1x1x8xf32>
    %83 = vector.broadcast %6 : vector<1x8x1xf32> to vector<1x8x8xf32>
    %84 = vector.broadcast %82 : vector<1x1x8xf32> to vector<1x8x8xf32>
    %85 = arith.mulf %83, %84 : vector<1x8x8xf32>
    %86 = arith.addf %71, %85 : vector<1x8x8xf32>
    %87 = vector.broadcast %75 : vector<1x8x1xf32> to vector<1x8x8xf32>
    %88 = vector.broadcast %8 : vector<1x1x8xf32> to vector<1x8x8xf32>
    %89 = arith.mulf %87, %88 : vector<1x8x8xf32>
    %90 = arith.addf %86, %89 : vector<1x8x8xf32>
    %cst_27 = arith.constant dense<0xFF800000> : vector<1x8xf32>
    %91 = vector.multi_reduction <maximumf>, %90, %cst_27 [2] : vector<1x8x8xf32> to vector<1x8xf32>
    %92 = vector.shape_cast %91 : vector<1x8xf32> to vector<1x8x1xf32>
    %93 = vector.broadcast %92 : vector<1x8x1xf32> to vector<1x8x8xf32>
    %94 = arith.subf %90, %93 : vector<1x8x8xf32>
    %95 = math.exp %94 : vector<1x8x8xf32>
    %cst_28 = arith.constant dense<0.000000e+00> : vector<1x8xf32>
    %96 = vector.multi_reduction <add>, %95, %cst_28 [2] : vector<1x8x8xf32> to vector<1x8xf32>
    %97 = vector.shape_cast %96 : vector<1x8xf32> to vector<1x8x1xf32>
    %98 = tpu.reciprocal %97 {approx = true} : vector<1x8x1xf32> -> vector<1x8x1xf32>
    %99 = vector.broadcast %98 : vector<1x8x1xf32> to vector<1x8x8xf32>
    %100 = arith.mulf %95, %99 : vector<1x8x8xf32>
    %101 = arith.truncf %100 : vector<1x8x8xf32> to vector<1x8x8xbf16>
    %c0_29 = arith.constant 0 : index
    %c1 = arith.constant 1 : index
    %c0_30 = arith.constant 0 : index
    %c0_31 = arith.constant 0 : index
    %102 = vector.load %arg16[%c0_29, %c1, %c0_30, %c0_31] : memref<1x2x8x8xbf16, #tpu.memory_space<vmem>>, vector<1x1x8x8xbf16>
    %103 = vector.shape_cast %102 : vector<1x1x8x8xbf16> to vector<1x8x8xbf16>
    %104 = vector.shape_cast %101 : vector<1x8x8xbf16> to vector<1x1x8x8xbf16>
    tpu.vector_store %arg16[%c0_29, %c1, %c0_30, %c0_31], %104 {strides = array<i32>} : memref<1x2x8x8xbf16, #tpu.memory_space<vmem>>, vector<1x1x8x8xbf16>,
    %105 = arith.truncf %100 : vector<1x8x8xf32> to vector<1x8x8xbf16>
    %106 = arith.truncf %66 : vector<1x8x16xf32> to vector<1x8x16xbf16>
    %cst_32 = arith.constant dense<0.000000e+00> : vector<1x8x16xf32>
    %107 = tpu.matmul %105, %106, %cst_32 {dimension_numbers = #tpu.dot_dimension_numbers<[2], [1], [1], [2], [0, 0, 0, 1, 1, 2], [0], [0]>} : vector<1x8x8xbf16>, vector<1x8x16xbf16>, vector<1x8x16xf32> -> vector<1x8x16xf32>
    %108 = vector.shape_cast %107 : vector<1x8x16xf32> to vector<8x16xf32>
    %109 = arith.truncf %108 : vector<8x16xf32> to vector<8x16xbf16>
    %c0_33 = arith.constant 0 : index
    %c16 = arith.constant 16 : index
    %110 = vector.load %arg17[%c0_33, %c16] : memref<8x32xbf16, #tpu.memory_space<vmem>>, vector<8x16xbf16>
    tpu.vector_store %arg17[%c0_33, %c16], %109 {strides = array<i32>} : memref<8x32xbf16, #tpu.memory_space<vmem>>, vector<8x16xbf16>,
    %c0_34 = arith.constant 0 : index
    %c0_35 = arith.constant 0 : index
    %111 = vector.load %arg17[%c0_34, %c0_35] : memref<8x32xbf16, #tpu.memory_space<vmem>>, vector<8x32xbf16>
    %c0_36 = arith.constant 0 : index
    %c0_37 = arith.constant 0 : index
    %112 = vector.load %arg3[%c0_36, %c0_37] : memref<32x32xbf16, #tpu.memory_space<vmem>>, vector<32x32xbf16>
    %cst_38 = arith.constant dense<0.000000e+00> : vector<8x32xf32>
    %113 = tpu.matmul %111, %112, %cst_38 {dimension_numbers = #tpu.dot_dimension_numbers<[1], [0], [0], [1], [0, 0, 1, 1], [], []>} : vector<8x32xbf16>, vector<32x32xbf16>, vector<8x32xf32> -> vector<8x32xf32>
    %c0_39 = arith.constant 0 : index
    %c0_40 = arith.constant 0 : index
    %114 = vector.load %arg4[%c0_39, %c0_40] : memref<1x32xf32, #tpu.memory_space<vmem>>, vector<1x32xf32>
    %115 = vector.broadcast %114 : vector<1x32xf32> to vector<8x32xf32>
    %116 = arith.addf %113, %115 : vector<8x32xf32>
    %117 = arith.addf %1, %116 : vector<8x32xf32>
    %c0_41 = arith.constant 0 : index
    %c0_42 = arith.constant 0 : index
    %118 = vector.load %arg5[%c0_41, %c0_42] : memref<1x32xf32, #tpu.memory_space<vmem>>, vector<1x32xf32>
    %c0_43 = arith.constant 0 : index
    %c0_44 = arith.constant 0 : index
    %119 = vector.load %arg6[%c0_43, %c0_44] : memref<1x32xf32, #tpu.memory_space<vmem>>, vector<1x32xf32>
    %cst_45 = arith.constant dense<0.000000e+00> : vector<8xf32>
    %120 = vector.multi_reduction <add>, %117, %cst_45 [1] : vector<8x32xf32> to vector<8xf32>
    %121 = vector.shape_cast %120 : vector<8xf32> to vector<8x1xf32>
    %cst_46 = arith.constant 3.200000e+01 : f32
    %122 = vector.broadcast %cst_46 : f32 to vector<8x1xf32>
    %123 = arith.divf %121, %122 : vector<8x1xf32>
    %124 = vector.broadcast %123 : vector<8x1xf32> to vector<8x32xf32>
    %125 = arith.subf %117, %124 : vector<8x32xf32>
    %126 = arith.mulf %125, %125 : vector<8x32xf32>
    %cst_47 = arith.constant dense<0.000000e+00> : vector<8xf32>
    %127 = vector.multi_reduction <add>, %126, %cst_47 [1] : vector<8x32xf32> to vector<8xf32>
    %128 = vector.shape_cast %127 : vector<8xf32> to vector<8x1xf32>
    %cst_48 = arith.constant 3.200000e+01 : f32
    %129 = vector.broadcast %cst_48 : f32 to vector<8x1xf32>
    %130 = arith.divf %128, %129 : vector<8x1xf32>
    %131 = vector.broadcast %123 : vector<8x1xf32> to vector<8x32xf32>
    %132 = arith.subf %117, %131 : vector<8x32xf32>
    %cst_49 = arith.constant 9.99999974E-6 : f32
    %133 = vector.broadcast %cst_49 : f32 to vector<8x1xf32>
    %134 = arith.addf %130, %133 : vector<8x1xf32>
    %135 = math.rsqrt %134 : vector<8x1xf32>
    %136 = vector.broadcast %135 : vector<8x1xf32> to vector<8x32xf32>
    %137 = arith.mulf %132, %136 : vector<8x32xf32>
    %138 = vector.broadcast %118 : vector<1x32xf32> to vector<8x32xf32>
    %139 = arith.mulf %137, %138 : vector<8x32xf32>
    %140 = vector.broadcast %119 : vector<1x32xf32> to vector<8x32xf32>
    %141 = arith.addf %139, %140 : vector<8x32xf32>
    %142 = arith.truncf %141 : vector<8x32xf32> to vector<8x32xbf16>
    %c0_50 = arith.constant 0 : index
    %c0_51 = arith.constant 0 : index
    %143 = vector.load %arg7[%c0_50, %c0_51] : memref<32x64xbf16, #tpu.memory_space<vmem>>, vector<32x64xbf16>
    %cst_52 = arith.constant dense<0.000000e+00> : vector<8x64xf32>
    %144 = tpu.matmul %142, %143, %cst_52 {dimension_numbers = #tpu.dot_dimension_numbers<[1], [0], [0], [1], [0, 0, 1, 1], [], []>} : vector<8x32xbf16>, vector<32x64xbf16>, vector<8x64xf32> -> vector<8x64xf32>
    %c0_53 = arith.constant 0 : index
    %c0_54 = arith.constant 0 : index
    %145 = vector.load %arg8[%c0_53, %c0_54] : memref<1x64xf32, #tpu.memory_space<vmem>>, vector<1x64xf32>
    %146 = vector.broadcast %145 : vector<1x64xf32> to vector<8x64xf32>
    %147 = arith.addf %144, %146 : vector<8x64xf32>
    %cst_55 = arith.constant 0.000000e+00 : f32
    %148 = vector.broadcast %cst_55 : f32 to vector<8x64xf32>
    %149 = arith.maximumf %147, %148 : vector<8x64xf32>
    %150 = arith.truncf %149 : vector<8x64xf32> to vector<8x64xbf16>
    %c0_56 = arith.constant 0 : index
    %c0_57 = arith.constant 0 : index
    %151 = vector.load %arg9[%c0_56, %c0_57] : memref<64x32xbf16, #tpu.memory_space<vmem>>, vector<64x32xbf16>
    %cst_58 = arith.constant dense<0.000000e+00> : vector<8x32xf32>
    %152 = tpu.matmul %150, %151, %cst_58 {dimension_numbers = #tpu.dot_dimension_numbers<[1], [0], [0], [1], [0, 0, 1, 1], [], []>} : vector<8x64xbf16>, vector<64x32xbf16>, vector<8x32xf32> -> vector<8x32xf32>
    %c0_59 = arith.constant 0 : index
    %c0_60 = arith.constant 0 : index
    %153 = vector.load %arg10[%c0_59, %c0_60] : memref<1x32xf32, #tpu.memory_space<vmem>>, vector<1x32xf32>
    %154 = vector.broadcast %153 : vector<1x32xf32> to vector<8x32xf32>
    %155 = arith.addf %152, %154 : vector<8x32xf32>
    %156 = arith.addf %155, %141 : vector<8x32xf32>
    %c0_61 = arith.constant 0 : index
    %c0_62 = arith.constant 0 : index
    %157 = vector.load %arg11[%c0_61, %c0_62] : memref<1x32xf32, #tpu.memory_space<vmem>>, vector<1x32xf32>
    %c0_63 = arith.constant 0 : index
    %c0_64 = arith.constant 0 : index
    %158 = vector.load %arg12[%c0_63, %c0_64] : memref<1x32xf32, #tpu.memory_space<vmem>>, vector<1x32xf32>
    %cst_65 = arith.constant dense<0.000000e+00> : vector<8xf32>
    %159 = vector.multi_reduction <add>, %156, %cst_65 [1] : vector<8x32xf32> to vector<8xf32>
    %160 = vector.shape_cast %159 : vector<8xf32> to vector<8x1xf32>
    %cst_66 = arith.constant 3.200000e+01 : f32
    %161 = vector.broadcast %cst_66 : f32 to vector<8x1xf32>
    %162 = arith.divf %160, %161 : vector<8x1xf32>
    %163 = vector.broadcast %162 : vector<8x1xf32> to vector<8x32xf32>
    %164 = arith.subf %156, %163 : vector<8x32xf32>
    %165 = arith.mulf %164, %164 : vector<8x32xf32>
    %cst_67 = arith.constant dense<0.000000e+00> : vector<8xf32>
    %166 = vector.multi_reduction <add>, %165, %cst_67 [1] : vector<8x32xf32> to vector<8xf32>
    %167 = vector.shape_cast %166 : vector<8xf32> to vector<8x1xf32>
    %cst_68 = arith.constant 3.200000e+01 : f32
    %168 = vector.broadcast %cst_68 : f32 to vector<8x1xf32>
    %169 = arith.divf %167, %168 : vector<8x1xf32>
    %170 = vector.broadcast %162 : vector<8x1xf32> to vector<8x32xf32>
    %171 = arith.subf %156, %170 : vector<8x32xf32>
    %cst_69 = arith.constant 9.99999974E-6 : f32
    %172 = vector.broadcast %cst_69 : f32 to vector<8x1xf32>
    %173 = arith.addf %169, %172 : vector<8x1xf32>
    %174 = math.rsqrt %173 : vector<8x1xf32>
    %175 = vector.broadcast %174 : vector<8x1xf32> to vector<8x32xf32>
    %176 = arith.mulf %171, %175 : vector<8x32xf32>
    %177 = vector.broadcast %157 : vector<1x32xf32> to vector<8x32xf32>
    %178 = arith.mulf %176, %177 : vector<8x32xf32>
    %179 = vector.broadcast %158 : vector<1x32xf32> to vector<8x32xf32>
    %180 = arith.addf %178, %179 : vector<8x32xf32>
    %181 = arith.addf %141, %180 : vector<8x32xf32>
    %c0_70 = arith.constant 0 : index
    %c0_71 = arith.constant 0 : index
    %182 = vector.load %arg13[%c0_70, %c0_71] : memref<1x32xf32, #tpu.memory_space<vmem>>, vector<1x32xf32>
    %c0_72 = arith.constant 0 : index
    %c0_73 = arith.constant 0 : index
    %183 = vector.load %arg14[%c0_72, %c0_73] : memref<1x32xf32, #tpu.memory_space<vmem>>, vector<1x32xf32>
    %cst_74 = arith.constant dense<0.000000e+00> : vector<8xf32>
    %184 = vector.multi_reduction <add>, %181, %cst_74 [1] : vector<8x32xf32> to vector<8xf32>
    %185 = vector.shape_cast %184 : vector<8xf32> to vector<8x1xf32>
    %cst_75 = arith.constant 3.200000e+01 : f32
    %186 = vector.broadcast %cst_75 : f32 to vector<8x1xf32>
    %187 = arith.divf %185, %186 : vector<8x1xf32>
    %188 = vector.broadcast %187 : vector<8x1xf32> to vector<8x32xf32>
    %189 = arith.subf %181, %188 : vector<8x32xf32>
    %190 = arith.mulf %189, %189 : vector<8x32xf32>
    %cst_76 = arith.constant dense<0.000000e+00> : vector<8xf32>
    %191 = vector.multi_reduction <add>, %190, %cst_76 [1] : vector<8x32xf32> to vector<8xf32>
    %192 = vector.shape_cast %191 : vector<8xf32> to vector<8x1xf32>
    %cst_77 = arith.constant 3.200000e+01 : f32
    %193 = vector.broadcast %cst_77 : f32 to vector<8x1xf32>
    %194 = arith.divf %192, %193 : vector<8x1xf32>
    %195 = vector.broadcast %187 : vector<8x1xf32> to vector<8x32xf32>
    %196 = arith.subf %181, %195 : vector<8x32xf32>
    %cst_78 = arith.constant 9.99999974E-6 : f32
    %197 = vector.broadcast %cst_78 : f32 to vector<8x1xf32>
    %198 = arith.addf %194, %197 : vector<8x1xf32>
    %199 = math.rsqrt %198 : vector<8x1xf32>
    %200 = vector.broadcast %199 : vector<8x1xf32> to vector<8x32xf32>
    %201 = arith.mulf %196, %200 : vector<8x32xf32>
    %202 = vector.broadcast %182 : vector<1x32xf32> to vector<8x32xf32>
    %203 = arith.mulf %201, %202 : vector<8x32xf32>
    %204 = vector.broadcast %183 : vector<1x32xf32> to vector<8x32xf32>
    %205 = arith.addf %203, %204 : vector<8x32xf32>
    %206 = vector.shape_cast %205 : vector<8x32xf32> to vector<1x8x32xf32>
    %c0_79 = arith.constant 0 : index
    %c0_80 = arith.constant 0 : index
    %c0_81 = arith.constant 0 : index
    %207 = vector.load %arg15[%c0_79, %c0_80, %c0_81] : memref<1x8x32xf32, #tpu.memory_space<vmem>>, vector<1x8x32xf32>
    tpu.vector_store %arg15[%c0_79, %c0_80, %c0_81], %206 {strides = array<i32>} : memref<1x8x32xf32, #tpu.memory_space<vmem>>, vector<1x8x32xf32>,
    return
  }
  func.func @transform_0(%arg0: i32) -> (i32, i32, i32) {
    %c0_i32 = arith.constant 0 : i32
    %c0_i32_0 = arith.constant 0 : i32
    %c0_i32_1 = arith.constant 0 : i32
    return %arg0, %c0_i32, %c0_i32_0 : i32, i32, i32
  }
  func.func @transform_1(%arg0: i32) -> (i32, i32) {
    %c0_i32 = arith.constant 0 : i32
    %c0_i32_0 = arith.constant 0 : i32
    %c0_i32_1 = arith.constant 0 : i32
    return %c0_i32, %c0_i32_0 : i32, i32
  }
  func.func @transform_2(%arg0: i32) -> (i32, i32) {
    %c0_i32 = arith.constant 0 : i32
    %c0_i32_0 = arith.constant 0 : i32
    %c0_i32_1 = arith.constant 0 : i32
    return %c0_i32, %c0_i32_0 : i32, i32
  }
  func.func @transform_3(%arg0: i32) -> (i32, i32) {
    %c0_i32 = arith.constant 0 : i32
    %c0_i32_0 = arith.constant 0 : i32
    %c0_i32_1 = arith.constant 0 : i32
    return %c0_i32, %c0_i32_0 : i32, i32
  }
  func.func @transform_4(%arg0: i32) -> (i32, i32) {
    %c0_i32 = arith.constant 0 : i32
    %c0_i32_0 = arith.constant 0 : i32
    %c0_i32_1 = arith.constant 0 : i32
    return %c0_i32, %c0_i32_0 : i32, i32
  }
  func.func @transform_5(%arg0: i32) -> (i32, i32) {
    %c0_i32 = arith.constant 0 : i32
    %c0_i32_0 = arith.constant 0 : i32
    %c0_i32_1 = arith.constant 0 : i32
    return %c0_i32, %c0_i32_0 : i32, i32
  }
  func.func @transform_6(%arg0: i32) -> (i32, i32) {
    %c0_i32 = arith.constant 0 : i32
    %c0_i32_0 = arith.constant 0 : i32
    %c0_i32_1 = arith.constant 0 : i32
    return %c0_i32, %c0_i32_0 : i32, i32
  }
  func.func @transform_7(%arg0: i32) -> (i32, i32) {
    %c0_i32 = arith.constant 0 : i32
    %c0_i32_0 = arith.constant 0 : i32
    %c0_i32_1 = arith.constant 0 : i32
    return %c0_i32, %c0_i32_0 : i32, i32
  }
  func.func @transform_8(%arg0: i32) -> (i32, i32) {
    %c0_i32 = arith.constant 0 : i32
    %c0_i32_0 = arith.constant 0 : i32
    %c0_i32_1 = arith.constant 0 : i32
    return %c0_i32, %c0_i32_0 : i32, i32
  }
  func.func @transform_9(%arg0: i32) -> (i32, i32) {
    %c0_i32 = arith.constant 0 : i32
    %c0_i32_0 = arith.constant 0 : i32
    %c0_i32_1 = arith.constant 0 : i32
    return %c0_i32, %c0_i32_0 : i32, i32
  }
  func.func @transform_10(%arg0: i32) -> (i32, i32) {
    %c0_i32 = arith.constant 0 : i32
    %c0_i32_0 = arith.constant 0 : i32
    %c0_i32_1 = arith.constant 0 : i32
    return %c0_i32, %c0_i32_0 : i32, i32
  }
  func.func @transform_11(%arg0: i32) -> (i32, i32) {
    %c0_i32 = arith.constant 0 : i32
    %c0_i32_0 = arith.constant 0 : i32
    %c0_i32_1 = arith.constant 0 : i32
    return %c0_i32, %c0_i32_0 : i32, i32
  }
  func.func @transform_12(%arg0: i32) -> (i32, i32) {
    %c0_i32 = arith.constant 0 : i32
    %c0_i32_0 = arith.constant 0 : i32
    %c0_i32_1 = arith.constant 0 : i32
    return %c0_i32, %c0_i32_0 : i32, i32
  }
  func.func @transform_13(%arg0: i32) -> (i32, i32) {
    %c0_i32 = arith.constant 0 : i32
    %c0_i32_0 = arith.constant 0 : i32
    %c0_i32_1 = arith.constant 0 : i32
    return %c0_i32, %c0_i32_0 : i32, i32
  }
  func.func @transform_14(%arg0: i32) -> (i32, i32, i32) {
    %c0_i32 = arith.constant 0 : i32
    %c0_i32_0 = arith.constant 0 : i32
    %c0_i32_1 = arith.constant 0 : i32
    return %arg0, %c0_i32, %c0_i32_0 : i32, i32, i32
  }
  func.func @transform_15(%arg0: i32) -> (i32, i32, i32, i32) {
    %c0_i32 = arith.constant 0 : i32
    %c0_i32_0 = arith.constant 0 : i32
    %c0_i32_1 = arith.constant 0 : i32
    %c0_i32_2 = arith.constant 0 : i32
    return %arg0, %c0_i32, %c0_i32_0, %c0_i32_1 : i32, i32, i32, i32
  }
}

module attributes {stable_mosaic.version = 11 : i64} {
  func.func @transformer_block_kernel(%arg0: i32, %arg1: memref<1x8x32xf32, #tpu.memory_space<vmem>>, %arg2: memref<32x96xbf16, #tpu.memory_space<vmem>>, %arg3: memref<32x32xbf16, #tpu.memory_space<vmem>>, %arg4: memref<1x32xf32, #tpu.memory_space<vmem>>, %arg5: memref<1x32xf32, #tpu.memory_space<vmem>>, %arg6: memref<1x32xf32, #tpu.memory_space<vmem>>, %arg7: memref<32x64xbf16, #tpu.memory_space<vmem>>, %arg8: memref<1x64xf32, #tpu.memory_space<vmem>>, %arg9: memref<64x32xbf16, #tpu.memory_space<vmem>>, %arg10: memref<1x32xf32, #tpu.memory_space<vmem>>, %arg11: memref<1x32xf32, #tpu.memory_space<vmem>>, %arg12: memref<1x32xf32, #tpu.memory_space<vmem>>, %arg13: memref<1x32xf32, #tpu.memory_space<vmem>>, %arg14: memref<1x32xf32, #tpu.memory_space<vmem>>, %arg15: memref<1x8x32xf32, #tpu.memory_space<vmem>>, %arg16: memref<1x2x8x8xbf16, #tpu.memory_space<vmem>>, %arg17: memref<8x32xbf16, #tpu.memory_space<vmem>>) attributes {dimension_semantics = [#tpu.dimension_semantics<parallel>], iteration_bounds = array<i64: 2>, scalar_prefetch = 0 : i64, scratch_operands = 1 : i64, tpu.core_type = #tpu.core_type<tc>, window_params = [{transform_indices = @transform_0, window_bounds = array<i64: 1, 8, 32>}, {pipeline_mode = #tpu.pipeline_mode<synchronous>, transform_indices = @transform_1, window_bounds = array<i64: 32, 96>}, {pipeline_mode = #tpu.pipeline_mode<synchronous>, transform_indices = @transform_2, window_bounds = array<i64: 32, 32>}, {pipeline_mode = #tpu.pipeline_mode<synchronous>, transform_indices = @transform_3, window_bounds = array<i64: 1, 32>}, {pipeline_mode = #tpu.pipeline_mode<synchronous>, transform_indices = @transform_4, window_bounds = array<i64: 1, 32>}, {pipeline_mode = #tpu.pipeline_mode<synchronous>, transform_indices = @transform_5, window_bounds = array<i64: 1, 32>}, {pipeline_mode = #tpu.pipeline_mode<synchronous>, transform_indices = @transform_6, window_bounds = array<i64: 32, 64>}, {pipeline_mode = #tpu.pipeline_mode<synchronous>, transform_indices = @transform_7, window_bounds = array<i64: 1, 64>}, {pipeline_mode = #tpu.pipeline_mode<synchronous>, transform_indices = @transform_8, window_bounds = array<i64: 64, 32>}, {pipeline_mode = #tpu.pipeline_mode<synchronous>, transform_indices = @transform_9, window_bounds = array<i64: 1, 32>}, {pipeline_mode = #tpu.pipeline_mode<synchronous>, transform_indices = @transform_10, window_bounds = array<i64: 1, 32>}, {pipeline_mode = #tpu.pipeline_mode<synchronous>, transform_indices = @transform_11, window_bounds = array<i64: 1, 32>}, {pipeline_mode = #tpu.pipeline_mode<synchronous>, transform_indices = @transform_12, window_bounds = array<i64: 1, 32>}, {pipeline_mode = #tpu.pipeline_mode<synchronous>, transform_indices = @transform_13, window_bounds = array<i64: 1, 32>}, {transform_indices = @transform_14, window_bounds = array<i64: 1, 8, 32>}, {transform_indices = @transform_15, window_bounds = array<i64: 1, 2, 8, 8>}]} {
    %c0 = arith.constant 0 : index
    %c0_0 = arith.constant 0 : index
    %c0_1 = arith.constant 0 : index
    %0 = vector.load %arg1[%c0, %c0_0, %c0_1] : memref<1x8x32xf32, #tpu.memory_space<vmem>>, vector<1x8x32xf32>
    %1 = vector.shape_cast %0 : vector<1x8x32xf32> to vector<8x32xf32>
    %2 = arith.truncf %1 : vector<8x32xf32> to vector<8x32xbf16>
    %c0_2 = arith.constant 0 : index
    %c0_3 = arith.constant 0 : index
    %3 = vector.load %arg2[%c0_2, %c0_3] : memref<32x96xbf16, #tpu.memory_space<vmem>>, vector<32x96xbf16>
    %cst = arith.constant dense<0.000000e+00> : vector<8x96xf32>
    %4 = tpu.matmul %2, %3, %cst {dimension_numbers = #tpu.dot_dimension_numbers<[1], [0], [0], [1], [0, 0, 1, 1], [], []>} : vector<8x32xbf16>, vector<32x96xbf16>, vector<8x96xf32> -> vector<8x96xf32>
    %5 = tpu.iota {dimensions = array<i32: 1>} : vector<1x8x1xi32>
    %6 = arith.sitofp %5 : vector<1x8x1xi32> to vector<1x8x1xf32>
    %7 = tpu.iota {dimensions = array<i32: 2>} : vector<1x1x8xi32>
    %8 = arith.sitofp %7 : vector<1x1x8xi32> to vector<1x1x8xf32>
    %9 = tpu.iota {dimensions = array<i32: 1>} : vector<1x8xi32>
    %10 = arith.sitofp %9 : vector<1x8xi32> to vector<1x8xf32>
    %11 = vector.extract_strided_slice %4 {offsets = [0, 0], sizes = [8, 16], strides = [1, 1]} : vector<8x96xf32> to vector<8x16xf32>
    %12 = vector.shape_cast %11 : vector<8x16xf32> to vector<1x8x16xf32>
    %13 = vector.extract_strided_slice %4 {offsets = [0, 32], sizes = [8, 16], strides = [1, 1]} : vector<8x96xf32> to vector<8x16xf32>
    %14 = vector.shape_cast %13 : vector<8x16xf32> to vector<1x8x16xf32>
    %15 = vector.extract_strided_slice %4 {offsets = [0, 64], sizes = [8, 16], strides = [1, 1]} : vector<8x96xf32> to vector<8x16xf32>
    %16 = vector.shape_cast %15 : vector<8x16xf32> to vector<1x8x16xf32>
    %cst_4 = arith.constant 0.176776692 : f32
    %17 = vector.broadcast %cst_4 : f32 to vector<1x8x16xf32>
    %18 = arith.mulf %12, %17 : vector<1x8x16xf32>
    %19 = arith.truncf %18 : vector<1x8x16xf32> to vector<1x8x16xbf16>
    %20 = arith.truncf %14 : vector<1x8x16xf32> to vector<1x8x16xbf16>
    %cst_5 = arith.constant dense<0.000000e+00> : vector<1x8x8xf32>
    %21 = tpu.matmul %19, %20, %cst_5 {dimension_numbers = #tpu.dot_dimension_numbers<[2], [2], [1], [1], [0, 0, 0, 1, 1, 1], [0], [0]>} : vector<1x8x16xbf16>, vector<1x8x16xbf16>, vector<1x8x8xf32> -> vector<1x8x8xf32>
    %cst_6 = arith.constant dense<0.000000e+00> : vector<1x8xf32>
    %22 = vector.multi_reduction <add>, %12, %cst_6 [2] : vector<1x8x16xf32> to vector<1x8xf32>
    %23 = vector.shape_cast %22 : vector<1x8xf32> to vector<1x8x1xf32>
    %cst_7 = arith.constant 0.176776692 : f32
    %24 = vector.broadcast %cst_7 : f32 to vector<1x8x1xf32>
    %25 = arith.mulf %23, %24 : vector<1x8x1xf32>
    %cst_8 = arith.constant dense<0.000000e+00> : vector<1x8xf32>
    %26 = vector.multi_reduction <add>, %14, %cst_8 [2] : vector<1x8x16xf32> to vector<1x8xf32>
    %cst_9 = arith.constant 0.176776692 : f32
    %27 = vector.broadcast %cst_9 : f32 to vector<1x8xf32>
    %28 = arith.mulf %26, %27 : vector<1x8xf32>
    %cst_10 = arith.constant 2.82842708 : f32
    %29 = vector.broadcast %cst_10 : f32 to vector<1x8xf32>
    %30 = arith.mulf %29, %10 : vector<1x8xf32>
    %31 = arith.addf %28, %30 : vector<1x8xf32>
    %32 = vector.shape_cast %31 : vector<1x8xf32> to vector<1x1x8xf32>
    %33 = vector.broadcast %6 : vector<1x8x1xf32> to vector<1x8x8xf32>
    %34 = vector.broadcast %32 : vector<1x1x8xf32> to vector<1x8x8xf32>
    %35 = arith.mulf %33, %34 : vector<1x8x8xf32>
    %36 = arith.addf %21, %35 : vector<1x8x8xf32>
    %37 = vector.broadcast %25 : vector<1x8x1xf32> to vector<1x8x8xf32>
    %38 = vector.broadcast %8 : vector<1x1x8xf32> to vector<1x8x8xf32>
    %39 = arith.mulf %37, %38 : vector<1x8x8xf32>
    %40 = arith.addf %36, %39 : vector<1x8x8xf32>
    %cst_11 = arith.constant dense<0xFF800000> : vector<1x8xf32>
    %41 = vector.multi_reduction <maximumf>, %40, %cst_11 [2] : vector<1x8x8xf32> to vector<1x8xf32>
    %42 = vector.shape_cast %41 : vector<1x8xf32> to vector<1x8x1xf32>
    %43 = vector.broadcast %42 : vector<1x8x1xf32> to vector<1x8x8xf32>
    %44 = arith.subf %40, %43 : vector<1x8x8xf32>
    %45 = math.exp %44 : vector<1x8x8xf32>
    %cst_12 = arith.constant dense<0.000000e+00> : vector<1x8xf32>
    %46 = vector.multi_reduction <add>, %45, %cst_12 [2] : vector<1x8x8xf32> to vector<1x8xf32>
    %47 = vector.shape_cast %46 : vector<1x8xf32> to vector<1x8x1xf32>
    %48 = tpu.reciprocal %47 {approx = true} : vector<1x8x1xf32> -> vector<1x8x1xf32>
    %49 = vector.broadcast %48 : vector<1x8x1xf32> to vector<1x8x8xf32>
    %50 = arith.mulf %45, %49 : vector<1x8x8xf32>
    %51 = arith.truncf %50 : vector<1x8x8xf32> to vector<1x8x8xbf16>
    %c0_13 = arith.constant 0 : index
    %c0_14 = arith.constant 0 : index
    %c0_15 = arith.constant 0 : index
    %c0_16 = arith.constant 0 : index
    %52 = vector.load %arg16[%c0_13, %c0_14, %c0_15, %c0_16] : memref<1x2x8x8xbf16, #tpu.memory_space<vmem>>, vector<1x1x8x8xbf16>
    %53 = vector.shape_cast %52 : vector<1x1x8x8xbf16> to vector<1x8x8xbf16>
    %54 = vector.shape_cast %51 : vector<1x8x8xbf16> to vector<1x1x8x8xbf16>
    tpu.vector_store %arg16[%c0_13, %c0_14, %c0_15, %c0_16], %54 {strides = array<i32>} : memref<1x2x8x8xbf16, #tpu.memory_space<vmem>>, vector<1x1x8x8xbf16>,
    %55 = arith.truncf %50 : vector<1x8x8xf32> to vector<1x8x8xbf16>
    %56 = arith.truncf %16 : vector<1x8x16xf32> to vector<1x8x16xbf16>
    %cst_17 = arith.constant dense<0.000000e+00> : vector<1x8x16xf32>
    %57 = tpu.matmul %55, %56, %cst_17 {dimension_numbers = #tpu.dot_dimension_numbers<[2], [1], [1], [2], [0, 0, 0, 1, 1, 2], [0], [0]>} : vector<1x8x8xbf16>, vector<1x8x16xbf16>, vector<1x8x16xf32> -> vector<1x8x16xf32>
    %58 = vector.shape_cast %57 : vector<1x8x16xf32> to vector<8x16xf32>
    %59 = arith.truncf %58 : vector<8x16xf32> to vector<8x16xbf16>
    %c0_18 = arith.constant 0 : index
    %c0_19 = arith.constant 0 : index
    %60 = vector.load %arg17[%c0_18, %c0_19] : memref<8x32xbf16, #tpu.memory_space<vmem>>, vector<8x16xbf16>
    tpu.vector_store %arg17[%c0_18, %c0_19], %59 {strides = array<i32>} : memref<8x32xbf16, #tpu.memory_space<vmem>>, vector<8x16xbf16>,
    %61 = vector.extract_strided_slice %4 {offsets = [0, 16], sizes = [8, 16], strides = [1, 1]} : vector<8x96xf32> to vector<8x16xf32>
    %62 = vector.shape_cast %61 : vector<8x16xf32> to vector<1x8x16xf32>
    %63 = vector.extract_strided_slice %4 {offsets = [0, 48], sizes = [8, 16], strides = [1, 1]} : vector<8x96xf32> to vector<8x16xf32>
    %64 = vector.shape_cast %63 : vector<8x16xf32> to vector<1x8x16xf32>
    %65 = vector.extract_strided_slice %4 {offsets = [0, 80], sizes = [8, 16], strides = [1, 1]} : vector<8x96xf32> to vector<8x16xf32>
    %66 = vector.shape_cast %65 : vector<8x16xf32> to vector<1x8x16xf32>
    %cst_20 = arith.constant 0.176776692 : f32
    %67 = vector.broadcast %cst_20 : f32 to vector<1x8x16xf32>
    %68 = arith.mulf %62, %67 : vector<1x8x16xf32>
    %69 = arith.truncf %68 : vector<1x8x16xf32> to vector<1x8x16xbf16>
    %70 = arith.truncf %64 : vector<1x8x16xf32> to vector<1x8x16xbf16>
    %cst_21 = arith.constant dense<0.000000e+00> : vector<1x8x8xf32>
    %71 = tpu.matmul %69, %70, %cst_21 {dimension_numbers = #tpu.dot_dimension_numbers<[2], [2], [1], [1], [0, 0, 0, 1, 1, 1], [0], [0]>} : vector<1x8x16xbf16>, vector<1x8x16xbf16>, vector<1x8x8xf32> -> vector<1x8x8xf32>
    %cst_22 = arith.constant dense<0.000000e+00> : vector<1x8xf32>
    %72 = vector.multi_reduction <add>, %62, %cst_22 [2] : vector<1x8x16xf32> to vector<1x8xf32>
    %73 = vector.shape_cast %72 : vector<1x8xf32> to vector<1x8x1xf32>
    %cst_23 = arith.constant 0.176776692 : f32
    %74 = vector.broadcast %cst_23 : f32 to vector<1x8x1xf32>
    %75 = arith.mulf %73, %74 : vector<1x8x1xf32>
    %cst_24 = arith.constant dense<0.000000e+00> : vector<1x8xf32>
    %76 = vector.multi_reduction <add>, %64, %cst_24 [2] : vector<1x8x16xf32> to vector<1x8xf32>
    %cst_25 = arith.constant 0.176776692 : f32
    %77 = vector.broadcast %cst_25 : f32 to vector<1x8xf32>
    %78 = arith.mulf %76, %77 : vector<1x8xf32>
    %cst_26 = arith.constant 2.82842708 : f32
    %79 = vector.broadcast %cst_26 : f32 to vector<1x8xf32>
    %80 = arith.mulf %79, %10 : vector<1x8xf32>
    %81 = arith.addf %78, %80 : vector<1x8xf32>
    %82 = vector.shape_cast %81 : vector<1x8xf32> to vector<1x1x8xf32>
    %83 = vector.broadcast %6 : vector<1x8x1xf32> to vector<1x8x8xf32>
    %84 = vector.broadcast %82 : vector<1x1x8xf32> to vector<1x8x8xf32>
    %85 = arith.mulf %83, %84 : vector<1x8x8xf32>
    %86 = arith.addf %71, %85 : vector<1x8x8xf32>
    %87 = vector.broadcast %75 : vector<1x8x1xf32> to vector<1x8x8xf32>
    %88 = vector.broadcast %8 : vector<1x1x8xf32> to vector<1x8x8xf32>
    %89 = arith.mulf %87, %88 : vector<1x8x8xf32>
    %90 = arith.addf %86, %89 : vector<1x8x8xf32>
    %cst_27 = arith.constant dense<0xFF800000> : vector<1x8xf32>
    %91 = vector.multi_reduction <maximumf>, %90, %cst_27 [2] : vector<1x8x8xf32> to vector<1x8xf32>
    %92 = vector.shape_cast %91 : vector<1x8xf32> to vector<1x8x1xf32>
    %93 = vector.broadcast %92 : vector<1x8x1xf32> to vector<1x8x8xf32>
    %94 = arith.subf %90, %93 : vector<1x8x8xf32>
    %95 = math.exp %94 : vector<1x8x8xf32>
    %cst_28 = arith.constant dense<0.000000e+00> : vector<1x8xf32>
    %96 = vector.multi_reduction <add>, %95, %cst_28 [2] : vector<1x8x8xf32> to vector<1x8xf32>
    %97 = vector.shape_cast %96 : vector<1x8xf32> to vector<1x8x1xf32>
    %98 = tpu.reciprocal %97 {approx = true} : vector<1x8x1xf32> -> vector<1x8x1xf32>
    %99 = vector.broadcast %98 : vector<1x8x1xf32> to vector<1x8x8xf32>
    %100 = arith.mulf %95, %99 : vector<1x8x8xf32>
    %101 = arith.truncf %100 : vector<1x8x8xf32> to vector<1x8x8xbf16>
    %c0_29 = arith.constant 0 : index
    %c1 = arith.constant 1 : index
    %c0_30 = arith.constant 0 : index
    %c0_31 = arith.constant 0 : index
    %102 = vector.load %arg16[%c0_29, %c1, %c0_30, %c0_31] : memref<1x2x8x8xbf16, #tpu.memory_space<vmem>>, vector<1x1x8x8xbf16>
    %103 = vector.shape_cast %102 : vector<1x1x8x8xbf16> to vector<1x8x8xbf16>
    %104 = vector.shape_cast %101 : vector<1x8x8xbf16> to vector<1x1x8x8xbf16>
    tpu.vector_store %arg16[%c0_29, %c1, %c0_30, %c0_31], %104 {strides = array<i32>} : memref<1x2x8x8xbf16, #tpu.memory_space<vmem>>, vector<1x1x8x8xbf16>,
    %105 = arith.truncf %100 : vector<1x8x8xf32> to vector<1x8x8xbf16>
    %106 = arith.truncf %66 : vector<1x8x16xf32> to vector<1x8x16xbf16>
    %cst_32 = arith.constant dense<0.000000e+00> : vector<1x8x16xf32>
    %107 = tpu.matmul %105, %106, %cst_32 {dimension_numbers = #tpu.dot_dimension_numbers<[2], [1], [1], [2], [0, 0, 0, 1, 1, 2], [0], [0]>} : vector<1x8x8xbf16>, vector<1x8x16xbf16>, vector<1x8x16xf32> -> vector<1x8x16xf32>
    %108 = vector.shape_cast %107 : vector<1x8x16xf32> to vector<8x16xf32>
    %109 = arith.truncf %108 : vector<8x16xf32> to vector<8x16xbf16>
    %c0_33 = arith.constant 0 : index
    %c16 = arith.constant 16 : index
    %110 = vector.load %arg17[%c0_33, %c16] : memref<8x32xbf16, #tpu.memory_space<vmem>>, vector<8x16xbf16>
    tpu.vector_store %arg17[%c0_33, %c16], %109 {strides = array<i32>} : memref<8x32xbf16, #tpu.memory_space<vmem>>, vector<8x16xbf16>,
    %c0_34 = arith.constant 0 : index
    %c0_35 = arith.constant 0 : index
    %111 = vector.load %arg17[%c0_34, %c0_35] : memref<8x32xbf16, #tpu.memory_space<vmem>>, vector<8x32xbf16>
    %c0_36 = arith.constant 0 : index
    %c0_37 = arith.constant 0 : index
    %112 = vector.load %arg3[%c0_36, %c0_37] : memref<32x32xbf16, #tpu.memory_space<vmem>>, vector<32x32xbf16>
    %cst_38 = arith.constant dense<0.000000e+00> : vector<8x32xf32>
    %113 = tpu.matmul %111, %112, %cst_38 {dimension_numbers = #tpu.dot_dimension_numbers<[1], [0], [0], [1], [0, 0, 1, 1], [], []>} : vector<8x32xbf16>, vector<32x32xbf16>, vector<8x32xf32> -> vector<8x32xf32>
    %c0_39 = arith.constant 0 : index
    %c0_40 = arith.constant 0 : index
    %114 = vector.load %arg4[%c0_39, %c0_40] : memref<1x32xf32, #tpu.memory_space<vmem>>, vector<1x32xf32>
    %115 = vector.broadcast %114 : vector<1x32xf32> to vector<8x32xf32>
    %116 = arith.addf %113, %115 : vector<8x32xf32>
    %117 = arith.addf %1, %116 : vector<8x32xf32>
    %c0_41 = arith.constant 0 : index
    %c0_42 = arith.constant 0 : index
    %118 = vector.load %arg5[%c0_41, %c0_42] : memref<1x32xf32, #tpu.memory_space<vmem>>, vector<1x32xf32>
    %c0_43 = arith.constant 0 : index
    %c0_44 = arith.constant 0 : index
    %119 = vector.load %arg6[%c0_43, %c0_44] : memref<1x32xf32, #tpu.memory_space<vmem>>, vector<1x32xf32>
    %cst_45 = arith.constant dense<0.000000e+00> : vector<8xf32>
    %120 = vector.multi_reduction <add>, %117, %cst_45 [1] : vector<8x32xf32> to vector<8xf32>
    %121 = vector.shape_cast %120 : vector<8xf32> to vector<8x1xf32>
    %cst_46 = arith.constant 3.200000e+01 : f32
    %122 = vector.broadcast %cst_46 : f32 to vector<8x1xf32>
    %123 = arith.divf %121, %122 : vector<8x1xf32>
    %124 = vector.broadcast %123 : vector<8x1xf32> to vector<8x32xf32>
    %125 = arith.subf %117, %124 : vector<8x32xf32>
    %126 = arith.mulf %125, %125 : vector<8x32xf32>
    %cst_47 = arith.constant dense<0.000000e+00> : vector<8xf32>
    %127 = vector.multi_reduction <add>, %126, %cst_47 [1] : vector<8x32xf32> to vector<8xf32>
    %128 = vector.shape_cast %127 : vector<8xf32> to vector<8x1xf32>
    %cst_48 = arith.constant 3.200000e+01 : f32
    %129 = vector.broadcast %cst_48 : f32 to vector<8x1xf32>
    %130 = arith.divf %128, %129 : vector<8x1xf32>
    %131 = vector.broadcast %123 : vector<8x1xf32> to vector<8x32xf32>
    %132 = arith.subf %117, %131 : vector<8x32xf32>
    %cst_49 = arith.constant 9.99999974E-6 : f32
    %133 = vector.broadcast %cst_49 : f32 to vector<8x1xf32>
    %134 = arith.addf %130, %133 : vector<8x1xf32>
    %135 = math.rsqrt %134 : vector<8x1xf32>
    %136 = vector.broadcast %135 : vector<8x1xf32> to vector<8x32xf32>
    %137 = arith.mulf %132, %136 : vector<8x32xf32>
    %138 = vector.broadcast %118 : vector<1x32xf32> to vector<8x32xf32>
    %139 = arith.mulf %137, %138 : vector<8x32xf32>
    %140 = vector.broadcast %119 : vector<1x32xf32> to vector<8x32xf32>
    %141 = arith.addf %139, %140 : vector<8x32xf32>
    %142 = arith.truncf %141 : vector<8x32xf32> to vector<8x32xbf16>
    %c0_50 = arith.constant 0 : index
    %c0_51 = arith.constant 0 : index
    %143 = vector.load %arg7[%c0_50, %c0_51] : memref<32x64xbf16, #tpu.memory_space<vmem>>, vector<32x64xbf16>
    %cst_52 = arith.constant dense<0.000000e+00> : vector<8x64xf32>
    %144 = tpu.matmul %142, %143, %cst_52 {dimension_numbers = #tpu.dot_dimension_numbers<[1], [0], [0], [1], [0, 0, 1, 1], [], []>} : vector<8x32xbf16>, vector<32x64xbf16>, vector<8x64xf32> -> vector<8x64xf32>
    %c0_53 = arith.constant 0 : index
    %c0_54 = arith.constant 0 : index
    %145 = vector.load %arg8[%c0_53, %c0_54] : memref<1x64xf32, #tpu.memory_space<vmem>>, vector<1x64xf32>
    %146 = vector.broadcast %145 : vector<1x64xf32> to vector<8x64xf32>
    %147 = arith.addf %144, %146 : vector<8x64xf32>
    %cst_55 = arith.constant 0.000000e+00 : f32
    %148 = vector.broadcast %cst_55 : f32 to vector<8x64xf32>
    %149 = arith.maximumf %147, %148 : vector<8x64xf32>
    %150 = arith.truncf %149 : vector<8x64xf32> to vector<8x64xbf16>
    %c0_56 = arith.constant 0 : index
    %c0_57 = arith.constant 0 : index
    %151 = vector.load %arg9[%c0_56, %c0_57] : memref<64x32xbf16, #tpu.memory_space<vmem>>, vector<64x32xbf16>
    %cst_58 = arith.constant dense<0.000000e+00> : vector<8x32xf32>
    %152 = tpu.matmul %150, %151, %cst_58 {dimension_numbers = #tpu.dot_dimension_numbers<[1], [0], [0], [1], [0, 0, 1, 1], [], []>} : vector<8x64xbf16>, vector<64x32xbf16>, vector<8x32xf32> -> vector<8x32xf32>
    %c0_59 = arith.constant 0 : index
    %c0_60 = arith.constant 0 : index
    %153 = vector.load %arg10[%c0_59, %c0_60] : memref<1x32xf32, #tpu.memory_space<vmem>>, vector<1x32xf32>
    %154 = vector.broadcast %153 : vector<1x32xf32> to vector<8x32xf32>
    %155 = arith.addf %152, %154 : vector<8x32xf32>
    %156 = arith.addf %155, %141 : vector<8x32xf32>
    %c0_61 = arith.constant 0 : index
    %c0_62 = arith.constant 0 : index
    %157 = vector.load %arg11[%c0_61, %c0_62] : memref<1x32xf32, #tpu.memory_space<vmem>>, vector<1x32xf32>
    %c0_63 = arith.constant 0 : index
    %c0_64 = arith.constant 0 : index
    %158 = vector.load %arg12[%c0_63, %c0_64] : memref<1x32xf32, #tpu.memory_space<vmem>>, vector<1x32xf32>
    %cst_65 = arith.constant dense<0.000000e+00> : vector<8xf32>
    %159 = vector.multi_reduction <add>, %156, %cst_65 [1] : vector<8x32xf32> to vector<8xf32>
    %160 = vector.shape_cast %159 : vector<8xf32> to vector<8x1xf32>
    %cst_66 = arith.constant 3.200000e+01 : f32
    %161 = vector.broadcast %cst_66 : f32 to vector<8x1xf32>
    %162 = arith.divf %160, %161 : vector<8x1xf32>
    %163 = vector.broadcast %162 : vector<8x1xf32> to vector<8x32xf32>
    %164 = arith.subf %156, %163 : vector<8x32xf32>
    %165 = arith.mulf %164, %164 : vector<8x32xf32>
    %cst_67 = arith.constant dense<0.000000e+00> : vector<8xf32>
    %166 = vector.multi_reduction <add>, %165, %cst_67 [1] : vector<8x32xf32> to vector<8xf32>
    %167 = vector.shape_cast %166 : vector<8xf32> to vector<8x1xf32>
    %cst_68 = arith.constant 3.200000e+01 : f32
    %168 = vector.broadcast %cst_68 : f32 to vector<8x1xf32>
    %169 = arith.divf %167, %168 : vector<8x1xf32>
    %170 = vector.broadcast %162 : vector<8x1xf32> to vector<8x32xf32>
    %171 = arith.subf %156, %170 : vector<8x32xf32>
    %cst_69 = arith.constant 9.99999974E-6 : f32
    %172 = vector.broadcast %cst_69 : f32 to vector<8x1xf32>
    %173 = arith.addf %169, %172 : vector<8x1xf32>
    %174 = math.rsqrt %173 : vector<8x1xf32>
    %175 = vector.broadcast %174 : vector<8x1xf32> to vector<8x32xf32>
    %176 = arith.mulf %171, %175 : vector<8x32xf32>
    %177 = vector.broadcast %157 : vector<1x32xf32> to vector<8x32xf32>
    %178 = arith.mulf %176, %177 : vector<8x32xf32>
    %179 = vector.broadcast %158 : vector<1x32xf32> to vector<8x32xf32>
    %180 = arith.addf %178, %179 : vector<8x32xf32>
    %181 = arith.addf %141, %180 : vector<8x32xf32>
    %c0_70 = arith.constant 0 : index
    %c0_71 = arith.constant 0 : index
    %182 = vector.load %arg13[%c0_70, %c0_71] : memref<1x32xf32, #tpu.memory_space<vmem>>, vector<1x32xf32>
    %c0_72 = arith.constant 0 : index
    %c0_73 = arith.constant 0 : index
    %183 = vector.load %arg14[%c0_72, %c0_73] : memref<1x32xf32, #tpu.memory_space<vmem>>, vector<1x32xf32>
    %cst_74 = arith.constant dense<0.000000e+00> : vector<8xf32>
    %184 = vector.multi_reduction <add>, %181, %cst_74 [1] : vector<8x32xf32> to vector<8xf32>
    %185 = vector.shape_cast %184 : vector<8xf32> to vector<8x1xf32>
    %cst_75 = arith.constant 3.200000e+01 : f32
    %186 = vector.broadcast %cst_75 : f32 to vector<8x1xf32>
    %187 = arith.divf %185, %186 : vector<8x1xf32>
    %188 = vector.broadcast %187 : vector<8x1xf32> to vector<8x32xf32>
    %189 = arith.subf %181, %188 : vector<8x32xf32>
    %190 = arith.mulf %189, %189 : vector<8x32xf32>
    %cst_76 = arith.constant dense<0.000000e+00> : vector<8xf32>
    %191 = vector.multi_reduction <add>, %190, %cst_76 [1] : vector<8x32xf32> to vector<8xf32>
    %192 = vector.shape_cast %191 : vector<8xf32> to vector<8x1xf32>
    %cst_77 = arith.constant 3.200000e+01 : f32
    %193 = vector.broadcast %cst_77 : f32 to vector<8x1xf32>
    %194 = arith.divf %192, %193 : vector<8x1xf32>
    %195 = vector.broadcast %187 : vector<8x1xf32> to vector<8x32xf32>
    %196 = arith.subf %181, %195 : vector<8x32xf32>
    %cst_78 = arith.constant 9.99999974E-6 : f32
    %197 = vector.broadcast %cst_78 : f32 to vector<8x1xf32>
    %198 = arith.addf %194, %197 : vector<8x1xf32>
    %199 = math.rsqrt %198 : vector<8x1xf32>
    %200 = vector.broadcast %199 : vector<8x1xf32> to vector<8x32xf32>
    %201 = arith.mulf %196, %200 : vector<8x32xf32>
    %202 = vector.broadcast %182 : vector<1x32xf32> to vector<8x32xf32>
    %203 = arith.mulf %201, %202 : vector<8x32xf32>
    %204 = vector.broadcast %183 : vector<1x32xf32> to vector<8x32xf32>
    %205 = arith.addf %203, %204 : vector<8x32xf32>
    %206 = vector.shape_cast %205 : vector<8x32xf32> to vector<1x8x32xf32>
    %c0_79 = arith.constant 0 : index
    %c0_80 = arith.constant 0 : index
    %c0_81 = arith.constant 0 : index
    %207 = vector.load %arg15[%c0_79, %c0_80, %c0_81] : memref<1x8x32xf32, #tpu.memory_space<vmem>>, vector<1x8x32xf32>
    tpu.vector_store %arg15[%c0_79, %c0_80, %c0_81], %206 {strides = array<i32>} : memref<1x8x32xf32, #tpu.memory_space<vmem>>, vector<1x8x32xf32>,
    return
  }
  func.func @transform_0(%arg0: i32) -> (i32, i32, i32) {
    %c0_i32 = arith.constant 0 : i32
    %c0_i32_0 = arith.constant 0 : i32
    %c0_i32_1 = arith.constant 0 : i32
    return %arg0, %c0_i32, %c0_i32_0 : i32, i32, i32
  }
  func.func @transform_1(%arg0: i32) -> (i32, i32) {
    %c0_i32 = arith.constant 0 : i32
    %c0_i32_0 = arith.constant 0 : i32
    %c0_i32_1 = arith.constant 0 : i32
    return %c0_i32, %c0_i32_0 : i32, i32
  }
  func.func @transform_2(%arg0: i32) -> (i32, i32) {
    %c0_i32 = arith.constant 0 : i32
    %c0_i32_0 = arith.constant 0 : i32
    %c0_i32_1 = arith.constant 0 : i32
    return %c0_i32, %c0_i32_0 : i32, i32
  }
  func.func @transform_3(%arg0: i32) -> (i32, i32) {
    %c0_i32 = arith.constant 0 : i32
    %c0_i32_0 = arith.constant 0 : i32
    %c0_i32_1 = arith.constant 0 : i32
    return %c0_i32, %c0_i32_0 : i32, i32
  }
  func.func @transform_4(%arg0: i32) -> (i32, i32) {
    %c0_i32 = arith.constant 0 : i32
    %c0_i32_0 = arith.constant 0 : i32
    %c0_i32_1 = arith.constant 0 : i32
    return %c0_i32, %c0_i32_0 : i32, i32
  }
  func.func @transform_5(%arg0: i32) -> (i32, i32) {
    %c0_i32 = arith.constant 0 : i32
    %c0_i32_0 = arith.constant 0 : i32
    %c0_i32_1 = arith.constant 0 : i32
    return %c0_i32, %c0_i32_0 : i32, i32
  }
  func.func @transform_6(%arg0: i32) -> (i32, i32) {
    %c0_i32 = arith.constant 0 : i32
    %c0_i32_0 = arith.constant 0 : i32
    %c0_i32_1 = arith.constant 0 : i32
    return %c0_i32, %c0_i32_0 : i32, i32
  }
  func.func @transform_7(%arg0: i32) -> (i32, i32) {
    %c0_i32 = arith.constant 0 : i32
    %c0_i32_0 = arith.constant 0 : i32
    %c0_i32_1 = arith.constant 0 : i32
    return %c0_i32, %c0_i32_0 : i32, i32
  }
  func.func @transform_8(%arg0: i32) -> (i32, i32) {
    %c0_i32 = arith.constant 0 : i32
    %c0_i32_0 = arith.constant 0 : i32
    %c0_i32_1 = arith.constant 0 : i32
    return %c0_i32, %c0_i32_0 : i32, i32
  }
  func.func @transform_9(%arg0: i32) -> (i32, i32) {
    %c0_i32 = arith.constant 0 : i32
    %c0_i32_0 = arith.constant 0 : i32
    %c0_i32_1 = arith.constant 0 : i32
    return %c0_i32, %c0_i32_0 : i32, i32
  }
  func.func @transform_10(%arg0: i32) -> (i32, i32) {
    %c0_i32 = arith.constant 0 : i32
    %c0_i32_0 = arith.constant 0 : i32
    %c0_i32_1 = arith.constant 0 : i32
    return %c0_i32, %c0_i32_0 : i32, i32
  }
  func.func @transform_11(%arg0: i32) -> (i32, i32) {
    %c0_i32 = arith.constant 0 : i32
    %c0_i32_0 = arith.constant 0 : i32
    %c0_i32_1 = arith.constant 0 : i32
    return %c0_i32, %c0_i32_0 : i32, i32
  }
  func.func @transform_12(%arg0: i32) -> (i32, i32) {
    %c0_i32 = arith.constant 0 : i32
    %c0_i32_0 = arith.constant 0 : i32
    %c0_i32_1 = arith.constant 0 : i32
    return %c0_i32, %c0_i32_0 : i32, i32
  }
  func.func @transform_13(%arg0: i32) -> (i32, i32) {
    %c0_i32 = arith.constant 0 : i32
    %c0_i32_0 = arith.constant 0 : i32
    %c0_i32_1 = arith.constant 0 : i32
    return %c0_i32, %c0_i32_0 : i32, i32
  }
  func.func @transform_14(%arg0: i32) -> (i32, i32, i32) {
    %c0_i32 = arith.constant 0 : i32
    %c0_i32_0 = arith.constant 0 : i32
    %c0_i32_1 = arith.constant 0 : i32
    return %arg0, %c0_i32, %c0_i32_0 : i32, i32, i32
  }
  func.func @transform_15(%arg0: i32) -> (i32, i32, i32, i32) {
    %c0_i32 = arith.constant 0 : i32
    %c0_i32_0 = arith.constant 0 : i32
    %c0_i32_1 = arith.constant 0 : i32
    %c0_i32_2 = arith.constant 0 : i32
    return %arg0, %c0_i32, %c0_i32_0, %c0_i32_1 : i32, i32, i32, i32
  }
}

</mosaic_0001>

<llo_original>
// kernel: tpu_custom_call.1
$region0: #{tpu_custom_call.1}
  #allocation0 [shape = 'u32[]', space=smem, size = 0x4, offset = 0x4, fixed_abs, tag = 'smem constant byte address 0x4 - core index']
  #allocation1 [shape = 'u32[144,128]{1,0:T(1,128)}', space=vmem, size = 0x12000, scoped, tag = 'internal scratch']
  #allocation2 [shape = 'bf16[8,32]{1,0:T(8,128)(2,1)}', space=vmem, size = 0x800, scoped, tag = 'scratch operand']
  %s0 = inlined_call_operand.vmem [shape: f32[2,8,32], index: 0, kind: input, shape index: {}]
  %s1 = inlined_call_operand.vmem [shape: bf16[32,96], index: 1, kind: input, shape index: {}]
  %s2 = inlined_call_operand.vmem [shape: bf16[32,32], index: 2, kind: input, shape index: {}]
  %s3 = inlined_call_operand.vmem [shape: f32[1,32], index: 3, kind: input, shape index: {}]
  %s4 = inlined_call_operand.vmem [shape: f32[1,32], index: 4, kind: input, shape index: {}]
  %s5 = inlined_call_operand.vmem [shape: f32[1,32], index: 5, kind: input, shape index: {}]
  %s6 = inlined_call_operand.hbm [shape: bf16[32,64], index: 6, kind: input, shape index: {}]
  %s7 = inlined_call_operand.vmem [shape: f32[1,64], index: 7, kind: input, shape index: {}]
  %s8 = inlined_call_operand.vmem [shape: bf16[64,32], index: 8, kind: input, shape index: {}]
  %s9 = inlined_call_operand.vmem [shape: f32[1,32], index: 9, kind: input, shape index: {}]
  %s10 = inlined_call_operand.vmem [shape: f32[1,32], index: 10, kind: input, shape index: {}]
  %s11 = inlined_call_operand.vmem [shape: f32[1,32], index: 11, kind: input, shape index: {}]
  %s12 = inlined_call_operand.vmem [shape: f32[1,32], index: 12, kind: input, shape index: {}]
  %s13 = inlined_call_operand.vmem [shape: f32[1,32], index: 13, kind: input, shape index: {}]
  %s14 = inlined_call_operand.hbm [shape: f32[2,8,32], index: 14, kind: output, shape index: {0}]
  %s15 = inlined_call_operand.hbm [shape: bf16[2,2,8,8], index: 15, kind: output, shape index: {1}]
  %16 = xla_tuple %s14, %s15
  %s17 = sld [smem:[#allocation0]]
  $region101: #{tpu_custom_call.1} parent=0
    _
  %s19 = ssub.s32 1, %s17
  %s20 = scalar_select 0, %s19, %s17
  $region1: #{tpu_custom_call.1} parent=0
    #allocation3 [shape = 'u8[8192]{0}', space=vmem, size = 0x2000, scoped, tag = 'input window, operand 6, single buffered']
    #allocation4 [shape = 's32[2]{0}', space=sflag, size = 0x8, scoped, tag = 'scoped memory for tpu_custom_call.1']
    #allocation5 [shape = 's32[2]{0}', space=sflag, size = 0x8, scoped, tag = 'scoped memory for tpu_custom_call.1']
    #allocation6 [shape = 'u8[8192]{0}', space=vmem, size = 0x2000, scoped, tag = 'output window, operand 0']
    #allocation7 [shape = 'u8[8192]{0}', space=vmem, size = 0x2000, scoped, tag = 'output window, operand 1']
    #allocation8 [shape = 's32[2]{0}', space=sflag, size = 0x8, scoped, tag = 'scoped memory for tpu_custom_call.1']
    %21 = vsyncpa [#allocation4], 0
    %22 = vsyncpa [#allocation5], 0
    %s23 = scalar_lea.sflag [#allocation5], 1
    %24 = vsyncpa %s23, 0
    %25 = vsyncpa [#allocation8], 0
    %s26 = scalar_lea.sflag [#allocation8], 1
    %27 = vsyncpa %s26, 0
    loop: start=0, step=1, limit=4
    $region2: #{tpu_custom_call.1} parent=1 // loop_pre_header
      _
    $region3: #{tpu_custom_call.1} parent=1 // loop_header
      %s29 = sphi 0, %s33
      %p30 = scmp.ge.s32.totalorder %s29, 4
      %s39 = sphi 0, %s41
      %s42 = sphi 0, %s39
      %s43 = sphi 0, %s42
      %s59 = sphi 0, %s43
      %s63 = sphi 0, %s63
      %s65 = sphi 0, %s63
      %s66 = sphi 0, %s65
      %s80 = sphi 0, %s66
      %s84 = sphi 0, %s84
      %s86 = sphi 0, %s84
      %s87 = sphi 0, %s86
      %s101 = sphi 0, %s87
      %s105 = sphi 0, %s105
      %s107 = sphi 0, %s105
      %s108 = sphi 0, %s107
      %s122 = sphi 0, %s108
      %s126 = sphi 0, %s126
      %s128 = sphi 0, %s126
      %s129 = sphi 0, %s128
      %s143 = sphi 0, %s129
      %s147 = sphi 0, %s147
      %s149 = sphi 0, %s147
      %s150 = sphi 0, %s149
      %s164 = sphi 0, %s150
      %s168 = sphi 0, %s168
      %s170 = sphi 0, %s168
      %s171 = sphi 0, %s170
      %s185 = sphi 0, %s171
      %s189 = sphi 0, %s189
      %s191 = sphi 0, %s189
      %s192 = sphi 0, %s191
      %s206 = sphi 0, %s192
      %s210 = sphi 0, %s210
      %s212 = sphi 0, %s210
      %s213 = sphi 0, %s212
      %s227 = sphi 0, %s213
      %s231 = sphi 0, %s231
      %s233 = sphi 0, %s231
      %s234 = sphi 0, %s233
      %s248 = sphi 0, %s234
      %s252 = sphi 0, %s252
      %s254 = sphi 0, %s252
      %s255 = sphi 0, %s254
      %s269 = sphi 0, %s255
      %s273 = sphi 0, %s273
      %s275 = sphi 0, %s273
      %s276 = sphi 0, %s275
      %s290 = sphi 0, %s276
      %s294 = sphi 0, %s294
      %s296 = sphi 0, %s294
      %s297 = sphi 0, %s296
      %s311 = sphi 0, %s297
      %s315 = sphi 0, %s315
      %s317 = sphi 0, %s315
      %s318 = sphi 0, %s317
      %s332 = sphi 0, %s318
      %s338 = sphi 0, %s340
      %s341 = sphi 0, %s338
      %s342 = sphi 0, %s341
      %s358 = sphi 0, %s342
      %s364 = sphi 0, %s366
      %s367 = sphi 0, %s364
      %s368 = sphi 0, %s367
      %s384 = sphi 0, %s368
    $region4: #{tpu_custom_call.1} parent=1 // loop_header_branch
      %32 = sbr.rel (%p30) target = $region8
    $region5: #{tpu_custom_call.1} parent=1 // loop_body
      %s34 = ssub.s32 %s29, 1
      %s35 = ssub.s32 %s29, 2
      %s36 = sadd.s32 %s29, 1
      %s37 = ssub.s32 %s29, %s36
      %p38 = scmp.eq.s32.totalorder %s37, 0
      %s40 = sadd.s32 %s39, 1
      %s41 = scalar_select %p38, %s39, %s40
      %p44 = pneg %p38
      %p45 = scmp.eq.s32.totalorder %s29, 1
      %p46 = por %p44, %p45
      %p47 = scmp.ne.s32.totalorder %s39, %s42
      %p48 = scmp.eq.s32.totalorder %s29, 0
      %p49 = por %p47, %p48
      %p50 = scmp.ne.s32.totalorder %s39, %s42
      %p51 = scmp.eq.s32.totalorder %s34, 1
      %p52 = por %p50, %p51
      %p53 = scmp.ne.s32.totalorder %s42, %s43
      %p54 = scmp.eq.s32.totalorder %s34, 0
      %p55 = por %p53, %p54
      %p56 = scmp.ne.s32.totalorder %s42, %s43
      %p57 = scmp.eq.s32.totalorder %s35, 1
      %p58 = por %p56, %p57
      %p60 = scmp.ne.s32.totalorder %s43, %s59
      %p61 = scmp.eq.s32.totalorder %s35, 0
      %p62 = por %p60, %p61
      %s64 = sadd.s32 %s63, 1
      %p67 = scmp.eq.s32.totalorder %s29, 1
      %p68 = scmp.ne.s32.totalorder %s63, %s65
      %p69 = scmp.eq.s32.totalorder %s29, 0
      %p70 = por %p68, %p69
      %p71 = scmp.ne.s32.totalorder %s63, %s65
      %p72 = scmp.eq.s32.totalorder %s34, 1
      %p73 = por %p71, %p72
      %p74 = scmp.ne.s32.totalorder %s65, %s66
      %p75 = scmp.eq.s32.totalorder %s34, 0
      %p76 = por %p74, %p75
      %p77 = scmp.ne.s32.totalorder %s65, %s66
      %p78 = scmp.eq.s32.totalorder %s35, 1
      %p79 = por %p77, %p78
      %p81 = scmp.ne.s32.totalorder %s66, %s80
      %p82 = scmp.eq.s32.totalorder %s35, 0
      %p83 = por %p81, %p82
      %s85 = sadd.s32 %s84, 1
      %p88 = scmp.eq.s32.totalorder %s29, 1
      %p89 = scmp.ne.s32.totalorder %s84, %s86
      %p90 = scmp.eq.s32.totalorder %s29, 0
      %p91 = por %p89, %p90
      %p92 = scmp.ne.s32.totalorder %s84, %s86
      %p93 = scmp.eq.s32.totalorder %s34, 1
      %p94 = por %p92, %p93
      %p95 = scmp.ne.s32.totalorder %s86, %s87
      %p96 = scmp.eq.s32.totalorder %s34, 0
      %p97 = por %p95, %p96
      %p98 = scmp.ne.s32.totalorder %s86, %s87
      %p99 = scmp.eq.s32.totalorder %s35, 1
      %p100 = por %p98, %p99
      %p102 = scmp.ne.s32.totalorder %s87, %s101
      %p103 = scmp.eq.s32.totalorder %s35, 0
      %p104 = por %p102, %p103
      %s106 = sadd.s32 %s105, 1
      %p109 = scmp.eq.s32.totalorder %s29, 1
      %p110 = scmp.ne.s32.totalorder %s105, %s107
      %p111 = scmp.eq.s32.totalorder %s29, 0
      %p112 = por %p110, %p111
      %p113 = scmp.ne.s32.totalorder %s105, %s107
      %p114 = scmp.eq.s32.totalorder %s34, 1
      %p115 = por %p113, %p114
      %p116 = scmp.ne.s32.totalorder %s107, %s108
      %p117 = scmp.eq.s32.totalorder %s34, 0
      %p118 = por %p116, %p117
      %p119 = scmp.ne.s32.totalorder %s107, %s108
      %p120 = scmp.eq.s32.totalorder %s35, 1
      %p121 = por %p119, %p120
      %p123 = scmp.ne.s32.totalorder %s108, %s122
      %p124 = scmp.eq.s32.totalorder %s35, 0
      %p125 = por %p123, %p124
      %s127 = sadd.s32 %s126, 1
      %p130 = scmp.eq.s32.totalorder %s29, 1
      %p131 = scmp.ne.s32.totalorder %s126, %s128
      %p132 = scmp.eq.s32.totalorder %s29, 0
      %p133 = por %p131, %p132
      %p134 = scmp.ne.s32.totalorder %s126, %s128
      %p135 = scmp.eq.s32.totalorder %s34, 1
      %p136 = por %p134, %p135
      %p137 = scmp.ne.s32.totalorder %s128, %s129
      %p138 = scmp.eq.s32.totalorder %s34, 0
      %p139 = por %p137, %p138
      %p140 = scmp.ne.s32.totalorder %s128, %s129
      %p141 = scmp.eq.s32.totalorder %s35, 1
      %p142 = por %p140, %p141
      %p144 = scmp.ne.s32.totalorder %s129, %s143
      %p145 = scmp.eq.s32.totalorder %s35, 0
      %p146 = por %p144, %p145
      %s148 = sadd.s32 %s147, 1
      %p151 = scmp.eq.s32.totalorder %s29, 1
      %p152 = scmp.ne.s32.totalorder %s147, %s149
      %p153 = scmp.eq.s32.totalorder %s29, 0
      %p154 = por %p152, %p153
      %p155 = scmp.ne.s32.totalorder %s147, %s149
      %p156 = scmp.eq.s32.totalorder %s34, 1
      %p157 = por %p155, %p156
      %p158 = scmp.ne.s32.totalorder %s149, %s150
      %p159 = scmp.eq.s32.totalorder %s34, 0
      %p160 = por %p158, %p159
      %p161 = scmp.ne.s32.totalorder %s149, %s150
      %p162 = scmp.eq.s32.totalorder %s35, 1
      %p163 = por %p161, %p162
      %p165 = scmp.ne.s32.totalorder %s150, %s164
      %p166 = scmp.eq.s32.totalorder %s35, 0
      %p167 = por %p165, %p166
      %s169 = sadd.s32 %s168, 1
      %p172 = scmp.eq.s32.totalorder %s29, 1
      %p173 = scmp.ne.s32.totalorder %s168, %s170
      %p174 = scmp.eq.s32.totalorder %s29, 0
      %p175 = por %p173, %p174
      %p176 = scmp.ne.s32.totalorder %s168, %s170
      %p177 = scmp.eq.s32.totalorder %s34, 1
      %p178 = por %p176, %p177
      %p179 = scmp.ne.s32.totalorder %s170, %s171
      %p180 = scmp.eq.s32.totalorder %s34, 0
      %p181 = por %p179, %p180
      %p182 = scmp.ne.s32.totalorder %s170, %s171
      %p183 = scmp.eq.s32.totalorder %s35, 1
      %p184 = por %p182, %p183
      %p186 = scmp.ne.s32.totalorder %s171, %s185
      %p187 = scmp.eq.s32.totalorder %s35, 0
      %p188 = por %p186, %p187
      %s190 = sadd.s32 %s189, 1
      %p193 = scmp.eq.s32.totalorder %s29, 1
      %p194 = scmp.ne.s32.totalorder %s189, %s191
      %p195 = scmp.eq.s32.totalorder %s29, 0
      %p196 = por %p194, %p195
      %p197 = scmp.ne.s32.totalorder %s189, %s191
      %p198 = scmp.eq.s32.totalorder %s34, 1
      %p199 = por %p197, %p198
      %p200 = scmp.ne.s32.totalorder %s191, %s192
      %p201 = scmp.eq.s32.totalorder %s34, 0
      %p202 = por %p200, %p201
      %p203 = scmp.ne.s32.totalorder %s191, %s192
      %p204 = scmp.eq.s32.totalorder %s35, 1
      %p205 = por %p203, %p204
      %p207 = scmp.ne.s32.totalorder %s192, %s206
      %p208 = scmp.eq.s32.totalorder %s35, 0
      %p209 = por %p207, %p208
      %s211 = sadd.s32 %s210, 1
      %p214 = scmp.eq.s32.totalorder %s29, 1
      %p215 = scmp.ne.s32.totalorder %s210, %s212
      %p216 = scmp.eq.s32.totalorder %s29, 0
      %p217 = por %p215, %p216
      %p218 = scmp.ne.s32.totalorder %s210, %s212
      %p219 = scmp.eq.s32.totalorder %s34, 1
      %p220 = por %p218, %p219
      %p221 = scmp.ne.s32.totalorder %s212, %s213
      %p222 = scmp.eq.s32.totalorder %s34, 0
      %p223 = por %p221, %p222
      %p224 = scmp.ne.s32.totalorder %s212, %s213
      %p225 = scmp.eq.s32.totalorder %s35, 1
      %p226 = por %p224, %p225
      %p228 = scmp.ne.s32.totalorder %s213, %s227
      %p229 = scmp.eq.s32.totalorder %s35, 0
      %p230 = por %p228, %p229
      %s232 = sadd.s32 %s231, 1
      %p235 = scmp.eq.s32.totalorder %s29, 1
      %p236 = scmp.ne.s32.totalorder %s231, %s233
      %p237 = scmp.eq.s32.totalorder %s29, 0
      %p238 = por %p236, %p237
      %p239 = scmp.ne.s32.totalorder %s231, %s233
      %p240 = scmp.eq.s32.totalorder %s34, 1
      %p241 = por %p239, %p240
      %p242 = scmp.ne.s32.totalorder %s233, %s234
      %p243 = scmp.eq.s32.totalorder %s34, 0
      %p244 = por %p242, %p243
      %p245 = scmp.ne.s32.totalorder %s233, %s234
      %p246 = scmp.eq.s32.totalorder %s35, 1
      %p247 = por %p245, %p246
      %p249 = scmp.ne.s32.totalorder %s234, %s248
      %p250 = scmp.eq.s32.totalorder %s35, 0
      %p251 = por %p249, %p250
      %s253 = sadd.s32 %s252, 1
      %p256 = scmp.eq.s32.totalorder %s29, 1
      %p257 = scmp.ne.s32.totalorder %s252, %s254
      %p258 = scmp.eq.s32.totalorder %s29, 0
      %p259 = por %p257, %p258
      %p260 = scmp.ne.s32.totalorder %s252, %s254
      %p261 = scmp.eq.s32.totalorder %s34, 1
      %p262 = por %p260, %p261
      %p263 = scmp.ne.s32.totalorder %s254, %s255
      %p264 = scmp.eq.s32.totalorder %s34, 0
      %p265 = por %p263, %p264
      %p266 = scmp.ne.s32.totalorder %s254, %s255
      %p267 = scmp.eq.s32.totalorder %s35, 1
      %p268 = por %p266, %p267
      %p270 = scmp.ne.s32.totalorder %s255, %s269
      %p271 = scmp.eq.s32.totalorder %s35, 0
      %p272 = por %p270, %p271
      %s274 = sadd.s32 %s273, 1
      %p277 = scmp.eq.s32.totalorder %s29, 1
      %p278 = scmp.ne.s32.totalorder %s273, %s275
      %p279 = scmp.eq.s32.totalorder %s29, 0
      %p280 = por %p278, %p279
      %p281 = scmp.ne.s32.totalorder %s273, %s275
      %p282 = scmp.eq.s32.totalorder %s34, 1
      %p283 = por %p281, %p282
      %p284 = scmp.ne.s32.totalorder %s275, %s276
      %p285 = scmp.eq.s32.totalorder %s34, 0
      %p286 = por %p284, %p285
      %p287 = scmp.ne.s32.totalorder %s275, %s276
      %p288 = scmp.eq.s32.totalorder %s35, 1
      %p289 = por %p287, %p288
      %p291 = scmp.ne.s32.totalorder %s276, %s290
      %p292 = scmp.eq.s32.totalorder %s35, 0
      %p293 = por %p291, %p292
      %s295 = sadd.s32 %s294, 1
      %p298 = scmp.eq.s32.totalorder %s29, 1
      %p299 = scmp.ne.s32.totalorder %s294, %s296
      %p300 = scmp.eq.s32.totalorder %s29, 0
      %p301 = por %p299, %p300
      %p302 = scmp.ne.s32.totalorder %s294, %s296
      %p303 = scmp.eq.s32.totalorder %s34, 1
      %p304 = por %p302, %p303
      %p305 = scmp.ne.s32.totalorder %s296, %s297
      %p306 = scmp.eq.s32.totalorder %s34, 0
      %p307 = por %p305, %p306
      %p308 = scmp.ne.s32.totalorder %s296, %s297
      %p309 = scmp.eq.s32.totalorder %s35, 1
      %p310 = por %p308, %p309
      %p312 = scmp.ne.s32.totalorder %s297, %s311
      %p313 = scmp.eq.s32.totalorder %s35, 0
      %p314 = por %p312, %p313
      %s316 = sadd.s32 %s315, 1
      %p319 = scmp.eq.s32.totalorder %s29, 1
      %p320 = scmp.ne.s32.totalorder %s315, %s317
      %p321 = scmp.eq.s32.totalorder %s29, 0
      %p322 = por %p320, %p321
      %p323 = scmp.ne.s32.totalorder %s315, %s317
      %p324 = scmp.eq.s32.totalorder %s34, 1
      %p325 = por %p323, %p324
      %p326 = scmp.ne.s32.totalorder %s317, %s318
      %p327 = scmp.eq.s32.totalorder %s34, 0
      %p328 = por %p326, %p327
      %p329 = scmp.ne.s32.totalorder %s317, %s318
      %p330 = scmp.eq.s32.totalorder %s35, 1
      %p331 = por %p329, %p330
      %p333 = scmp.ne.s32.totalorder %s318, %s332
      %p334 = scmp.eq.s32.totalorder %s35, 0
      %p335 = por %p333, %p334
      %s336 = ssub.s32 %s29, %s36
      %p337 = scmp.eq.s32.totalorder %s336, 0
      %s339 = sadd.s32 %s338, 1
      %s340 = scalar_select %p337, %s338, %s339
      %p343 = pneg %p337
      %p344 = scmp.eq.s32.totalorder %s29, 1
      %p345 = por %p343, %p344
      %p346 = scmp.ne.s32.totalorder %s338, %s341
      %p347 = scmp.eq.s32.totalorder %s29, 0
      %p348 = por %p346, %p347
      %p349 = scmp.ne.s32.totalorder %s338, %s341
      %p350 = scmp.eq.s32.totalorder %s34, 1
      %p351 = por %p349, %p350
      %p352 = scmp.ne.s32.totalorder %s341, %s342
      %p353 = scmp.eq.s32.totalorder %s34, 0
      %p354 = por %p352, %p353
      %p355 = scmp.ne.s32.totalorder %s341, %s342
      %p356 = scmp.eq.s32.totalorder %s35, 1
      %p357 = por %p355, %p356
      %p359 = scmp.ne.s32.totalorder %s342, %s358
      %p360 = scmp.eq.s32.totalorder %s35, 0
      %p361 = por %p359, %p360
      %s362 = ssub.s32 %s29, %s36
      %p363 = scmp.eq.s32.totalorder %s362, 0
      %s365 = sadd.s32 %s364, 1
      %s366 = scalar_select %p363, %s364, %s365
      %p369 = pneg %p363
      %p370 = scmp.eq.s32.totalorder %s29, 1
      %p371 = por %p369, %p370
      %p372 = scmp.ne.s32.totalorder %s364, %s367
      %p373 = scmp.eq.s32.totalorder %s29, 0
      %p374 = por %p372, %p373
      %p375 = scmp.ne.s32.totalorder %s364, %s367
      %p376 = scmp.eq.s32.totalorder %s34, 1
      %p377 = por %p375, %p376
      %p378 = scmp.ne.s32.totalorder %s367, %s368
      %p379 = scmp.eq.s32.totalorder %s34, 0
      %p380 = por %p378, %p379
      %p381 = scmp.ne.s32.totalorder %s367, %s368
      %p382 = scmp.eq.s32.totalorder %s35, 1
      %p383 = por %p381, %p382
      %p385 = scmp.ne.s32.totalorder %s368, %s384
      %p386 = scmp.eq.s32.totalorder %s35, 0
      %p387 = por %p385, %p386
      %p388 = scmp.le.s32.totalorder 1, %s29
      %p389 = scmp.lt.s32.totalorder %s29, 3
      %p390 = pnand %p388, %p389
      %p391 = pneg %p390
      // Predicated region
      $region9: #{tpu_custom_call.1} parent=5 // pred_check
        _
      $region10: #{tpu_custom_call.1} parent=5 // pred_check_branch
        %393 = sbr.rel (%p390) target = $region12
      $region11: #{tpu_custom_call.1} parent=5 // pred_region
        %s394 = ssub.s32 %s29, 1
        // Predicated region
        $region13: #{tpu_custom_call.1} parent=11 // pred_check
          %p395 = pneg %p76
        $region14: #{tpu_custom_call.1} parent=11 // pred_check_branch
          %397 = sbr.rel (%p395) target = $region16
        $region15: #{tpu_custom_call.1} parent=11 // pred_region
          _
        $region16: #{tpu_custom_call.1} parent=11 // pred_fallthru
          _
        // Predicated region
        $region17: #{tpu_custom_call.1} parent=11 // pred_check
          %p398 = pneg %p97
        $region18: #{tpu_custom_call.1} parent=11 // pred_check_branch
          %400 = sbr.rel (%p398) target = $region20
        $region19: #{tpu_custom_call.1} parent=11 // pred_region
          _
        $region20: #{tpu_custom_call.1} parent=11 // pred_fallthru
          _
        // Predicated region
        $region21: #{tpu_custom_call.1} parent=11 // pred_check
          %p401 = pneg %p118
        $region22: #{tpu_custom_call.1} parent=11 // pred_check_branch
          %403 = sbr.rel (%p401) target = $region24
        $region23: #{tpu_custom_call.1} parent=11 // pred_region
          _
        $region24: #{tpu_custom_call.1} parent=11 // pred_fallthru
          _
        // Predicated region
        $region25: #{tpu_custom_call.1} parent=11 // pred_check
          %p404 = pneg %p139
        $region26: #{tpu_custom_call.1} parent=11 // pred_check_branch
          %406 = sbr.rel (%p404) target = $region28
        $region27: #{tpu_custom_call.1} parent=11 // pred_region
          _
        $region28: #{tpu_custom_call.1} parent=11 // pred_fallthru
          _
        // Predicated region
        $region29: #{tpu_custom_call.1} parent=11 // pred_check
          %p407 = pneg %p160
        $region30: #{tpu_custom_call.1} parent=11 // pred_check_branch
          %409 = sbr.rel (%p407) target = $region32
        $region31: #{tpu_custom_call.1} parent=11 // pred_region
          _
        $region32: #{tpu_custom_call.1} parent=11 // pred_fallthru
          _
        // Predicated region
        $region33: #{tpu_custom_call.1} parent=11 // pred_check
          %p410 = pneg %p181
        $region34: #{tpu_custom_call.1} parent=11 // pred_check_branch
          %412 = sbr.rel (%p410) target = $region36
        $region35: #{tpu_custom_call.1} parent=11 // pred_region
          %s414 = ssub.s32 256, 256
          %415 = vsyncadd [#allocation4], %s414
          %s416 = sshll.u32 [#allocation3], 4
          %s417 = int_to_ptr.vmem [resolvable:$true] %s416
          %422 = dma.hbm_to_vmem [thread:$0]  %s6, 256, %s417, [#allocation4], 64, 64, 4
        $region36: #{tpu_custom_call.1} parent=11 // pred_fallthru
          _
        // Predicated region
        $region37: #{tpu_custom_call.1} parent=11 // pred_check
          %p423 = pneg %p202
        $region38: #{tpu_custom_call.1} parent=11 // pred_check_branch
          %425 = sbr.rel (%p423) target = $region40
        $region39: #{tpu_custom_call.1} parent=11 // pred_region
          _
        $region40: #{tpu_custom_call.1} parent=11 // pred_fallthru
          _
        // Predicated region
        $region41: #{tpu_custom_call.1} parent=11 // pred_check
          %p426 = pneg %p223
        $region42: #{tpu_custom_call.1} parent=11 // pred_check_branch
          %428 = sbr.rel (%p426) target = $region44
        $region43: #{tpu_custom_call.1} parent=11 // pred_region
          _
        $region44: #{tpu_custom_call.1} parent=11 // pred_fallthru
          _
        // Predicated region
        $region45: #{tpu_custom_call.1} parent=11 // pred_check
          %p429 = pneg %p244
        $region46: #{tpu_custom_call.1} parent=11 // pred_check_branch
          %431 = sbr.rel (%p429) target = $region48
        $region47: #{tpu_custom_call.1} parent=11 // pred_region
          _
        $region48: #{tpu_custom_call.1} parent=11 // pred_fallthru
          _
        // Predicated region
        $region49: #{tpu_custom_call.1} parent=11 // pred_check
          %p432 = pneg %p265
        $region50: #{tpu_custom_call.1} parent=11 // pred_check_branch
          %434 = sbr.rel (%p432) target = $region52
        $region51: #{tpu_custom_call.1} parent=11 // pred_region
          _
        $region52: #{tpu_custom_call.1} parent=11 // pred_fallthru
          _
        // Predicated region
        $region53: #{tpu_custom_call.1} parent=11 // pred_check
          %p435 = pneg %p286
        $region54: #{tpu_custom_call.1} parent=11 // pred_check_branch
          %437 = sbr.rel (%p435) target = $region56
        $region55: #{tpu_custom_call.1} parent=11 // pred_region
          _
        $region56: #{tpu_custom_call.1} parent=11 // pred_fallthru
          _
        // Predicated region
        $region57: #{tpu_custom_call.1} parent=11 // pred_check
          %p438 = pneg %p307
        $region58: #{tpu_custom_call.1} parent=11 // pred_check_branch
          %440 = sbr.rel (%p438) target = $region60
        $region59: #{tpu_custom_call.1} parent=11 // pred_region
          _
        $region60: #{tpu_custom_call.1} parent=11 // pred_fallthru
          _
        // Predicated region
        $region61: #{tpu_custom_call.1} parent=11 // pred_check
          %p441 = pneg %p328
        $region62: #{tpu_custom_call.1} parent=11 // pred_check_branch
          %443 = sbr.rel (%p441) target = $region64
        $region63: #{tpu_custom_call.1} parent=11 // pred_region
          _
        $region64: #{tpu_custom_call.1} parent=11 // pred_fallthru
          _
      $region12: #{tpu_custom_call.1} parent=5 // pred_fallthru
        _
      %p444 = scmp.lt.s32.totalorder %s29, 2
      // Predicated region
      $region65: #{tpu_custom_call.1} parent=5 // pred_check
        %p445 = pneg %p444
      $region66: #{tpu_custom_call.1} parent=5 // pred_check_branch
        %447 = sbr.rel (%p445) target = $region68
      $region67: #{tpu_custom_call.1} parent=5 // pred_region
        // Predicated region
        $region69: #{tpu_custom_call.1} parent=67 // pred_check
          %p448 = pneg %p49
        $region70: #{tpu_custom_call.1} parent=67 // pred_check_branch
          %450 = sbr.rel (%p448) target = $region72
        $region71: #{tpu_custom_call.1} parent=67 // pred_region
          %p451 = scmp.lt.s32.totalorder %s29, 1
          %s452 = scalar_select %p451, %s29, 1
          %s453 = smul.addr %s452, 8
          %s454 = scalar_lea.vmem %s0, %s453
        $region72: #{tpu_custom_call.1} parent=67 // pred_fallthru
          _
      $region68: #{tpu_custom_call.1} parent=5 // pred_fallthru
        _
      %p455 = scmp.le.s32.totalorder 1, %s29
      %p456 = scmp.lt.s32.totalorder %s29, 3
      %p457 = pnand %p455, %p456
      %p458 = pneg %p457
      // Predicated region
      $region73: #{tpu_custom_call.1} parent=5 // pred_check
        _
      $region74: #{tpu_custom_call.1} parent=5 // pred_check_branch
        %460 = sbr.rel (%p457) target = $region76
      $region75: #{tpu_custom_call.1} parent=5 // pred_region
        %s461 = ssub.s32 %s29, 1
        // Predicated region
        $region77: #{tpu_custom_call.1} parent=75 // pred_check
          %p462 = pneg %p181
        $region78: #{tpu_custom_call.1} parent=75 // pred_check_branch
          %464 = sbr.rel (%p462) target = $region80
        $region79: #{tpu_custom_call.1} parent=75 // pred_region
          %465 = dma.done [#allocation4], 256
        $region80: #{tpu_custom_call.1} parent=75 // pred_fallthru
          _
        %p466 = scmp.lt.s32.totalorder %s34, 1
        %s467 = scalar_select %p466, %s34, 1
        %s468 = smul.addr %s467, 8
        %s469 = scalar_lea.vmem %s0, %s468
        %p470 = pneg %p55
        %p471 = pneg %p52
        %p472 = pneg %p76
        %p473 = pneg %p73
        %p474 = pneg %p97
        %p475 = pneg %p94
        %p476 = pneg %p118
        %p477 = pneg %p115
        %p478 = pneg %p139
        %p479 = pneg %p136
        %p480 = pneg %p160
        %p481 = pneg %p157
        %p482 = pneg %p181
        %p483 = pneg %p178
        %p484 = pneg %p202
        %p485 = pneg %p199
        %p486 = pneg %p223
        %p487 = pneg %p220
        %p488 = pneg %p244
        %p489 = pneg %p241
        %p490 = pneg %p265
        %p491 = pneg %p262
        %p492 = pneg %p286
        %p493 = pneg %p283
        %p494 = pneg %p307
        %p495 = pneg %p304
        %p496 = pneg %p328
        %p497 = pneg %p325
        %p498 = pneg %p354
        %p499 = pneg %p351
        %s500 = sand.u32 %s341, 1
        %s501 = scalar_lea.sflag [#allocation5], %s500
        %s502 = sand.u32 %s341, 1
        %s503 = smul.addr %s502, 8
        %s504 = scalar_lea.vmem [#allocation6], %s503
        %p505 = pneg %p380
        %p506 = pneg %p377
        %s507 = sand.u32 %s367, 1
        %s508 = scalar_lea.sflag [#allocation8], %s507
        %s509 = sand.u32 %s367, 1
        %s510 = smul.addr %s509, 8
        %s511 = scalar_lea.vmem [#allocation7], %s510
        %p512 = scmp.lt.s32.totalorder %s34, 1
        %s513 = scalar_select %p512, %s34, 1
        %s514 = smul.addr %s513, 8
        %s515 = scalar_lea.vmem %s0, %s514
        %v517 = vld [vmem:[%s515] sm:$0xff]
        %v518 = vpack.c.bf16 %v517, %v517
        %v519 = vld [vmem:[%s1] sm:$0xf]
        %v520 = vld [vmem:[%s1 + $0x4] sm:$0xf]
        %v521 = vld [vmem:[%s1 + $0x8] sm:$0xf]
        %v522 = vld [vmem:[%s1 + $0xc] sm:$0xf]
        %v527 = vunpack.c.l.b16 %v519
        %v528 = vunpack.c.l.b16 %v520
        %v529 = vunpack.c.l.b16 %v521
        %v530 = vunpack.c.l.b16 %v522
        %v531 = vpack.c.b16 %v528, %v527
        %v532 = vpack.c.b16 %v530, %v529
        %vm535 = vcmask 261120
        %v537 = vsel %vm535, %v518, 0
        %539 = vmatprep.subr.bf16.mxu0 0
        %540 = vmatpush1.bf16.msra.mxu0 %v531
        %541 = vmatprep.subr.bf16.mxu0 0
        %542 = vmatpush1.bf16.msra.mxu0 %v532
        %543 = vmatprep.subr.bf16.mxu0 0
        %544 = vmatpush1.bf16.msra.mxu0 0
        %545 = vmatprep.subr.bf16.mxu0 0
        %546 = vmatpush1.bf16.msra.mxu0 0
        %547 = vmatprep.subr.bf16.mxu0 0
        %548 = vmatpush1.bf16.msra.mxu0 0
        %549 = vmatprep.subr.bf16.mxu0 0
        %550 = vmatpush1.bf16.msra.mxu0 0
        %551 = vmatprep.subr.bf16.mxu0 0
        %552 = vmatpush1.bf16.msra.mxu0 0
        %553 = vmatprep.subr.bf16.mxu0 0
        %554 = vmatpush1.bf16.msra.mxu0 0
        %555 = vmatprep.subr.bf16.mxu0 0
        %556 = vmatpush1.bf16.msra.mxu0 0
        %557 = vmatprep.subr.bf16.mxu0 0
        %558 = vmatpush1.bf16.msra.mxu0 0
        %559 = vmatprep.subr.bf16.mxu0 0
        %560 = vmatpush1.bf16.msra.mxu0 0
        %561 = vmatprep.subr.bf16.mxu0 0
        %562 = vmatpush1.bf16.msra.mxu0 0
        %563 = vmatprep.subr.bf16.mxu0 0
        %564 = vmatpush1.bf16.msra.mxu0 0
        %565 = vmatprep.subr.bf16.mxu0 0
        %566 = vmatpush1.bf16.msra.mxu0 0
        %567 = vmatprep.subr.bf16.mxu0 0
        %568 = vmatpush1.bf16.msra.mxu0 0
        %569 = vmatprep.subr.bf16.mxu0 0
        %570 = vmatpush1.bf16.msra.mxu0 0
        %571 = vmatprep.mubr.bf16.mxu0 0
        %572 = vmatmul.mubr.bf16.gmra.mrb[0].mxu0 %v537
        %v573 = vpop.f32.mrb[0].mxu0
        %v574 = vadd.f32 0.0, %v573
        %v575 = vpop.f32.mrb[0].mxu0
        %v576 = vpop.f32.mrb[0].mxu0
        %v577 = vpop.f32.mrb[0].mxu0
        %578 = vdwg.mxu0
        %v579 = vlaneseq
        %v580 = vshrl.u32 %v579, 7
        %v581 = vcvt.s32.f32 %v580
        %v582 = vlaneseq
        %v583 = vand.u32 %v582, 127
        %v584 = vcvt.s32.f32 %v583
        %v585 = vmul.f32 %v574, 0.17677669
        %v586 = vpack.c.bf16 %v585, %v585
        %v587 = vpack.c.bf16 %v574, %v574
        %vm588 = vcmask 130048
        %v589 = vsel %vm588, %v574, 0.0
        %590 = vadd.xlane.f32.xlu0 %v589
        %v591 = vpop.xlane.xlu0 %590
        %v592 = vmul.f32 %v591, 0.17677669
        %594 = vrot.lane.b32.xlu0 %v574, 96
        %v595 = vpop.permute.xlu0 %594
        %v597 = vsel %vm588, %v595, 0.0
        %598 = vadd.xlane.f32.xlu0 %v597
        %v599 = vpop.xlane.xlu0 %598
        %v600 = vmul.f32 %v599, 0.17677669
        %v601 = vmul.f32 %v584, 2.828427
        %604 = vbcast.lane.b32.xlu0 %v601, 256
        %v605 = vpop.permute.xlu0 %604
        %v607 = vadd.f32 %v600, %v605
        %609 = vset.pattern.permute.xlu0 0
        %610 = vperm.xlu0 %609, %v607
        %v611 = vpop.permute.xlu0 %610
        %v612 = vlaneseq
        %v613 = vshrl.u32 %v612, 7
        %v614 = vsub.s32 %v583, %v613
        %v615 = vrot.slane %v611, %v614
        %vm616 = vcmask 1042434
        %v617 = vsel %vm616, %v615, %v615
        %vm618 = vcmask 1043459
        %v619 = vsel %vm618, %v615, %v617
        %vm620 = vcmask 1044484
        %v621 = vsel %vm620, %v615, %v619
        %vm622 = vcmask 1045509
        %v623 = vsel %vm622, %v615, %v621
        %vm624 = vcmask 1046534
        %v625 = vsel %vm624, %v615, %v623
        %vm626 = vcmask 1047559
        %v627 = vsel %vm626, %v615, %v625
        %v629 = vmul.f32 %v581, %v627
        %631 = vrot.lane.b32.xlu0 %v587, 96
        %v632 = vpop.permute.xlu0 %631
        %v634 = vsel %vm588, %v586, 0
        %v637 = vsel %vm588, %v632, 0
        %639 = vmatprep.subr.bf16.mxu0 0
        %640 = vmatpush1.bf16.xpose.msra.mxu0 %v637
        %641 = vmatprep.subr.bf16.mxu0 0
        %642 = vmatpush1.bf16.xpose.msra.mxu0 0
        %643 = vmatprep.subr.bf16.mxu0 0
        %644 = vmatpush1.bf16.xpose.msra.mxu0 0
        %645 = vmatprep.subr.bf16.mxu0 0
        %646 = vmatpush1.bf16.xpose.msra.mxu0 0
        %647 = vmatprep.subr.bf16.mxu0 0
        %648 = vmatpush1.bf16.xpose.msra.mxu0 0
        %649 = vmatprep.subr.bf16.mxu0 0
        %650 = vmatpush1.bf16.xpose.msra.mxu0 0
        %651 = vmatprep.subr.bf16.mxu0 0
        %652 = vmatpush1.bf16.xpose.msra.mxu0 0
        %653 = vmatprep.subr.bf16.mxu0 0
        %654 = vmatpush1.bf16.xpose.msra.mxu0 0
        %655 = vmatprep.subr.bf16.mxu0 0
        %656 = vmatpush1.bf16.xpose.msra.mxu0 0
        %657 = vmatprep.subr.bf16.mxu0 0
        %658 = vmatpush1.bf16.xpose.msra.mxu0 0
        %659 = vmatprep.subr.bf16.mxu0 0
        %660 = vmatpush1.bf16.xpose.msra.mxu0 0
        %661 = vmatprep.subr.bf16.mxu0 0
        %662 = vmatpush1.bf16.xpose.msra.mxu0 0
        %663 = vmatprep.subr.bf16.mxu0 0
        %664 = vmatpush1.bf16.xpose.msra.mxu0 0
        %665 = vmatprep.subr.bf16.mxu0 0
        %666 = vmatpush1.bf16.xpose.msra.mxu0 0
        %667 = vmatprep.subr.bf16.mxu0 0
        %668 = vmatpush1.bf16.xpose.msra.mxu0 0
        %669 = vmatprep.subr.bf16.mxu0 0
        %670 = vmatpush1.bf16.xpose.msra.mxu0 0
        %671 = vmatprep.mubr.bf16.mxu0 0
        %672 = vmatmul.mubr.bf16.gmra.mrb[0].mxu0 %v634
        %v673 = vpop.f32.mrb[0].mxu0
        %v674 = vadd.f32 %v629, %v673
        %v675 = vpop.f32.mrb[0].mxu0
        %v676 = vpop.f32.mrb[0].mxu0
        %v677 = vpop.f32.mrb[0].mxu0
        %678 = vdwg.mxu0
        %v679 = vmul.f32 %v592, %v584
        %v680 = vadd.f32 %v674, %v679
        %vm681 = vcmask 64512
        %v682 = vsel %vm681, %v680, -inf
        %683 = vmax.xlane.f32.xlu0 %v682
        %v684 = vpop.xlane.xlu0 %683
        %v685 = vsub.f32 %v680, %v684
        %v686 = vmul.f32 %v685, 1.442695
        %v687 = vpow.pop %v686
        %v688 = vsel %vm681, %v687, 0.0
        %689 = vadd.xlane.f32.xlu0 %v688
        %v690 = vpop.xlane.xlu0 %689
        %v691 = vrcp.pop %v690
        %v692 = vmul.f32 %v687, %v691
        %v693 = vpack.c.bf16 %v692, %v692
        %vm694 = vcmask 60416
        %695 = vst.msk [vmem:[%s511] sm:$0xf] %vm694, %v693
        %696 = vrot.lane.b32.xlu0 %v587, 64
        %v697 = vpop.permute.xlu0 %696
        %v699 = vsel %vm681, %v693, 0
        %vm701 = vcmask 1043456
        %v703 = vsel %vm701, %v697, 0
        %705 = vmatprep.subr.bf16.mxu0 0
        %706 = vmatpush1.bf16.msra.mxu0 %v703
        %707 = vmatprep.subr.bf16.mxu0 0
        %708 = vmatpush1.bf16.msra.mxu0 0
        %709 = vmatprep.subr.bf16.mxu0 0
        %710 = vmatpush1.bf16.msra.mxu0 0
        %711 = vmatprep.subr.bf16.mxu0 0
        %712 = vmatpush1.bf16.msra.mxu0 0
        %713 = vmatprep.subr.bf16.mxu0 0
        %714 = vmatpush1.bf16.msra.mxu0 0
        %715 = vmatprep.subr.bf16.mxu0 0
        %716 = vmatpush1.bf16.msra.mxu0 0
        %717 = vmatprep.subr.bf16.mxu0 0
        %718 = vmatpush1.bf16.msra.mxu0 0
        %719 = vmatprep.subr.bf16.mxu0 0
        %720 = vmatpush1.bf16.msra.mxu0 0
        %721 = vmatprep.subr.bf16.mxu0 0
        %722 = vmatpush1.bf16.msra.mxu0 0
        %723 = vmatprep.subr.bf16.mxu0 0
        %724 = vmatpush1.bf16.msra.mxu0 0
        %725 = vmatprep.subr.bf16.mxu0 0
        %726 = vmatpush1.bf16.msra.mxu0 0
        %727 = vmatprep.subr.bf16.mxu0 0
        %728 = vmatpush1.bf16.msra.mxu0 0
        %729 = vmatprep.subr.bf16.mxu0 0
        %730 = vmatpush1.bf16.msra.mxu0 0
        %731 = vmatprep.subr.bf16.mxu0 0
        %732 = vmatpush1.bf16.msra.mxu0 0
        %733 = vmatprep.subr.bf16.mxu0 0
        %734 = vmatpush1.bf16.msra.mxu0 0
        %735 = vmatprep.subr.bf16.mxu0 0
        %736 = vmatpush1.bf16.msra.mxu0 0
        %737 = vmatprep.mubr.bf16.mxu0 0
        %738 = vmatmul.mubr.bf16.gmra.mrb[0].mxu0 %v699
        %v739 = vpop.f32.mrb[0].mxu0
        %v740 = vadd.f32 0.0, %v739
        %v741 = vpop.f32.mrb[0].mxu0
        %v742 = vpop.f32.mrb[0].mxu0
        %v743 = vpop.f32.mrb[0].mxu0
        %744 = vdwg.mxu0
        %v745 = vpack.c.bf16 %v740, %v740
        %vm746 = vcmask 125952
        %747 = vst.msk [vmem:[#allocation2] sm:$0xf] %vm746, %v745
        %748 = vrot.lane.b32.xlu0 %v574, 112
        %v749 = vpop.permute.xlu0 %748
        %v751 = vsel %vm588, %v749, 0.0
        %752 = vadd.xlane.f32.xlu0 %v751
        %v753 = vpop.xlane.xlu0 %752
        %v754 = vmul.f32 %v753, 0.17677669
        %755 = vrot.lane.b32.xlu0 %v574, 80
        %v756 = vpop.permute.xlu0 %755
        %v758 = vsel %vm588, %v756, 0.0
        %759 = vadd.xlane.f32.xlu0 %v758
        %v760 = vpop.xlane.xlu0 %759
        %v761 = vmul.f32 %v760, 0.17677669
        %v762 = vadd.f32 %v761, %v605
        %764 = vset.pattern.permute.xlu0 0
        %765 = vperm.xlu0 %764, %v762
        %v766 = vpop.permute.xlu0 %765
        %v767 = vlaneseq
        %v768 = vshrl.u32 %v767, 7
        %v769 = vsub.s32 %v583, %v768
        %v770 = vrot.slane %v766, %v769
        %v771 = vsel %vm616, %v770, %v770
        %v772 = vsel %vm618, %v770, %v771
        %v773 = vsel %vm620, %v770, %v772
        %v774 = vsel %vm622, %v770, %v773
        %v775 = vsel %vm624, %v770, %v774
        %v776 = vsel %vm626, %v770, %v775
        %v778 = vmul.f32 %v581, %v776
        %780 = vrot.lane.b32.xlu0 %v586, 112
        %v781 = vpop.permute.xlu0 %780
        %782 = vrot.lane.b32.xlu0 %v587, 80
        %v783 = vpop.permute.xlu0 %782
        %v785 = vsel %vm588, %v781, 0
        %v788 = vsel %vm588, %v783, 0
        %790 = vmatprep.subr.bf16.mxu0 0
        %791 = vmatpush1.bf16.xpose.msra.mxu0 %v788
        %792 = vmatprep.subr.bf16.mxu0 0
        %793 = vmatpush1.bf16.xpose.msra.mxu0 0
        %794 = vmatprep.subr.bf16.mxu0 0
        %795 = vmatpush1.bf16.xpose.msra.mxu0 0
        %796 = vmatprep.subr.bf16.mxu0 0
        %797 = vmatpush1.bf16.xpose.msra.mxu0 0
        %798 = vmatprep.subr.bf16.mxu0 0
        %799 = vmatpush1.bf16.xpose.msra.mxu0 0
        %800 = vmatprep.subr.bf16.mxu0 0
        %801 = vmatpush1.bf16.xpose.msra.mxu0 0
        %802 = vmatprep.subr.bf16.mxu0 0
        %803 = vmatpush1.bf16.xpose.msra.mxu0 0
        %804 = vmatprep.subr.bf16.mxu0 0
        %805 = vmatpush1.bf16.xpose.msra.mxu0 0
        %806 = vmatprep.subr.bf16.mxu0 0
        %807 = vmatpush1.bf16.xpose.msra.mxu0 0
        %808 = vmatprep.subr.bf16.mxu0 0
        %809 = vmatpush1.bf16.xpose.msra.mxu0 0
        %810 = vmatprep.subr.bf16.mxu0 0
        %811 = vmatpush1.bf16.xpose.msra.mxu0 0
        %812 = vmatprep.subr.bf16.mxu0 0
        %813 = vmatpush1.bf16.xpose.msra.mxu0 0
        %814 = vmatprep.subr.bf16.mxu0 0
        %815 = vmatpush1.bf16.xpose.msra.mxu0 0
        %816 = vmatprep.subr.bf16.mxu0 0
        %817 = vmatpush1.bf16.xpose.msra.mxu0 0
        %818 = vmatprep.subr.bf16.mxu0 0
        %819 = vmatpush1.bf16.xpose.msra.mxu0 0
        %820 = vmatprep.subr.bf16.mxu0 0
        %821 = vmatpush1.bf16.xpose.msra.mxu0 0
        %822 = vmatprep.mubr.bf16.mxu0 0
        %823 = vmatmul.mubr.bf16.gmra.mrb[0].mxu0 %v785
        %v824 = vpop.f32.mrb[0].mxu0
        %v825 = vadd.f32 %v778, %v824
        %v826 = vpop.f32.mrb[0].mxu0
        %v827 = vpop.f32.mrb[0].mxu0
        %v828 = vpop.f32.mrb[0].mxu0
        %829 = vdwg.mxu0
        %v830 = vmul.f32 %v754, %v584
        %v831 = vadd.f32 %v825, %v830
        %v832 = vsel %vm681, %v831, -inf
        %833 = vmax.xlane.f32.xlu0 %v832
        %v834 = vpop.xlane.xlu0 %833
        %v835 = vsub.f32 %v831, %v834
        %v836 = vmul.f32 %v835, 1.442695
        %v837 = vpow.pop %v836
        %v838 = vsel %vm681, %v837, 0.0
        %839 = vadd.xlane.f32.xlu0 %v838
        %v840 = vpop.xlane.xlu0 %839
        %v841 = vrcp.pop %v840
        %v842 = vmul.f32 %v837, %v841
        %v843 = vpack.c.bf16 %v842, %v842
        %s844 = scalar_lea.vmem %s511, 4 [#allocation7]
        %845 = vst.msk [vmem:[%s844] sm:$0xf] %vm694, %v843
        %846 = vrot.lane.b32.xlu0 %v587, 48
        %v847 = vpop.permute.xlu0 %846
        %v849 = vsel %vm681, %v843, 0
        %v852 = vsel %vm701, %v847, 0
        %854 = vmatprep.subr.bf16.mxu0 0
        %855 = vmatpush1.bf16.msra.mxu0 %v852
        %856 = vmatprep.subr.bf16.mxu0 0
        %857 = vmatpush1.bf16.msra.mxu0 0
        %858 = vmatprep.subr.bf16.mxu0 0
        %859 = vmatpush1.bf16.msra.mxu0 0
        %860 = vmatprep.subr.bf16.mxu0 0
        %861 = vmatpush1.bf16.msra.mxu0 0
        %862 = vmatprep.subr.bf16.mxu0 0
        %863 = vmatpush1.bf16.msra.mxu0 0
        %864 = vmatprep.subr.bf16.mxu0 0
        %865 = vmatpush1.bf16.msra.mxu0 0
        %866 = vmatprep.subr.bf16.mxu0 0
        %867 = vmatpush1.bf16.msra.mxu0 0
        %868 = vmatprep.subr.bf16.mxu0 0
        %869 = vmatpush1.bf16.msra.mxu0 0
        %870 = vmatprep.subr.bf16.mxu0 0
        %871 = vmatpush1.bf16.msra.mxu0 0
        %872 = vmatprep.subr.bf16.mxu0 0
        %873 = vmatpush1.bf16.msra.mxu0 0
        %874 = vmatprep.subr.bf16.mxu0 0
        %875 = vmatpush1.bf16.msra.mxu0 0
        %876 = vmatprep.subr.bf16.mxu0 0
        %877 = vmatpush1.bf16.msra.mxu0 0
        %878 = vmatprep.subr.bf16.mxu0 0
        %879 = vmatpush1.bf16.msra.mxu0 0
        %880 = vmatprep.subr.bf16.mxu0 0
        %881 = vmatpush1.bf16.msra.mxu0 0
        %882 = vmatprep.subr.bf16.mxu0 0
        %883 = vmatpush1.bf16.msra.mxu0 0
        %884 = vmatprep.subr.bf16.mxu0 0
        %885 = vmatpush1.bf16.msra.mxu0 0
        %886 = vmatprep.mubr.bf16.mxu0 0
        %887 = vmatmul.mubr.bf16.gmra.mrb[0].mxu0 %v849
        %v888 = vpop.f32.mrb[0].mxu0
        %v889 = vadd.f32 0.0, %v888
        %v890 = vpop.f32.mrb[0].mxu0
        %v891 = vpop.f32.mrb[0].mxu0
        %v892 = vpop.f32.mrb[0].mxu0
        %893 = vdwg.mxu0
        %v894 = vpack.c.bf16 %v889, %v889
        %v896 = vunpack.c.l.b16 %v894
        %v897 = vpack.c.b16 %v896, %v896
        %898 = vrot.lane.b32.xlu0 %v897, 16
        %v899 = vpop.permute.xlu0 %898
        %vm901 = vcmask 257152
        %902 = vst.msk [vmem:[#allocation2] sm:$0xf] %vm901, %v899
        %v903 = vld [vmem:[#allocation2] sm:$0xf]
        %v904 = vld [vmem:[%s2] sm:$0xf]
        %v905 = vld [vmem:[%s2 + $0x4] sm:$0xf]
        %v906 = vld [vmem:[%s2 + $0x8] sm:$0xf]
        %v907 = vld [vmem:[%s2 + $0xc] sm:$0xf]
        %v908 = vld [vmem:[%s3] sm:$0x1]
        %v910 = vlaneseq
        %v911 = vshrl.u32 %v910, 7
        %v912 = vsub.s32 0, %v911
        %v913 = vrot.slane %v908, %v912
        %v919 = vunpack.c.l.b16 %v904
        %v920 = vunpack.c.l.b16 %v905
        %v921 = vunpack.c.l.b16 %v906
        %v922 = vunpack.c.l.b16 %v907
        %v923 = vpack.c.b16 %v920, %v919
        %v924 = vpack.c.b16 %v922, %v921
        %v928 = vsel %vm535, %v903, 0
        %930 = vmatprep.subr.bf16.mxu0 0
        %931 = vmatpush1.bf16.msra.mxu0 %v923
        %932 = vmatprep.subr.bf16.mxu0 0
        %933 = vmatpush1.bf16.msra.mxu0 %v924
        %934 = vmatprep.subr.bf16.mxu0 0
        %935 = vmatpush1.bf16.msra.mxu0 0
        %936 = vmatprep.subr.bf16.mxu0 0
        %937 = vmatpush1.bf16.msra.mxu0 0
        %938 = vmatprep.subr.bf16.mxu0 0
        %939 = vmatpush1.bf16.msra.mxu0 0
        %940 = vmatprep.subr.bf16.mxu0 0
        %941 = vmatpush1.bf16.msra.mxu0 0
        %942 = vmatprep.subr.bf16.mxu0 0
        %943 = vmatpush1.bf16.msra.mxu0 0
        %944 = vmatprep.subr.bf16.mxu0 0
        %945 = vmatpush1.bf16.msra.mxu0 0
        %946 = vmatprep.subr.bf16.mxu0 0
        %947 = vmatpush1.bf16.msra.mxu0 0
        %948 = vmatprep.subr.bf16.mxu0 0
        %949 = vmatpush1.bf16.msra.mxu0 0
        %950 = vmatprep.subr.bf16.mxu0 0
        %951 = vmatpush1.bf16.msra.mxu0 0
        %952 = vmatprep.subr.bf16.mxu0 0
        %953 = vmatpush1.bf16.msra.mxu0 0
        %954 = vmatprep.subr.bf16.mxu0 0
        %955 = vmatpush1.bf16.msra.mxu0 0
        %956 = vmatprep.subr.bf16.mxu0 0
        %957 = vmatpush1.bf16.msra.mxu0 0
        %958 = vmatprep.subr.bf16.mxu0 0
        %959 = vmatpush1.bf16.msra.mxu0 0
        %960 = vmatprep.subr.bf16.mxu0 0
        %961 = vmatpush1.bf16.msra.mxu0 0
        %962 = vmatprep.mubr.bf16.mxu0 0
        %963 = vmatmul.mubr.bf16.gmra.mrb[0].mxu0 %v928
        %v964 = vpop.f32.mrb[0].mxu0
        %v965 = vadd.f32 %v913, %v964
        %v966 = vpop.f32.mrb[0].mxu0
        %v967 = vpop.f32.mrb[0].mxu0
        %v968 = vpop.f32.mrb[0].mxu0
        %969 = vdwg.mxu0
        %v970 = vadd.f32 %v517, %v965
        %v971 = vld [vmem:[%s4] sm:$0x1]
        %v972 = vld [vmem:[%s5] sm:$0x1]
        %v973 = vsel %vm535, %v970, 0.0
        %974 = vadd.xlane.f32.xlu0 %v973
        %v975 = vpop.xlane.xlu0 %974
        %v976 = vrcp.pop 32.0
        %v977 = vmul.f32 %v975, %v976
        %v978 = vsub.f32 %v970, %v977
        %v979 = vmul.f32 %v978, %v978
        %v980 = vsel %vm535, %v979, 0.0
        %981 = vadd.xlane.f32.xlu0 %v980
        %v982 = vpop.xlane.xlu0 %981
        %v983 = vmul.f32 %v982, %v976
        %v984 = vadd.f32 %v983, 1e-05
        %v985 = vrsqrt.pop %v984
        %v986 = vmul.f32 %v978, %v985
        %v988 = vlaneseq
        %v989 = vshrl.u32 %v988, 7
        %v990 = vsub.s32 0, %v989
        %v991 = vrot.slane %v971, %v990
        %v993 = vmul.f32 %v986, %v991
        %v995 = vlaneseq
        %v996 = vshrl.u32 %v995, 7
        %v997 = vsub.s32 0, %v996
        %v998 = vrot.slane %v972, %v997
        %v1000 = vadd.f32 %v993, %v998
        %v1001 = vpack.c.bf16 %v1000, %v1000
        %v1002 = vld [vmem:[#allocation3] sm:$0xf]
        %v1003 = vld [vmem:[#allocation3 + $0x4] sm:$0xf]
        %v1004 = vld [vmem:[#allocation3 + $0x8] sm:$0xf]
        %v1005 = vld [vmem:[#allocation3 + $0xc] sm:$0xf]
        %v1006 = vld [vmem:[%s7] sm:$0x1]
        %v1008 = vlaneseq
        %v1009 = vshrl.u32 %v1008, 7
        %v1010 = vsub.s32 0, %v1009
        %v1011 = vrot.slane %v1006, %v1010
        %v1017 = vunpack.c.l.b16 %v1002
        %v1018 = vunpack.c.l.b16 %v1003
        %v1019 = vunpack.c.l.b16 %v1004
        %v1020 = vunpack.c.l.b16 %v1005
        %v1021 = vpack.c.b16 %v1018, %v1017
        %v1022 = vpack.c.b16 %v1020, %v1019
        %v1026 = vsel %vm535, %v1001, 0
        %1028 = vmatprep.subr.bf16.mxu0 0
        %1029 = vmatpush1.bf16.msra.mxu0 %v1021
        %1030 = vmatprep.subr.bf16.mxu0 0
        %1031 = vmatpush1.bf16.msra.mxu0 %v1022
        %1032 = vmatprep.subr.bf16.mxu0 0
        %1033 = vmatpush1.bf16.msra.mxu0 0
        %1034 = vmatprep.subr.bf16.mxu0 0
        %1035 = vmatpush1.bf16.msra.mxu0 0
        %1036 = vmatprep.subr.bf16.mxu0 0
        %1037 = vmatpush1.bf16.msra.mxu0 0
        %1038 = vmatprep.subr.bf16.mxu0 0
        %1039 = vmatpush1.bf16.msra.mxu0 0
        %1040 = vmatprep.subr.bf16.mxu0 0
        %1041 = vmatpush1.bf16.msra.mxu0 0
        %1042 = vmatprep.subr.bf16.mxu0 0
        %1043 = vmatpush1.bf16.msra.mxu0 0
        %1044 = vmatprep.subr.bf16.mxu0 0
        %1045 = vmatpush1.bf16.msra.mxu0 0
        %1046 = vmatprep.subr.bf16.mxu0 0
        %1047 = vmatpush1.bf16.msra.mxu0 0
        %1048 = vmatprep.subr.bf16.mxu0 0
        %1049 = vmatpush1.bf16.msra.mxu0 0
        %1050 = vmatprep.subr.bf16.mxu0 0
        %1051 = vmatpush1.bf16.msra.mxu0 0
        %1052 = vmatprep.subr.bf16.mxu0 0
        %1053 = vmatpush1.bf16.msra.mxu0 0
        %1054 = vmatprep.subr.bf16.mxu0 0
        %1055 = vmatpush1.bf16.msra.mxu0 0
        %1056 = vmatprep.subr.bf16.mxu0 0
        %1057 = vmatpush1.bf16.msra.mxu0 0
        %1058 = vmatprep.subr.bf16.mxu0 0
        %1059 = vmatpush1.bf16.msra.mxu0 0
        %1060 = vmatprep.mubr.bf16.mxu0 0
        %1061 = vmatmul.mubr.bf16.gmra.mrb[0].mxu0 %v1026
        %v1062 = vpop.f32.mrb[0].mxu0
        %v1063 = vadd.f32 %v1011, %v1062
        %v1064 = vpop.f32.mrb[0].mxu0
        %v1065 = vpop.f32.mrb[0].mxu0
        %v1066 = vpop.f32.mrb[0].mxu0
        %1067 = vdwg.mxu0
        %v1068 = vmax.f32 %v1063, 0.0
        %v1069 = vpack.c.bf16 %v1068, %v1068
        %v1070 = vld [vmem:[%s8] sm:$0xf]
        %v1071 = vld [vmem:[%s8 + $0x4] sm:$0xf]
        %v1072 = vld [vmem:[%s8 + $0x8] sm:$0xf]
        %v1073 = vld [vmem:[%s8 + $0xc] sm:$0xf]
        %v1074 = vld [vmem:[%s8 + $0x10] sm:$0xf]
        %v1075 = vld [vmem:[%s8 + $0x14] sm:$0xf]
        %v1076 = vld [vmem:[%s8 + $0x18] sm:$0xf]
        %v1077 = vld [vmem:[%s8 + $0x1c] sm:$0xf]
        %v1078 = vld [vmem:[%s9] sm:$0x1]
        %v1080 = vlaneseq
        %v1081 = vshrl.u32 %v1080, 7
        %v1082 = vsub.s32 0, %v1081
        %v1083 = vrot.slane %v1078, %v1082
        %v1093 = vunpack.c.l.b16 %v1070
        %v1094 = vunpack.c.l.b16 %v1071
        %v1095 = vunpack.c.l.b16 %v1072
        %v1096 = vunpack.c.l.b16 %v1073
        %v1097 = vunpack.c.l.b16 %v1074
        %v1098 = vunpack.c.l.b16 %v1075
        %v1099 = vunpack.c.l.b16 %v1076
        %v1100 = vunpack.c.l.b16 %v1077
        %v1101 = vpack.c.b16 %v1094, %v1093
        %v1102 = vpack.c.b16 %v1096, %v1095
        %v1103 = vpack.c.b16 %v1098, %v1097
        %v1104 = vpack.c.b16 %v1100, %v1099
        %vm1109 = vcmask 523264
        %v1111 = vsel %vm1109, %v1069, 0
        %1113 = vmatprep.subr.bf16.mxu0 0
        %1114 = vmatpush1.bf16.msra.mxu0 %v1101
        %1115 = vmatprep.subr.bf16.mxu0 0
        %1116 = vmatpush1.bf16.msra.mxu0 %v1102
        %1117 = vmatprep.subr.bf16.mxu0 0
        %1118 = vmatpush1.bf16.msra.mxu0 %v1103
        %1119 = vmatprep.subr.bf16.mxu0 0
        %1120 = vmatpush1.bf16.msra.mxu0 %v1104
        %1121 = vmatprep.subr.bf16.mxu0 0
        %1122 = vmatpush1.bf16.msra.mxu0 0
        %1123 = vmatprep.subr.bf16.mxu0 0
        %1124 = vmatpush1.bf16.msra.mxu0 0
        %1125 = vmatprep.subr.bf16.mxu0 0
        %1126 = vmatpush1.bf16.msra.mxu0 0
        %1127 = vmatprep.subr.bf16.mxu0 0
        %1128 = vmatpush1.bf16.msra.mxu0 0
        %1129 = vmatprep.subr.bf16.mxu0 0
        %1130 = vmatpush1.bf16.msra.mxu0 0
        %1131 = vmatprep.subr.bf16.mxu0 0
        %1132 = vmatpush1.bf16.msra.mxu0 0
        %1133 = vmatprep.subr.bf16.mxu0 0
        %1134 = vmatpush1.bf16.msra.mxu0 0
        %1135 = vmatprep.subr.bf16.mxu0 0
        %1136 = vmatpush1.bf16.msra.mxu0 0
        %1137 = vmatprep.subr.bf16.mxu0 0
        %1138 = vmatpush1.bf16.msra.mxu0 0
        %1139 = vmatprep.subr.bf16.mxu0 0
        %1140 = vmatpush1.bf16.msra.mxu0 0
        %1141 = vmatprep.subr.bf16.mxu0 0
        %1142 = vmatpush1.bf16.msra.mxu0 0
        %1143 = vmatprep.subr.bf16.mxu0 0
        %1144 = vmatpush1.bf16.msra.mxu0 0
        %1145 = vmatprep.mubr.bf16.mxu0 0
        %1146 = vmatmul.mubr.bf16.gmra.mrb[0].mxu0 %v1111
        %v1147 = vpop.f32.mrb[0].mxu0
        %v1148 = vadd.f32 %v1083, %v1147
        %v1149 = vpop.f32.mrb[0].mxu0
        %v1150 = vpop.f32.mrb[0].mxu0
        %v1151 = vpop.f32.mrb[0].mxu0
        %1152 = vdwg.mxu0
        %v1153 = vadd.f32 %v1148, %v1000
        %v1154 = vld [vmem:[%s10] sm:$0x1]
        %v1155 = vld [vmem:[%s11] sm:$0x1]
        %v1156 = vsel %vm535, %v1153, 0.0
        %1157 = vadd.xlane.f32.xlu0 %v1156
        %v1158 = vpop.xlane.xlu0 %1157
        %v1159 = vmul.f32 %v1158, %v976
        %v1160 = vsub.f32 %v1153, %v1159
        %v1161 = vmul.f32 %v1160, %v1160
        %v1162 = vsel %vm535, %v1161, 0.0
        %1163 = vadd.xlane.f32.xlu0 %v1162
        %v1164 = vpop.xlane.xlu0 %1163
        %v1165 = vmul.f32 %v1164, %v976
        %v1166 = vadd.f32 %v1165, 1e-05
        %v1167 = vrsqrt.pop %v1166
        %v1168 = vmul.f32 %v1160, %v1167
        %v1170 = vlaneseq
        %v1171 = vshrl.u32 %v1170, 7
        %v1172 = vsub.s32 0, %v1171
        %v1173 = vrot.slane %v1154, %v1172
        %v1175 = vmul.f32 %v1168, %v1173
        %v1177 = vlaneseq
        %v1178 = vshrl.u32 %v1177, 7
        %v1179 = vsub.s32 0, %v1178
        %v1180 = vrot.slane %v1155, %v1179
        %v1182 = vadd.f32 %v1175, %v1180
        %v1183 = vadd.f32 %v1000, %v1182
        %v1184 = vld [vmem:[%s12] sm:$0x1]
        %v1185 = vld [vmem:[%s13] sm:$0x1]
        %v1186 = vsel %vm535, %v1183, 0.0
        %1187 = vadd.xlane.f32.xlu0 %v1186
        %v1188 = vpop.xlane.xlu0 %1187
        %v1189 = vmul.f32 %v1188, %v976
        %v1190 = vsub.f32 %v1183, %v1189
        %v1191 = vmul.f32 %v1190, %v1190
        %v1192 = vsel %vm535, %v1191, 0.0
        %1193 = vadd.xlane.f32.xlu0 %v1192
        %v1194 = vpop.xlane.xlu0 %1193
        %v1195 = vmul.f32 %v1194, %v976
        %v1196 = vadd.f32 %v1195, 1e-05
        %v1197 = vrsqrt.pop %v1196
        %v1198 = vmul.f32 %v1190, %v1197
        %v1200 = vlaneseq
        %v1201 = vshrl.u32 %v1200, 7
        %v1202 = vsub.s32 0, %v1201
        %v1203 = vrot.slane %v1184, %v1202
        %v1205 = vmul.f32 %v1198, %v1203
        %v1207 = vlaneseq
        %v1208 = vshrl.u32 %v1207, 7
        %v1209 = vsub.s32 0, %v1208
        %v1210 = vrot.slane %v1185, %v1209
        %v1212 = vadd.f32 %v1205, %v1210
        %1213 = vst.msk [vmem:[%s504] sm:$0xff] %vm535, %v1212
        %s1214 = sand.u32 %s341, 1
        %s1215 = scalar_lea.sflag [#allocation5], %s1214
        %s1216 = sand.u32 %s341, 1
        %s1217 = smul.addr %s1216, 8
        %s1218 = scalar_lea.vmem [#allocation6], %s1217
        %s1219 = sand.u32 %s367, 1
        %s1220 = scalar_lea.sflag [#allocation8], %s1219
        %s1221 = sand.u32 %s367, 1
        %s1222 = smul.addr %s1221, 8
        %s1223 = scalar_lea.vmem [#allocation7], %s1222
        // Predicated region
        $region81: #{tpu_custom_call.1} parent=75 // pred_check
          %p1224 = pneg %p351
        $region82: #{tpu_custom_call.1} parent=75 // pred_check_branch
          %1226 = sbr.rel (%p1224) target = $region84
        $region83: #{tpu_custom_call.1} parent=75 // pred_region
          %s1228 = ssub.s32 128, 128
          %1229 = vsyncadd %s1215, %s1228
          %s1230 = smul.addr %s34, 128
          %s1231 = scalar_lea.hbm %s14, %s1230
          %s1233 = sshll.u32 %s1218, 4
          %s1234 = int_to_ptr.vmem [resolvable:$true] %s1233
          %1236 = dma.vmem_to_hbm [thread:$0]  %s1234, 128, %s1231, %s1215
        $region84: #{tpu_custom_call.1} parent=75 // pred_fallthru
          _
        // Predicated region
        $region85: #{tpu_custom_call.1} parent=75 // pred_check
          %p1237 = pneg %p377
        $region86: #{tpu_custom_call.1} parent=75 // pred_check_branch
          %1239 = sbr.rel (%p1237) target = $region88
        $region87: #{tpu_custom_call.1} parent=75 // pred_region
          %s1241 = ssub.s32 128, 128
          %1242 = vsyncadd %s1220, %s1241
          %s1243 = smul.addr %s34, 2
          %s1244 = smul.addr %s1243, 64
          %s1245 = scalar_lea.hbm %s15, %s1244
          %s1246 = sshll.u32 %s1223, 4
          %s1247 = int_to_ptr.vmem [resolvable:$true] %s1246
          %1252 = dma.vmem_to_hbm [thread:$0]  %s1247, 128, %s1245, %s1220, 64, 64, 4
        $region88: #{tpu_custom_call.1} parent=75 // pred_fallthru
          _
      $region76: #{tpu_custom_call.1} parent=5 // pred_fallthru
        _
      %p1253 = scmp.le.s32.totalorder 2, %s29
      // Predicated region
      $region89: #{tpu_custom_call.1} parent=5 // pred_check
        %p1254 = pneg %p1253
      $region90: #{tpu_custom_call.1} parent=5 // pred_check_branch
        %1256 = sbr.rel (%p1254) target = $region92
      $region91: #{tpu_custom_call.1} parent=5 // pred_region
        %s1257 = ssub.s32 %s29, 2
        // Predicated region
        $region93: #{tpu_custom_call.1} parent=91 // pred_check
          %p1258 = pneg %p357
        $region94: #{tpu_custom_call.1} parent=91 // pred_check_branch
          %1260 = sbr.rel (%p1258) target = $region96
        $region95: #{tpu_custom_call.1} parent=91 // pred_region
          %s1261 = sand.u32 %s342, 1
          %s1262 = scalar_lea.sflag [#allocation5], %s1261
          %s1263 = sand.u32 %s342, 1
          %s1264 = smul.addr %s1263, 8
          %s1265 = scalar_lea.vmem [#allocation6], %s1264
          %1266 = dma.done %s1262, 128
        $region96: #{tpu_custom_call.1} parent=91 // pred_fallthru
          _
        // Predicated region
        $region97: #{tpu_custom_call.1} parent=91 // pred_check
          %p1267 = pneg %p383
        $region98: #{tpu_custom_call.1} parent=91 // pred_check_branch
          %1269 = sbr.rel (%p1267) target = $region100
        $region99: #{tpu_custom_call.1} parent=91 // pred_region
          %s1270 = sand.u32 %s368, 1
          %s1271 = scalar_lea.sflag [#allocation8], %s1270
          %s1272 = sand.u32 %s368, 1
          %s1273 = smul.addr %s1272, 8
          %s1274 = scalar_lea.vmem [#allocation7], %s1273
          %1275 = dma.done %s1271, 128
        $region100: #{tpu_custom_call.1} parent=91 // pred_fallthru
          _
      $region92: #{tpu_custom_call.1} parent=5 // pred_fallthru
        _
    $region6: #{tpu_custom_call.1} parent=1 // loop_footer
      %s33 = sadd.s32 1, %s29
    $region7: #{tpu_custom_call.1} parent=1 // loop_footer_branch
      %28 = sbr.rel target = $region3
    $region8: #{tpu_custom_call.1} parent=1 // loop_exit
      _
    %1276 = vsyncpa [#allocation4], 1
    %s1277 = scalar_lea.sflag [#allocation4], 1
    %1278 = vsyncpa %s1277, 1
    %1279 = vsyncpa [#allocation5], 1
    %s1280 = scalar_lea.sflag [#allocation5], 1
    %1281 = vsyncpa %s1280, 1
    %1282 = vsyncpa [#allocation8], 1
    %s1283 = scalar_lea.sflag [#allocation8], 1
    %1284 = vsyncpa %s1283, 1

// kernel: tpu_custom_call.1
$region0: #{tpu_custom_call.1}
  #allocation0 [shape = 'u32[]', space=smem, size = 0x4, offset = 0x4, fixed_abs, tag = 'smem constant byte address 0x4 - core index']
  #allocation1 [shape = 'u32[144,128]{1,0:T(1,128)}', space=vmem, size = 0x12000, scoped, tag = 'internal scratch']
  #allocation2 [shape = 'bf16[8,32]{1,0:T(8,128)(2,1)}', space=vmem, size = 0x800, scoped, tag = 'scratch operand']
  %s0 = inlined_call_operand.vmem [shape: f32[2,8,32], index: 0, kind: input, shape index: {}]
  %s1 = inlined_call_operand.vmem [shape: bf16[32,96], index: 1, kind: input, shape index: {}]
  %s2 = inlined_call_operand.vmem [shape: bf16[32,32], index: 2, kind: input, shape index: {}]
  %s3 = inlined_call_operand.vmem [shape: f32[1,32], index: 3, kind: input, shape index: {}]
  %s4 = inlined_call_operand.vmem [shape: f32[1,32], index: 4, kind: input, shape index: {}]
  %s5 = inlined_call_operand.vmem [shape: f32[1,32], index: 5, kind: input, shape index: {}]
  %s6 = inlined_call_operand.hbm [shape: bf16[32,64], index: 6, kind: input, shape index: {}]
  %s7 = inlined_call_operand.vmem [shape: f32[1,64], index: 7, kind: input, shape index: {}]
  %s8 = inlined_call_operand.vmem [shape: bf16[64,32], index: 8, kind: input, shape index: {}]
  %s9 = inlined_call_operand.vmem [shape: f32[1,32], index: 9, kind: input, shape index: {}]
  %s10 = inlined_call_operand.vmem [shape: f32[1,32], index: 10, kind: input, shape index: {}]
  %s11 = inlined_call_operand.vmem [shape: f32[1,32], index: 11, kind: input, shape index: {}]
  %s12 = inlined_call_operand.vmem [shape: f32[1,32], index: 12, kind: input, shape index: {}]
  %s13 = inlined_call_operand.vmem [shape: f32[1,32], index: 13, kind: input, shape index: {}]
  %s14 = inlined_call_operand.hbm [shape: f32[2,8,32], index: 14, kind: output, shape index: {0}]
  %s15 = inlined_call_operand.hbm [shape: bf16[2,2,8,8], index: 15, kind: output, shape index: {1}]
  %16 = xla_tuple %s14, %s15
  %s17 = sld [smem:[#allocation0]]
  $region101: #{tpu_custom_call.1} parent=0
    _
  %s19 = ssub.s32 1, %s17
  %s20 = scalar_select 0, %s19, %s17
  $region1: #{tpu_custom_call.1} parent=0
    #allocation3 [shape = 'u8[8192]{0}', space=vmem, size = 0x2000, scoped, tag = 'input window, operand 6, single buffered']
    #allocation4 [shape = 's32[2]{0}', space=sflag, size = 0x8, scoped, tag = 'scoped memory for tpu_custom_call.1']
    #allocation5 [shape = 's32[2]{0}', space=sflag, size = 0x8, scoped, tag = 'scoped memory for tpu_custom_call.1']
    #allocation6 [shape = 'u8[8192]{0}', space=vmem, size = 0x2000, scoped, tag = 'output window, operand 0']
    #allocation7 [shape = 'u8[8192]{0}', space=vmem, size = 0x2000, scoped, tag = 'output window, operand 1']
    #allocation8 [shape = 's32[2]{0}', space=sflag, size = 0x8, scoped, tag = 'scoped memory for tpu_custom_call.1']
    %21 = vsyncpa [#allocation4], 0
    %22 = vsyncpa [#allocation5], 0
    %s23 = scalar_lea.sflag [#allocation5], 1
    %24 = vsyncpa %s23, 0
    %25 = vsyncpa [#allocation8], 0
    %s26 = scalar_lea.sflag [#allocation8], 1
    %27 = vsyncpa %s26, 0
    loop: start=0, step=1, limit=4
    $region2: #{tpu_custom_call.1} parent=1 // loop_pre_header
      _
    $region3: #{tpu_custom_call.1} parent=1 // loop_header
      %s29 = sphi 0, %s33
      %p30 = scmp.ge.s32.totalorder %s29, 4
      %s39 = sphi 0, %s41
      %s42 = sphi 0, %s39
      %s43 = sphi 0, %s42
      %s59 = sphi 0, %s43
      %s63 = sphi 0, %s63
      %s65 = sphi 0, %s63
      %s66 = sphi 0, %s65
      %s80 = sphi 0, %s66
      %s84 = sphi 0, %s84
      %s86 = sphi 0, %s84
      %s87 = sphi 0, %s86
      %s101 = sphi 0, %s87
      %s105 = sphi 0, %s105
      %s107 = sphi 0, %s105
      %s108 = sphi 0, %s107
      %s122 = sphi 0, %s108
      %s126 = sphi 0, %s126
      %s128 = sphi 0, %s126
      %s129 = sphi 0, %s128
      %s143 = sphi 0, %s129
      %s147 = sphi 0, %s147
      %s149 = sphi 0, %s147
      %s150 = sphi 0, %s149
      %s164 = sphi 0, %s150
      %s168 = sphi 0, %s168
      %s170 = sphi 0, %s168
      %s171 = sphi 0, %s170
      %s185 = sphi 0, %s171
      %s189 = sphi 0, %s189
      %s191 = sphi 0, %s189
      %s192 = sphi 0, %s191
      %s206 = sphi 0, %s192
      %s210 = sphi 0, %s210
      %s212 = sphi 0, %s210
      %s213 = sphi 0, %s212
      %s227 = sphi 0, %s213
      %s231 = sphi 0, %s231
      %s233 = sphi 0, %s231
      %s234 = sphi 0, %s233
      %s248 = sphi 0, %s234
      %s252 = sphi 0, %s252
      %s254 = sphi 0, %s252
      %s255 = sphi 0, %s254
      %s269 = sphi 0, %s255
      %s273 = sphi 0, %s273
      %s275 = sphi 0, %s273
      %s276 = sphi 0, %s275
      %s290 = sphi 0, %s276
      %s294 = sphi 0, %s294
      %s296 = sphi 0, %s294
      %s297 = sphi 0, %s296
      %s311 = sphi 0, %s297
      %s315 = sphi 0, %s315
      %s317 = sphi 0, %s315
      %s318 = sphi 0, %s317
      %s332 = sphi 0, %s318
      %s338 = sphi 0, %s340
      %s341 = sphi 0, %s338
      %s342 = sphi 0, %s341
      %s358 = sphi 0, %s342
      %s364 = sphi 0, %s366
      %s367 = sphi 0, %s364
      %s368 = sphi 0, %s367
      %s384 = sphi 0, %s368
    $region4: #{tpu_custom_call.1} parent=1 // loop_header_branch
      %32 = sbr.rel (%p30) target = $region8
    $region5: #{tpu_custom_call.1} parent=1 // loop_body
      %s34 = ssub.s32 %s29, 1
      %s35 = ssub.s32 %s29, 2
      %s36 = sadd.s32 %s29, 1
      %s37 = ssub.s32 %s29, %s36
      %p38 = scmp.eq.s32.totalorder %s37, 0
      %s40 = sadd.s32 %s39, 1
      %s41 = scalar_select %p38, %s39, %s40
      %p44 = pneg %p38
      %p45 = scmp.eq.s32.totalorder %s29, 1
      %p46 = por %p44, %p45
      %p47 = scmp.ne.s32.totalorder %s39, %s42
      %p48 = scmp.eq.s32.totalorder %s29, 0
      %p49 = por %p47, %p48
      %p50 = scmp.ne.s32.totalorder %s39, %s42
      %p51 = scmp.eq.s32.totalorder %s34, 1
      %p52 = por %p50, %p51
      %p53 = scmp.ne.s32.totalorder %s42, %s43
      %p54 = scmp.eq.s32.totalorder %s34, 0
      %p55 = por %p53, %p54
      %p56 = scmp.ne.s32.totalorder %s42, %s43
      %p57 = scmp.eq.s32.totalorder %s35, 1
      %p58 = por %p56, %p57
      %p60 = scmp.ne.s32.totalorder %s43, %s59
      %p61 = scmp.eq.s32.totalorder %s35, 0
      %p62 = por %p60, %p61
      %s64 = sadd.s32 %s63, 1
      %p67 = scmp.eq.s32.totalorder %s29, 1
      %p68 = scmp.ne.s32.totalorder %s63, %s65
      %p69 = scmp.eq.s32.totalorder %s29, 0
      %p70 = por %p68, %p69
      %p71 = scmp.ne.s32.totalorder %s63, %s65
      %p72 = scmp.eq.s32.totalorder %s34, 1
      %p73 = por %p71, %p72
      %p74 = scmp.ne.s32.totalorder %s65, %s66
      %p75 = scmp.eq.s32.totalorder %s34, 0
      %p76 = por %p74, %p75
      %p77 = scmp.ne.s32.totalorder %s65, %s66
      %p78 = scmp.eq.s32.totalorder %s35, 1
      %p79 = por %p77, %p78
      %p81 = scmp.ne.s32.totalorder %s66, %s80
      %p82 = scmp.eq.s32.totalorder %s35, 0
      %p83 = por %p81, %p82
      %s85 = sadd.s32 %s84, 1
      %p88 = scmp.eq.s32.totalorder %s29, 1
      %p89 = scmp.ne.s32.totalorder %s84, %s86
      %p90 = scmp.eq.s32.totalorder %s29, 0
      %p91 = por %p89, %p90
      %p92 = scmp.ne.s32.totalorder %s84, %s86
      %p93 = scmp.eq.s32.totalorder %s34, 1
      %p94 = por %p92, %p93
      %p95 = scmp.ne.s32.totalorder %s86, %s87
      %p96 = scmp.eq.s32.totalorder %s34, 0
      %p97 = por %p95, %p96
      %p98 = scmp.ne.s32.totalorder %s86, %s87
      %p99 = scmp.eq.s32.totalorder %s35, 1
      %p100 = por %p98, %p99
      %p102 = scmp.ne.s32.totalorder %s87, %s101
      %p103 = scmp.eq.s32.totalorder %s35, 0
      %p104 = por %p102, %p103
      %s106 = sadd.s32 %s105, 1
      %p109 = scmp.eq.s32.totalorder %s29, 1
      %p110 = scmp.ne.s32.totalorder %s105, %s107
      %p111 = scmp.eq.s32.totalorder %s29, 0
      %p112 = por %p110, %p111
      %p113 = scmp.ne.s32.totalorder %s105, %s107
      %p114 = scmp.eq.s32.totalorder %s34, 1
      %p115 = por %p113, %p114
      %p116 = scmp.ne.s32.totalorder %s107, %s108
      %p117 = scmp.eq.s32.totalorder %s34, 0
      %p118 = por %p116, %p117
      %p119 = scmp.ne.s32.totalorder %s107, %s108
      %p120 = scmp.eq.s32.totalorder %s35, 1
      %p121 = por %p119, %p120
      %p123 = scmp.ne.s32.totalorder %s108, %s122
      %p124 = scmp.eq.s32.totalorder %s35, 0
      %p125 = por %p123, %p124
      %s127 = sadd.s32 %s126, 1
      %p130 = scmp.eq.s32.totalorder %s29, 1
      %p131 = scmp.ne.s32.totalorder %s126, %s128
      %p132 = scmp.eq.s32.totalorder %s29, 0
      %p133 = por %p131, %p132
      %p134 = scmp.ne.s32.totalorder %s126, %s128
      %p135 = scmp.eq.s32.totalorder %s34, 1
      %p136 = por %p134, %p135
      %p137 = scmp.ne.s32.totalorder %s128, %s129
      %p138 = scmp.eq.s32.totalorder %s34, 0
      %p139 = por %p137, %p138
      %p140 = scmp.ne.s32.totalorder %s128, %s129
      %p141 = scmp.eq.s32.totalorder %s35, 1
      %p142 = por %p140, %p141
      %p144 = scmp.ne.s32.totalorder %s129, %s143
      %p145 = scmp.eq.s32.totalorder %s35, 0
      %p146 = por %p144, %p145
      %s148 = sadd.s32 %s147, 1
      %p151 = scmp.eq.s32.totalorder %s29, 1
      %p152 = scmp.ne.s32.totalorder %s147, %s149
      %p153 = scmp.eq.s32.totalorder %s29, 0
      %p154 = por %p152, %p153
      %p155 = scmp.ne.s32.totalorder %s147, %s149
      %p156 = scmp.eq.s32.totalorder %s34, 1
      %p157 = por %p155, %p156
      %p158 = scmp.ne.s32.totalorder %s149, %s150
      %p159 = scmp.eq.s32.totalorder %s34, 0
      %p160 = por %p158, %p159
      %p161 = scmp.ne.s32.totalorder %s149, %s150
      %p162 = scmp.eq.s32.totalorder %s35, 1
      %p163 = por %p161, %p162
      %p165 = scmp.ne.s32.totalorder %s150, %s164
      %p166 = scmp.eq.s32.totalorder %s35, 0
      %p167 = por %p165, %p166
      %s169 = sadd.s32 %s168, 1
      %p172 = scmp.eq.s32.totalorder %s29, 1
      %p173 = scmp.ne.s32.totalorder %s168, %s170
      %p174 = scmp.eq.s32.totalorder %s29, 0
      %p175 = por %p173, %p174
      %p176 = scmp.ne.s32.totalorder %s168, %s170
      %p177 = scmp.eq.s32.totalorder %s34, 1
      %p178 = por %p176, %p177
      %p179 = scmp.ne.s32.totalorder %s170, %s171
      %p180 = scmp.eq.s32.totalorder %s34, 0
      %p181 = por %p179, %p180
      %p182 = scmp.ne.s32.totalorder %s170, %s171
      %p183 = scmp.eq.s32.totalorder %s35, 1
      %p184 = por %p182, %p183
      %p186 = scmp.ne.s32.totalorder %s171, %s185
      %p187 = scmp.eq.s32.totalorder %s35, 0
      %p188 = por %p186, %p187
      %s190 = sadd.s32 %s189, 1
      %p193 = scmp.eq.s32.totalorder %s29, 1
      %p194 = scmp.ne.s32.totalorder %s189, %s191
      %p195 = scmp.eq.s32.totalorder %s29, 0
      %p196 = por %p194, %p195
      %p197 = scmp.ne.s32.totalorder %s189, %s191
      %p198 = scmp.eq.s32.totalorder %s34, 1
      %p199 = por %p197, %p198
      %p200 = scmp.ne.s32.totalorder %s191, %s192
      %p201 = scmp.eq.s32.totalorder %s34, 0
      %p202 = por %p200, %p201
      %p203 = scmp.ne.s32.totalorder %s191, %s192
      %p204 = scmp.eq.s32.totalorder %s35, 1
      %p205 = por %p203, %p204
      %p207 = scmp.ne.s32.totalorder %s192, %s206
      %p208 = scmp.eq.s32.totalorder %s35, 0
      %p209 = por %p207, %p208
      %s211 = sadd.s32 %s210, 1
      %p214 = scmp.eq.s32.totalorder %s29, 1
      %p215 = scmp.ne.s32.totalorder %s210, %s212
      %p216 = scmp.eq.s32.totalorder %s29, 0
      %p217 = por %p215, %p216
      %p218 = scmp.ne.s32.totalorder %s210, %s212
      %p219 = scmp.eq.s32.totalorder %s34, 1
      %p220 = por %p218, %p219
      %p221 = scmp.ne.s32.totalorder %s212, %s213
      %p222 = scmp.eq.s32.totalorder %s34, 0
      %p223 = por %p221, %p222
      %p224 = scmp.ne.s32.totalorder %s212, %s213
      %p225 = scmp.eq.s32.totalorder %s35, 1
      %p226 = por %p224, %p225
      %p228 = scmp.ne.s32.totalorder %s213, %s227
      %p229 = scmp.eq.s32.totalorder %s35, 0
      %p230 = por %p228, %p229
      %s232 = sadd.s32 %s231, 1
      %p235 = scmp.eq.s32.totalorder %s29, 1
      %p236 = scmp.ne.s32.totalorder %s231, %s233
      %p237 = scmp.eq.s32.totalorder %s29, 0
      %p238 = por %p236, %p237
      %p239 = scmp.ne.s32.totalorder %s231, %s233
      %p240 = scmp.eq.s32.totalorder %s34, 1
      %p241 = por %p239, %p240
      %p242 = scmp.ne.s32.totalorder %s233, %s234
      %p243 = scmp.eq.s32.totalorder %s34, 0
      %p244 = por %p242, %p243
      %p245 = scmp.ne.s32.totalorder %s233, %s234
      %p246 = scmp.eq.s32.totalorder %s35, 1
      %p247 = por %p245, %p246
      %p249 = scmp.ne.s32.totalorder %s234, %s248
      %p250 = scmp.eq.s32.totalorder %s35, 0
      %p251 = por %p249, %p250
      %s253 = sadd.s32 %s252, 1
      %p256 = scmp.eq.s32.totalorder %s29, 1
      %p257 = scmp.ne.s32.totalorder %s252, %s254
      %p258 = scmp.eq.s32.totalorder %s29, 0
      %p259 = por %p257, %p258
      %p260 = scmp.ne.s32.totalorder %s252, %s254
      %p261 = scmp.eq.s32.totalorder %s34, 1
      %p262 = por %p260, %p261
      %p263 = scmp.ne.s32.totalorder %s254, %s255
      %p264 = scmp.eq.s32.totalorder %s34, 0
      %p265 = por %p263, %p264
      %p266 = scmp.ne.s32.totalorder %s254, %s255
      %p267 = scmp.eq.s32.totalorder %s35, 1
      %p268 = por %p266, %p267
      %p270 = scmp.ne.s32.totalorder %s255, %s269
      %p271 = scmp.eq.s32.totalorder %s35, 0
      %p272 = por %p270, %p271
      %s274 = sadd.s32 %s273, 1
      %p277 = scmp.eq.s32.totalorder %s29, 1
      %p278 = scmp.ne.s32.totalorder %s273, %s275
      %p279 = scmp.eq.s32.totalorder %s29, 0
      %p280 = por %p278, %p279
      %p281 = scmp.ne.s32.totalorder %s273, %s275
      %p282 = scmp.eq.s32.totalorder %s34, 1
      %p283 = por %p281, %p282
      %p284 = scmp.ne.s32.totalorder %s275, %s276
      %p285 = scmp.eq.s32.totalorder %s34, 0
      %p286 = por %p284, %p285
      %p287 = scmp.ne.s32.totalorder %s275, %s276
      %p288 = scmp.eq.s32.totalorder %s35, 1
      %p289 = por %p287, %p288
      %p291 = scmp.ne.s32.totalorder %s276, %s290
      %p292 = scmp.eq.s32.totalorder %s35, 0
      %p293 = por %p291, %p292
      %s295 = sadd.s32 %s294, 1
      %p298 = scmp.eq.s32.totalorder %s29, 1
      %p299 = scmp.ne.s32.totalorder %s294, %s296
      %p300 = scmp.eq.s32.totalorder %s29, 0
      %p301 = por %p299, %p300
      %p302 = scmp.ne.s32.totalorder %s294, %s296
      %p303 = scmp.eq.s32.totalorder %s34, 1
      %p304 = por %p302, %p303
      %p305 = scmp.ne.s32.totalorder %s296, %s297
      %p306 = scmp.eq.s32.totalorder %s34, 0
      %p307 = por %p305, %p306
      %p308 = scmp.ne.s32.totalorder %s296, %s297
      %p309 = scmp.eq.s32.totalorder %s35, 1
      %p310 = por %p308, %p309
      %p312 = scmp.ne.s32.totalorder %s297, %s311
      %p313 = scmp.eq.s32.totalorder %s35, 0
      %p314 = por %p312, %p313
      %s316 = sadd.s32 %s315, 1
      %p319 = scmp.eq.s32.totalorder %s29, 1
      %p320 = scmp.ne.s32.totalorder %s315, %s317
      %p321 = scmp.eq.s32.totalorder %s29, 0
      %p322 = por %p320, %p321
      %p323 = scmp.ne.s32.totalorder %s315, %s317
      %p324 = scmp.eq.s32.totalorder %s34, 1
      %p325 = por %p323, %p324
      %p326 = scmp.ne.s32.totalorder %s317, %s318
      %p327 = scmp.eq.s32.totalorder %s34, 0
      %p328 = por %p326, %p327
      %p329 = scmp.ne.s32.totalorder %s317, %s318
      %p330 = scmp.eq.s32.totalorder %s35, 1
      %p331 = por %p329, %p330
      %p333 = scmp.ne.s32.totalorder %s318, %s332
      %p334 = scmp.eq.s32.totalorder %s35, 0
      %p335 = por %p333, %p334
      %s336 = ssub.s32 %s29, %s36
      %p337 = scmp.eq.s32.totalorder %s336, 0
      %s339 = sadd.s32 %s338, 1
      %s340 = scalar_select %p337, %s338, %s339
      %p343 = pneg %p337
      %p344 = scmp.eq.s32.totalorder %s29, 1
      %p345 = por %p343, %p344
      %p346 = scmp.ne.s32.totalorder %s338, %s341
      %p347 = scmp.eq.s32.totalorder %s29, 0
      %p348 = por %p346, %p347
      %p349 = scmp.ne.s32.totalorder %s338, %s341
      %p350 = scmp.eq.s32.totalorder %s34, 1
      %p351 = por %p349, %p350
      %p352 = scmp.ne.s32.totalorder %s341, %s342
      %p353 = scmp.eq.s32.totalorder %s34, 0
      %p354 = por %p352, %p353
      %p355 = scmp.ne.s32.totalorder %s341, %s342
      %p356 = scmp.eq.s32.totalorder %s35, 1
      %p357 = por %p355, %p356
      %p359 = scmp.ne.s32.totalorder %s342, %s358
      %p360 = scmp.eq.s32.totalorder %s35, 0
      %p361 = por %p359, %p360
      %s362 = ssub.s32 %s29, %s36
      %p363 = scmp.eq.s32.totalorder %s362, 0
      %s365 = sadd.s32 %s364, 1
      %s366 = scalar_select %p363, %s364, %s365
      %p369 = pneg %p363
      %p370 = scmp.eq.s32.totalorder %s29, 1
      %p371 = por %p369, %p370
      %p372 = scmp.ne.s32.totalorder %s364, %s367
      %p373 = scmp.eq.s32.totalorder %s29, 0
      %p374 = por %p372, %p373
      %p375 = scmp.ne.s32.totalorder %s364, %s367
      %p376 = scmp.eq.s32.totalorder %s34, 1
      %p377 = por %p375, %p376
      %p378 = scmp.ne.s32.totalorder %s367, %s368
      %p379 = scmp.eq.s32.totalorder %s34, 0
      %p380 = por %p378, %p379
      %p381 = scmp.ne.s32.totalorder %s367, %s368
      %p382 = scmp.eq.s32.totalorder %s35, 1
      %p383 = por %p381, %p382
      %p385 = scmp.ne.s32.totalorder %s368, %s384
      %p386 = scmp.eq.s32.totalorder %s35, 0
      %p387 = por %p385, %p386
      %p388 = scmp.le.s32.totalorder 1, %s29
      %p389 = scmp.lt.s32.totalorder %s29, 3
      %p390 = pnand %p388, %p389
      %p391 = pneg %p390
      // Predicated region
      $region9: #{tpu_custom_call.1} parent=5 // pred_check
        _
      $region10: #{tpu_custom_call.1} parent=5 // pred_check_branch
        %393 = sbr.rel (%p390) target = $region12
      $region11: #{tpu_custom_call.1} parent=5 // pred_region
        %s394 = ssub.s32 %s29, 1
        // Predicated region
        $region13: #{tpu_custom_call.1} parent=11 // pred_check
          %p395 = pneg %p76
        $region14: #{tpu_custom_call.1} parent=11 // pred_check_branch
          %397 = sbr.rel (%p395) target = $region16
        $region15: #{tpu_custom_call.1} parent=11 // pred_region
          _
        $region16: #{tpu_custom_call.1} parent=11 // pred_fallthru
          _
        // Predicated region
        $region17: #{tpu_custom_call.1} parent=11 // pred_check
          %p398 = pneg %p97
        $region18: #{tpu_custom_call.1} parent=11 // pred_check_branch
          %400 = sbr.rel (%p398) target = $region20
        $region19: #{tpu_custom_call.1} parent=11 // pred_region
          _
        $region20: #{tpu_custom_call.1} parent=11 // pred_fallthru
          _
        // Predicated region
        $region21: #{tpu_custom_call.1} parent=11 // pred_check
          %p401 = pneg %p118
        $region22: #{tpu_custom_call.1} parent=11 // pred_check_branch
          %403 = sbr.rel (%p401) target = $region24
        $region23: #{tpu_custom_call.1} parent=11 // pred_region
          _
        $region24: #{tpu_custom_call.1} parent=11 // pred_fallthru
          _
        // Predicated region
        $region25: #{tpu_custom_call.1} parent=11 // pred_check
          %p404 = pneg %p139
        $region26: #{tpu_custom_call.1} parent=11 // pred_check_branch
          %406 = sbr.rel (%p404) target = $region28
        $region27: #{tpu_custom_call.1} parent=11 // pred_region
          _
        $region28: #{tpu_custom_call.1} parent=11 // pred_fallthru
          _
        // Predicated region
        $region29: #{tpu_custom_call.1} parent=11 // pred_check
          %p407 = pneg %p160
        $region30: #{tpu_custom_call.1} parent=11 // pred_check_branch
          %409 = sbr.rel (%p407) target = $region32
        $region31: #{tpu_custom_call.1} parent=11 // pred_region
          _
        $region32: #{tpu_custom_call.1} parent=11 // pred_fallthru
          _
        // Predicated region
        $region33: #{tpu_custom_call.1} parent=11 // pred_check
          %p410 = pneg %p181
        $region34: #{tpu_custom_call.1} parent=11 // pred_check_branch
          %412 = sbr.rel (%p410) target = $region36
        $region35: #{tpu_custom_call.1} parent=11 // pred_region
          %s414 = ssub.s32 256, 256
          %415 = vsyncadd [#allocation4], %s414
          %s416 = sshll.u32 [#allocation3], 4
          %s417 = int_to_ptr.vmem [resolvable:$true] %s416
          %422 = dma.hbm_to_vmem [thread:$0]  %s6, 256, %s417, [#allocation4], 64, 64, 4
        $region36: #{tpu_custom_call.1} parent=11 // pred_fallthru
          _
        // Predicated region
        $region37: #{tpu_custom_call.1} parent=11 // pred_check
          %p423 = pneg %p202
        $region38: #{tpu_custom_call.1} parent=11 // pred_check_branch
          %425 = sbr.rel (%p423) target = $region40
        $region39: #{tpu_custom_call.1} parent=11 // pred_region
          _
        $region40: #{tpu_custom_call.1} parent=11 // pred_fallthru
          _
        // Predicated region
        $region41: #{tpu_custom_call.1} parent=11 // pred_check
          %p426 = pneg %p223
        $region42: #{tpu_custom_call.1} parent=11 // pred_check_branch
          %428 = sbr.rel (%p426) target = $region44
        $region43: #{tpu_custom_call.1} parent=11 // pred_region
          _
        $region44: #{tpu_custom_call.1} parent=11 // pred_fallthru
          _
        // Predicated region
        $region45: #{tpu_custom_call.1} parent=11 // pred_check
          %p429 = pneg %p244
        $region46: #{tpu_custom_call.1} parent=11 // pred_check_branch
          %431 = sbr.rel (%p429) target = $region48
        $region47: #{tpu_custom_call.1} parent=11 // pred_region
          _
        $region48: #{tpu_custom_call.1} parent=11 // pred_fallthru
          _
        // Predicated region
        $region49: #{tpu_custom_call.1} parent=11 // pred_check
          %p432 = pneg %p265
        $region50: #{tpu_custom_call.1} parent=11 // pred_check_branch
          %434 = sbr.rel (%p432) target = $region52
        $region51: #{tpu_custom_call.1} parent=11 // pred_region
          _
        $region52: #{tpu_custom_call.1} parent=11 // pred_fallthru
          _
        // Predicated region
        $region53: #{tpu_custom_call.1} parent=11 // pred_check
          %p435 = pneg %p286
        $region54: #{tpu_custom_call.1} parent=11 // pred_check_branch
          %437 = sbr.rel (%p435) target = $region56
        $region55: #{tpu_custom_call.1} parent=11 // pred_region
          _
        $region56: #{tpu_custom_call.1} parent=11 // pred_fallthru
          _
        // Predicated region
        $region57: #{tpu_custom_call.1} parent=11 // pred_check
          %p438 = pneg %p307
        $region58: #{tpu_custom_call.1} parent=11 // pred_check_branch
          %440 = sbr.rel (%p438) target = $region60
        $region59: #{tpu_custom_call.1} parent=11 // pred_region
          _
        $region60: #{tpu_custom_call.1} parent=11 // pred_fallthru
          _
        // Predicated region
        $region61: #{tpu_custom_call.1} parent=11 // pred_check
          %p441 = pneg %p328
        $region62: #{tpu_custom_call.1} parent=11 // pred_check_branch
          %443 = sbr.rel (%p441) target = $region64
        $region63: #{tpu_custom_call.1} parent=11 // pred_region
          _
        $region64: #{tpu_custom_call.1} parent=11 // pred_fallthru
          _
      $region12: #{tpu_custom_call.1} parent=5 // pred_fallthru
        _
      %p444 = scmp.lt.s32.totalorder %s29, 2
      // Predicated region
      $region65: #{tpu_custom_call.1} parent=5 // pred_check
        %p445 = pneg %p444
      $region66: #{tpu_custom_call.1} parent=5 // pred_check_branch
        %447 = sbr.rel (%p445) target = $region68
      $region67: #{tpu_custom_call.1} parent=5 // pred_region
        // Predicated region
        $region69: #{tpu_custom_call.1} parent=67 // pred_check
          %p448 = pneg %p49
        $region70: #{tpu_custom_call.1} parent=67 // pred_check_branch
          %450 = sbr.rel (%p448) target = $region72
        $region71: #{tpu_custom_call.1} parent=67 // pred_region
          %p451 = scmp.lt.s32.totalorder %s29, 1
          %s452 = scalar_select %p451, %s29, 1
          %s453 = smul.addr %s452, 8
          %s454 = scalar_lea.vmem %s0, %s453
        $region72: #{tpu_custom_call.1} parent=67 // pred_fallthru
          _
      $region68: #{tpu_custom_call.1} parent=5 // pred_fallthru
        _
      %p455 = scmp.le.s32.totalorder 1, %s29
      %p456 = scmp.lt.s32.totalorder %s29, 3
      %p457 = pnand %p455, %p456
      %p458 = pneg %p457
      // Predicated region
      $region73: #{tpu_custom_call.1} parent=5 // pred_check
        _
      $region74: #{tpu_custom_call.1} parent=5 // pred_check_branch
        %460 = sbr.rel (%p457) target = $region76
      $region75: #{tpu_custom_call.1} parent=5 // pred_region
        %s461 = ssub.s32 %s29, 1
        // Predicated region
        $region77: #{tpu_custom_call.1} parent=75 // pred_check
          %p462 = pneg %p181
        $region78: #{tpu_custom_call.1} parent=75 // pred_check_branch
          %464 = sbr.rel (%p462) target = $region80
        $region79: #{tpu_custom_call.1} parent=75 // pred_region
          %465 = dma.done [#allocation4], 256
        $region80: #{tpu_custom_call.1} parent=75 // pred_fallthru
          _
        %p466 = scmp.lt.s32.totalorder %s34, 1
        %s467 = scalar_select %p466, %s34, 1
        %s468 = smul.addr %s467, 8
        %s469 = scalar_lea.vmem %s0, %s468
        %p470 = pneg %p55
        %p471 = pneg %p52
        %p472 = pneg %p76
        %p473 = pneg %p73
        %p474 = pneg %p97
        %p475 = pneg %p94
        %p476 = pneg %p118
        %p477 = pneg %p115
        %p478 = pneg %p139
        %p479 = pneg %p136
        %p480 = pneg %p160
        %p481 = pneg %p157
        %p482 = pneg %p181
        %p483 = pneg %p178
        %p484 = pneg %p202
        %p485 = pneg %p199
        %p486 = pneg %p223
        %p487 = pneg %p220
        %p488 = pneg %p244
        %p489 = pneg %p241
        %p490 = pneg %p265
        %p491 = pneg %p262
        %p492 = pneg %p286
        %p493 = pneg %p283
        %p494 = pneg %p307
        %p495 = pneg %p304
        %p496 = pneg %p328
        %p497 = pneg %p325
        %p498 = pneg %p354
        %p499 = pneg %p351
        %s500 = sand.u32 %s341, 1
        %s501 = scalar_lea.sflag [#allocation5], %s500
        %s502 = sand.u32 %s341, 1
        %s503 = smul.addr %s502, 8
        %s504 = scalar_lea.vmem [#allocation6], %s503
        %p505 = pneg %p380
        %p506 = pneg %p377
        %s507 = sand.u32 %s367, 1
        %s508 = scalar_lea.sflag [#allocation8], %s507
        %s509 = sand.u32 %s367, 1
        %s510 = smul.addr %s509, 8
        %s511 = scalar_lea.vmem [#allocation7], %s510
        %p512 = scmp.lt.s32.totalorder %s34, 1
        %s513 = scalar_select %p512, %s34, 1
        %s514 = smul.addr %s513, 8
        %s515 = scalar_lea.vmem %s0, %s514
        %v517 = vld [vmem:[%s515] sm:$0xff]
        %v518 = vpack.c.bf16 %v517, %v517
        %v519 = vld [vmem:[%s1] sm:$0xf]
        %v520 = vld [vmem:[%s1 + $0x4] sm:$0xf]
        %v521 = vld [vmem:[%s1 + $0x8] sm:$0xf]
        %v522 = vld [vmem:[%s1 + $0xc] sm:$0xf]
        %v527 = vunpack.c.l.b16 %v519
        %v528 = vunpack.c.l.b16 %v520
        %v529 = vunpack.c.l.b16 %v521
        %v530 = vunpack.c.l.b16 %v522
        %v531 = vpack.c.b16 %v528, %v527
        %v532 = vpack.c.b16 %v530, %v529
        %vm535 = vcmask 261120
        %v537 = vsel %vm535, %v518, 0
        %539 = vmatprep.subr.bf16.mxu0 0
        %540 = vmatpush1.bf16.msra.mxu0 %v531
        %541 = vmatprep.subr.bf16.mxu0 0
        %542 = vmatpush1.bf16.msra.mxu0 %v532
        %543 = vmatprep.subr.bf16.mxu0 0
        %544 = vmatpush1.bf16.msra.mxu0 0
        %545 = vmatprep.subr.bf16.mxu0 0
        %546 = vmatpush1.bf16.msra.mxu0 0
        %547 = vmatprep.subr.bf16.mxu0 0
        %548 = vmatpush1.bf16.msra.mxu0 0
        %549 = vmatprep.subr.bf16.mxu0 0
        %550 = vmatpush1.bf16.msra.mxu0 0
        %551 = vmatprep.subr.bf16.mxu0 0
        %552 = vmatpush1.bf16.msra.mxu0 0
        %553 = vmatprep.subr.bf16.mxu0 0
        %554 = vmatpush1.bf16.msra.mxu0 0
        %555 = vmatprep.subr.bf16.mxu0 0
        %556 = vmatpush1.bf16.msra.mxu0 0
        %557 = vmatprep.subr.bf16.mxu0 0
        %558 = vmatpush1.bf16.msra.mxu0 0
        %559 = vmatprep.subr.bf16.mxu0 0
        %560 = vmatpush1.bf16.msra.mxu0 0
        %561 = vmatprep.subr.bf16.mxu0 0
        %562 = vmatpush1.bf16.msra.mxu0 0
        %563 = vmatprep.subr.bf16.mxu0 0
        %564 = vmatpush1.bf16.msra.mxu0 0
        %565 = vmatprep.subr.bf16.mxu0 0
        %566 = vmatpush1.bf16.msra.mxu0 0
        %567 = vmatprep.subr.bf16.mxu0 0
        %568 = vmatpush1.bf16.msra.mxu0 0
        %569 = vmatprep.subr.bf16.mxu0 0
        %570 = vmatpush1.bf16.msra.mxu0 0
        %571 = vmatprep.mubr.bf16.mxu0 0
        %572 = vmatmul.mubr.bf16.gmra.mrb[0].mxu0 %v537
        %v573 = vpop.f32.mrb[0].mxu0
        %v574 = vadd.f32 0.0, %v573
        %v575 = vpop.f32.mrb[0].mxu0
        %v576 = vpop.f32.mrb[0].mxu0
        %v577 = vpop.f32.mrb[0].mxu0
        %578 = vdwg.mxu0
        %v579 = vlaneseq
        %v580 = vshrl.u32 %v579, 7
        %v581 = vcvt.s32.f32 %v580
        %v582 = vlaneseq
        %v583 = vand.u32 %v582, 127
        %v584 = vcvt.s32.f32 %v583
        %v585 = vmul.f32 %v574, 0.17677669
        %v586 = vpack.c.bf16 %v585, %v585
        %v587 = vpack.c.bf16 %v574, %v574
        %vm588 = vcmask 130048
        %v589 = vsel %vm588, %v574, 0.0
        %590 = vadd.xlane.f32.xlu0 %v589
        %v591 = vpop.xlane.xlu0 %590
        %v592 = vmul.f32 %v591, 0.17677669
        %594 = vrot.lane.b32.xlu0 %v574, 96
        %v595 = vpop.permute.xlu0 %594
        %v597 = vsel %vm588, %v595, 0.0
        %598 = vadd.xlane.f32.xlu0 %v597
        %v599 = vpop.xlane.xlu0 %598
        %v600 = vmul.f32 %v599, 0.17677669
        %v601 = vmul.f32 %v584, 2.828427
        %604 = vbcast.lane.b32.xlu0 %v601, 256
        %v605 = vpop.permute.xlu0 %604
        %v607 = vadd.f32 %v600, %v605
        %609 = vset.pattern.permute.xlu0 0
        %610 = vperm.xlu0 %609, %v607
        %v611 = vpop.permute.xlu0 %610
        %v612 = vlaneseq
        %v613 = vshrl.u32 %v612, 7
        %v614 = vsub.s32 %v583, %v613
        %v615 = vrot.slane %v611, %v614
        %vm616 = vcmask 1042434
        %v617 = vsel %vm616, %v615, %v615
        %vm618 = vcmask 1043459
        %v619 = vsel %vm618, %v615, %v617
        %vm620 = vcmask 1044484
        %v621 = vsel %vm620, %v615, %v619
        %vm622 = vcmask 1045509
        %v623 = vsel %vm622, %v615, %v621
        %vm624 = vcmask 1046534
        %v625 = vsel %vm624, %v615, %v623
        %vm626 = vcmask 1047559
        %v627 = vsel %vm626, %v615, %v625
        %v629 = vmul.f32 %v581, %v627
        %631 = vrot.lane.b32.xlu0 %v587, 96
        %v632 = vpop.permute.xlu0 %631
        %v634 = vsel %vm588, %v586, 0
        %v637 = vsel %vm588, %v632, 0
        %639 = vmatprep.subr.bf16.mxu0 0
        %640 = vmatpush1.bf16.xpose.msra.mxu0 %v637
        %641 = vmatprep.subr.bf16.mxu0 0
        %642 = vmatpush1.bf16.xpose.msra.mxu0 0
        %643 = vmatprep.subr.bf16.mxu0 0
        %644 = vmatpush1.bf16.xpose.msra.mxu0 0
        %645 = vmatprep.subr.bf16.mxu0 0
        %646 = vmatpush1.bf16.xpose.msra.mxu0 0
        %647 = vmatprep.subr.bf16.mxu0 0
        %648 = vmatpush1.bf16.xpose.msra.mxu0 0
        %649 = vmatprep.subr.bf16.mxu0 0
        %650 = vmatpush1.bf16.xpose.msra.mxu0 0
        %651 = vmatprep.subr.bf16.mxu0 0
        %652 = vmatpush1.bf16.xpose.msra.mxu0 0
        %653 = vmatprep.subr.bf16.mxu0 0
        %654 = vmatpush1.bf16.xpose.msra.mxu0 0
        %655 = vmatprep.subr.bf16.mxu0 0
        %656 = vmatpush1.bf16.xpose.msra.mxu0 0
        %657 = vmatprep.subr.bf16.mxu0 0
        %658 = vmatpush1.bf16.xpose.msra.mxu0 0
        %659 = vmatprep.subr.bf16.mxu0 0
        %660 = vmatpush1.bf16.xpose.msra.mxu0 0
        %661 = vmatprep.subr.bf16.mxu0 0
        %662 = vmatpush1.bf16.xpose.msra.mxu0 0
        %663 = vmatprep.subr.bf16.mxu0 0
        %664 = vmatpush1.bf16.xpose.msra.mxu0 0
        %665 = vmatprep.subr.bf16.mxu0 0
        %666 = vmatpush1.bf16.xpose.msra.mxu0 0
        %667 = vmatprep.subr.bf16.mxu0 0
        %668 = vmatpush1.bf16.xpose.msra.mxu0 0
        %669 = vmatprep.subr.bf16.mxu0 0
        %670 = vmatpush1.bf16.xpose.msra.mxu0 0
        %671 = vmatprep.mubr.bf16.mxu0 0
        %672 = vmatmul.mubr.bf16.gmra.mrb[0].mxu0 %v634
        %v673 = vpop.f32.mrb[0].mxu0
        %v674 = vadd.f32 %v629, %v673
        %v675 = vpop.f32.mrb[0].mxu0
        %v676 = vpop.f32.mrb[0].mxu0
        %v677 = vpop.f32.mrb[0].mxu0
        %678 = vdwg.mxu0
        %v679 = vmul.f32 %v592, %v584
        %v680 = vadd.f32 %v674, %v679
        %vm681 = vcmask 64512
        %v682 = vsel %vm681, %v680, -inf
        %683 = vmax.xlane.f32.xlu0 %v682
        %v684 = vpop.xlane.xlu0 %683
        %v685 = vsub.f32 %v680, %v684
        %v686 = vmul.f32 %v685, 1.442695
        %v687 = vpow.pop %v686
        %v688 = vsel %vm681, %v687, 0.0
        %689 = vadd.xlane.f32.xlu0 %v688
        %v690 = vpop.xlane.xlu0 %689
        %v691 = vrcp.pop %v690
        %v692 = vmul.f32 %v687, %v691
        %v693 = vpack.c.bf16 %v692, %v692
        %vm694 = vcmask 60416
        %695 = vst.msk [vmem:[%s511] sm:$0xf] %vm694, %v693
        %696 = vrot.lane.b32.xlu0 %v587, 64
        %v697 = vpop.permute.xlu0 %696
        %v699 = vsel %vm681, %v693, 0
        %vm701 = vcmask 1043456
        %v703 = vsel %vm701, %v697, 0
        %705 = vmatprep.subr.bf16.mxu0 0
        %706 = vmatpush1.bf16.msra.mxu0 %v703
        %707 = vmatprep.subr.bf16.mxu0 0
        %708 = vmatpush1.bf16.msra.mxu0 0
        %709 = vmatprep.subr.bf16.mxu0 0
        %710 = vmatpush1.bf16.msra.mxu0 0
        %711 = vmatprep.subr.bf16.mxu0 0
        %712 = vmatpush1.bf16.msra.mxu0 0
        %713 = vmatprep.subr.bf16.mxu0 0
        %714 = vmatpush1.bf16.msra.mxu0 0
        %715 = vmatprep.subr.bf16.mxu0 0
        %716 = vmatpush1.bf16.msra.mxu0 0
        %717 = vmatprep.subr.bf16.mxu0 0
        %718 = vmatpush1.bf16.msra.mxu0 0
        %719 = vmatprep.subr.bf16.mxu0 0
        %720 = vmatpush1.bf16.msra.mxu0 0
        %721 = vmatprep.subr.bf16.mxu0 0
        %722 = vmatpush1.bf16.msra.mxu0 0
        %723 = vmatprep.subr.bf16.mxu0 0
        %724 = vmatpush1.bf16.msra.mxu0 0
        %725 = vmatprep.subr.bf16.mxu0 0
        %726 = vmatpush1.bf16.msra.mxu0 0
        %727 = vmatprep.subr.bf16.mxu0 0
        %728 = vmatpush1.bf16.msra.mxu0 0
        %729 = vmatprep.subr.bf16.mxu0 0
        %730 = vmatpush1.bf16.msra.mxu0 0
        %731 = vmatprep.subr.bf16.mxu0 0
        %732 = vmatpush1.bf16.msra.mxu0 0
        %733 = vmatprep.subr.bf16.mxu0 0
        %734 = vmatpush1.bf16.msra.mxu0 0
        %735 = vmatprep.subr.bf16.mxu0 0
        %736 = vmatpush1.bf16.msra.mxu0 0
        %737 = vmatprep.mubr.bf16.mxu0 0
        %738 = vmatmul.mubr.bf16.gmra.mrb[0].mxu0 %v699
        %v739 = vpop.f32.mrb[0].mxu0
        %v740 = vadd.f32 0.0, %v739
        %v741 = vpop.f32.mrb[0].mxu0
        %v742 = vpop.f32.mrb[0].mxu0
        %v743 = vpop.f32.mrb[0].mxu0
        %744 = vdwg.mxu0
        %v745 = vpack.c.bf16 %v740, %v740
        %vm746 = vcmask 125952
        %747 = vst.msk [vmem:[#allocation2] sm:$0xf] %vm746, %v745
        %748 = vrot.lane.b32.xlu0 %v574, 112
        %v749 = vpop.permute.xlu0 %748
        %v751 = vsel %vm588, %v749, 0.0
        %752 = vadd.xlane.f32.xlu0 %v751
        %v753 = vpop.xlane.xlu0 %752
        %v754 = vmul.f32 %v753, 0.17677669
        %755 = vrot.lane.b32.xlu0 %v574, 80
        %v756 = vpop.permute.xlu0 %755
        %v758 = vsel %vm588, %v756, 0.0
        %759 = vadd.xlane.f32.xlu0 %v758
        %v760 = vpop.xlane.xlu0 %759
        %v761 = vmul.f32 %v760, 0.17677669
        %v762 = vadd.f32 %v761, %v605
        %764 = vset.pattern.permute.xlu0 0
        %765 = vperm.xlu0 %764, %v762
        %v766 = vpop.permute.xlu0 %765
        %v767 = vlaneseq
        %v768 = vshrl.u32 %v767, 7
        %v769 = vsub.s32 %v583, %v768
        %v770 = vrot.slane %v766, %v769
        %v771 = vsel %vm616, %v770, %v770
        %v772 = vsel %vm618, %v770, %v771
        %v773 = vsel %vm620, %v770, %v772
        %v774 = vsel %vm622, %v770, %v773
        %v775 = vsel %vm624, %v770, %v774
        %v776 = vsel %vm626, %v770, %v775
        %v778 = vmul.f32 %v581, %v776
        %780 = vrot.lane.b32.xlu0 %v586, 112
        %v781 = vpop.permute.xlu0 %780
        %782 = vrot.lane.b32.xlu0 %v587, 80
        %v783 = vpop.permute.xlu0 %782
        %v785 = vsel %vm588, %v781, 0
        %v788 = vsel %vm588, %v783, 0
        %790 = vmatprep.subr.bf16.mxu0 0
        %791 = vmatpush1.bf16.xpose.msra.mxu0 %v788
        %792 = vmatprep.subr.bf16.mxu0 0
        %793 = vmatpush1.bf16.xpose.msra.mxu0 0
        %794 = vmatprep.subr.bf16.mxu0 0
        %795 = vmatpush1.bf16.xpose.msra.mxu0 0
        %796 = vmatprep.subr.bf16.mxu0 0
        %797 = vmatpush1.bf16.xpose.msra.mxu0 0
        %798 = vmatprep.subr.bf16.mxu0 0
        %799 = vmatpush1.bf16.xpose.msra.mxu0 0
        %800 = vmatprep.subr.bf16.mxu0 0
        %801 = vmatpush1.bf16.xpose.msra.mxu0 0
        %802 = vmatprep.subr.bf16.mxu0 0
        %803 = vmatpush1.bf16.xpose.msra.mxu0 0
        %804 = vmatprep.subr.bf16.mxu0 0
        %805 = vmatpush1.bf16.xpose.msra.mxu0 0
        %806 = vmatprep.subr.bf16.mxu0 0
        %807 = vmatpush1.bf16.xpose.msra.mxu0 0
        %808 = vmatprep.subr.bf16.mxu0 0
        %809 = vmatpush1.bf16.xpose.msra.mxu0 0
        %810 = vmatprep.subr.bf16.mxu0 0
        %811 = vmatpush1.bf16.xpose.msra.mxu0 0
        %812 = vmatprep.subr.bf16.mxu0 0
        %813 = vmatpush1.bf16.xpose.msra.mxu0 0
        %814 = vmatprep.subr.bf16.mxu0 0
        %815 = vmatpush1.bf16.xpose.msra.mxu0 0
        %816 = vmatprep.subr.bf16.mxu0 0
        %817 = vmatpush1.bf16.xpose.msra.mxu0 0
        %818 = vmatprep.subr.bf16.mxu0 0
        %819 = vmatpush1.bf16.xpose.msra.mxu0 0
        %820 = vmatprep.subr.bf16.mxu0 0
        %821 = vmatpush1.bf16.xpose.msra.mxu0 0
        %822 = vmatprep.mubr.bf16.mxu0 0
        %823 = vmatmul.mubr.bf16.gmra.mrb[0].mxu0 %v785
        %v824 = vpop.f32.mrb[0].mxu0
        %v825 = vadd.f32 %v778, %v824
        %v826 = vpop.f32.mrb[0].mxu0
        %v827 = vpop.f32.mrb[0].mxu0
        %v828 = vpop.f32.mrb[0].mxu0
        %829 = vdwg.mxu0
        %v830 = vmul.f32 %v754, %v584
        %v831 = vadd.f32 %v825, %v830
        %v832 = vsel %vm681, %v831, -inf
        %833 = vmax.xlane.f32.xlu0 %v832
        %v834 = vpop.xlane.xlu0 %833
        %v835 = vsub.f32 %v831, %v834
        %v836 = vmul.f32 %v835, 1.442695
        %v837 = vpow.pop %v836
        %v838 = vsel %vm681, %v837, 0.0
        %839 = vadd.xlane.f32.xlu0 %v838
        %v840 = vpop.xlane.xlu0 %839
        %v841 = vrcp.pop %v840
        %v842 = vmul.f32 %v837, %v841
        %v843 = vpack.c.bf16 %v842, %v842
        %s844 = scalar_lea.vmem %s511, 4 [#allocation7]
        %845 = vst.msk [vmem:[%s844] sm:$0xf] %vm694, %v843
        %846 = vrot.lane.b32.xlu0 %v587, 48
        %v847 = vpop.permute.xlu0 %846
        %v849 = vsel %vm681, %v843, 0
        %v852 = vsel %vm701, %v847, 0
        %854 = vmatprep.subr.bf16.mxu0 0
        %855 = vmatpush1.bf16.msra.mxu0 %v852
        %856 = vmatprep.subr.bf16.mxu0 0
        %857 = vmatpush1.bf16.msra.mxu0 0
        %858 = vmatprep.subr.bf16.mxu0 0
        %859 = vmatpush1.bf16.msra.mxu0 0
        %860 = vmatprep.subr.bf16.mxu0 0
        %861 = vmatpush1.bf16.msra.mxu0 0
        %862 = vmatprep.subr.bf16.mxu0 0
        %863 = vmatpush1.bf16.msra.mxu0 0
        %864 = vmatprep.subr.bf16.mxu0 0
        %865 = vmatpush1.bf16.msra.mxu0 0
        %866 = vmatprep.subr.bf16.mxu0 0
        %867 = vmatpush1.bf16.msra.mxu0 0
        %868 = vmatprep.subr.bf16.mxu0 0
        %869 = vmatpush1.bf16.msra.mxu0 0
        %870 = vmatprep.subr.bf16.mxu0 0
        %871 = vmatpush1.bf16.msra.mxu0 0
        %872 = vmatprep.subr.bf16.mxu0 0
        %873 = vmatpush1.bf16.msra.mxu0 0
        %874 = vmatprep.subr.bf16.mxu0 0
        %875 = vmatpush1.bf16.msra.mxu0 0
        %876 = vmatprep.subr.bf16.mxu0 0
        %877 = vmatpush1.bf16.msra.mxu0 0
        %878 = vmatprep.subr.bf16.mxu0 0
        %879 = vmatpush1.bf16.msra.mxu0 0
        %880 = vmatprep.subr.bf16.mxu0 0
        %881 = vmatpush1.bf16.msra.mxu0 0
        %882 = vmatprep.subr.bf16.mxu0 0
        %883 = vmatpush1.bf16.msra.mxu0 0
        %884 = vmatprep.subr.bf16.mxu0 0
        %885 = vmatpush1.bf16.msra.mxu0 0
        %886 = vmatprep.mubr.bf16.mxu0 0
        %887 = vmatmul.mubr.bf16.gmra.mrb[0].mxu0 %v849
        %v888 = vpop.f32.mrb[0].mxu0
        %v889 = vadd.f32 0.0, %v888
        %v890 = vpop.f32.mrb[0].mxu0
        %v891 = vpop.f32.mrb[0].mxu0
        %v892 = vpop.f32.mrb[0].mxu0
        %893 = vdwg.mxu0
        %v894 = vpack.c.bf16 %v889, %v889
        %v896 = vunpack.c.l.b16 %v894
        %v897 = vpack.c.b16 %v896, %v896
        %898 = vrot.lane.b32.xlu0 %v897, 16
        %v899 = vpop.permute.xlu0 %898
        %vm901 = vcmask 257152
        %902 = vst.msk [vmem:[#allocation2] sm:$0xf] %vm901, %v899
        %v903 = vld [vmem:[#allocation2] sm:$0xf]
        %v904 = vld [vmem:[%s2] sm:$0xf]
        %v905 = vld [vmem:[%s2 + $0x4] sm:$0xf]
        %v906 = vld [vmem:[%s2 + $0x8] sm:$0xf]
        %v907 = vld [vmem:[%s2 + $0xc] sm:$0xf]
        %v908 = vld [vmem:[%s3] sm:$0x1]
        %v910 = vlaneseq
        %v911 = vshrl.u32 %v910, 7
        %v912 = vsub.s32 0, %v911
        %v913 = vrot.slane %v908, %v912
        %v919 = vunpack.c.l.b16 %v904
        %v920 = vunpack.c.l.b16 %v905
        %v921 = vunpack.c.l.b16 %v906
        %v922 = vunpack.c.l.b16 %v907
        %v923 = vpack.c.b16 %v920, %v919
        %v924 = vpack.c.b16 %v922, %v921
        %v928 = vsel %vm535, %v903, 0
        %930 = vmatprep.subr.bf16.mxu0 0
        %931 = vmatpush1.bf16.msra.mxu0 %v923
        %932 = vmatprep.subr.bf16.mxu0 0
        %933 = vmatpush1.bf16.msra.mxu0 %v924
        %934 = vmatprep.subr.bf16.mxu0 0
        %935 = vmatpush1.bf16.msra.mxu0 0
        %936 = vmatprep.subr.bf16.mxu0 0
        %937 = vmatpush1.bf16.msra.mxu0 0
        %938 = vmatprep.subr.bf16.mxu0 0
        %939 = vmatpush1.bf16.msra.mxu0 0
        %940 = vmatprep.subr.bf16.mxu0 0
        %941 = vmatpush1.bf16.msra.mxu0 0
        %942 = vmatprep.subr.bf16.mxu0 0
        %943 = vmatpush1.bf16.msra.mxu0 0
        %944 = vmatprep.subr.bf16.mxu0 0
        %945 = vmatpush1.bf16.msra.mxu0 0
        %946 = vmatprep.subr.bf16.mxu0 0
        %947 = vmatpush1.bf16.msra.mxu0 0
        %948 = vmatprep.subr.bf16.mxu0 0
        %949 = vmatpush1.bf16.msra.mxu0 0
        %950 = vmatprep.subr.bf16.mxu0 0
        %951 = vmatpush1.bf16.msra.mxu0 0
        %952 = vmatprep.subr.bf16.mxu0 0
        %953 = vmatpush1.bf16.msra.mxu0 0
        %954 = vmatprep.subr.bf16.mxu0 0
        %955 = vmatpush1.bf16.msra.mxu0 0
        %956 = vmatprep.subr.bf16.mxu0 0
        %957 = vmatpush1.bf16.msra.mxu0 0
        %958 = vmatprep.subr.bf16.mxu0 0
        %959 = vmatpush1.bf16.msra.mxu0 0
        %960 = vmatprep.subr.bf16.mxu0 0
        %961 = vmatpush1.bf16.msra.mxu0 0
        %962 = vmatprep.mubr.bf16.mxu0 0
        %963 = vmatmul.mubr.bf16.gmra.mrb[0].mxu0 %v928
        %v964 = vpop.f32.mrb[0].mxu0
        %v965 = vadd.f32 %v913, %v964
        %v966 = vpop.f32.mrb[0].mxu0
        %v967 = vpop.f32.mrb[0].mxu0
        %v968 = vpop.f32.mrb[0].mxu0
        %969 = vdwg.mxu0
        %v970 = vadd.f32 %v517, %v965
        %v971 = vld [vmem:[%s4] sm:$0x1]
        %v972 = vld [vmem:[%s5] sm:$0x1]
        %v973 = vsel %vm535, %v970, 0.0
        %974 = vadd.xlane.f32.xlu0 %v973
        %v975 = vpop.xlane.xlu0 %974
        %v976 = vrcp.pop 32.0
        %v977 = vmul.f32 %v975, %v976
        %v978 = vsub.f32 %v970, %v977
        %v979 = vmul.f32 %v978, %v978
        %v980 = vsel %vm535, %v979, 0.0
        %981 = vadd.xlane.f32.xlu0 %v980
        %v982 = vpop.xlane.xlu0 %981
        %v983 = vmul.f32 %v982, %v976
        %v984 = vadd.f32 %v983, 1e-05
        %v985 = vrsqrt.pop %v984
        %v986 = vmul.f32 %v978, %v985
        %v988 = vlaneseq
        %v989 = vshrl.u32 %v988, 7
        %v990 = vsub.s32 0, %v989
        %v991 = vrot.slane %v971, %v990
        %v993 = vmul.f32 %v986, %v991
        %v995 = vlaneseq
        %v996 = vshrl.u32 %v995, 7
        %v997 = vsub.s32 0, %v996
        %v998 = vrot.slane %v972, %v997
        %v1000 = vadd.f32 %v993, %v998
        %v1001 = vpack.c.bf16 %v1000, %v1000
        %v1002 = vld [vmem:[#allocation3] sm:$0xf]
        %v1003 = vld [vmem:[#allocation3 + $0x4] sm:$0xf]
        %v1004 = vld [vmem:[#allocation3 + $0x8] sm:$0xf]
        %v1005 = vld [vmem:[#allocation3 + $0xc] sm:$0xf]
        %v1006 = vld [vmem:[%s7] sm:$0x1]
        %v1008 = vlaneseq
        %v1009 = vshrl.u32 %v1008, 7
        %v1010 = vsub.s32 0, %v1009
        %v1011 = vrot.slane %v1006, %v1010
        %v1017 = vunpack.c.l.b16 %v1002
        %v1018 = vunpack.c.l.b16 %v1003
        %v1019 = vunpack.c.l.b16 %v1004
        %v1020 = vunpack.c.l.b16 %v1005
        %v1021 = vpack.c.b16 %v1018, %v1017
        %v1022 = vpack.c.b16 %v1020, %v1019
        %v1026 = vsel %vm535, %v1001, 0
        %1028 = vmatprep.subr.bf16.mxu0 0
        %1029 = vmatpush1.bf16.msra.mxu0 %v1021
        %1030 = vmatprep.subr.bf16.mxu0 0
        %1031 = vmatpush1.bf16.msra.mxu0 %v1022
        %1032 = vmatprep.subr.bf16.mxu0 0
        %1033 = vmatpush1.bf16.msra.mxu0 0
        %1034 = vmatprep.subr.bf16.mxu0 0
        %1035 = vmatpush1.bf16.msra.mxu0 0
        %1036 = vmatprep.subr.bf16.mxu0 0
        %1037 = vmatpush1.bf16.msra.mxu0 0
        %1038 = vmatprep.subr.bf16.mxu0 0
        %1039 = vmatpush1.bf16.msra.mxu0 0
        %1040 = vmatprep.subr.bf16.mxu0 0
        %1041 = vmatpush1.bf16.msra.mxu0 0
        %1042 = vmatprep.subr.bf16.mxu0 0
        %1043 = vmatpush1.bf16.msra.mxu0 0
        %1044 = vmatprep.subr.bf16.mxu0 0
        %1045 = vmatpush1.bf16.msra.mxu0 0
        %1046 = vmatprep.subr.bf16.mxu0 0
        %1047 = vmatpush1.bf16.msra.mxu0 0
        %1048 = vmatprep.subr.bf16.mxu0 0
        %1049 = vmatpush1.bf16.msra.mxu0 0
        %1050 = vmatprep.subr.bf16.mxu0 0
        %1051 = vmatpush1.bf16.msra.mxu0 0
        %1052 = vmatprep.subr.bf16.mxu0 0
        %1053 = vmatpush1.bf16.msra.mxu0 0
        %1054 = vmatprep.subr.bf16.mxu0 0
        %1055 = vmatpush1.bf16.msra.mxu0 0
        %1056 = vmatprep.subr.bf16.mxu0 0
        %1057 = vmatpush1.bf16.msra.mxu0 0
        %1058 = vmatprep.subr.bf16.mxu0 0
        %1059 = vmatpush1.bf16.msra.mxu0 0
        %1060 = vmatprep.mubr.bf16.mxu0 0
        %1061 = vmatmul.mubr.bf16.gmra.mrb[0].mxu0 %v1026
        %v1062 = vpop.f32.mrb[0].mxu0
        %v1063 = vadd.f32 %v1011, %v1062
        %v1064 = vpop.f32.mrb[0].mxu0
        %v1065 = vpop.f32.mrb[0].mxu0
        %v1066 = vpop.f32.mrb[0].mxu0
        %1067 = vdwg.mxu0
        %v1068 = vmax.f32 %v1063, 0.0
        %v1069 = vpack.c.bf16 %v1068, %v1068
        %v1070 = vld [vmem:[%s8] sm:$0xf]
        %v1071 = vld [vmem:[%s8 + $0x4] sm:$0xf]
        %v1072 = vld [vmem:[%s8 + $0x8] sm:$0xf]
        %v1073 = vld [vmem:[%s8 + $0xc] sm:$0xf]
        %v1074 = vld [vmem:[%s8 + $0x10] sm:$0xf]
        %v1075 = vld [vmem:[%s8 + $0x14] sm:$0xf]
        %v1076 = vld [vmem:[%s8 + $0x18] sm:$0xf]
        %v1077 = vld [vmem:[%s8 + $0x1c] sm:$0xf]
        %v1078 = vld [vmem:[%s9] sm:$0x1]
        %v1080 = vlaneseq
        %v1081 = vshrl.u32 %v1080, 7
        %v1082 = vsub.s32 0, %v1081
        %v1083 = vrot.slane %v1078, %v1082
        %v1093 = vunpack.c.l.b16 %v1070
        %v1094 = vunpack.c.l.b16 %v1071
        %v1095 = vunpack.c.l.b16 %v1072
        %v1096 = vunpack.c.l.b16 %v1073
        %v1097 = vunpack.c.l.b16 %v1074
        %v1098 = vunpack.c.l.b16 %v1075
        %v1099 = vunpack.c.l.b16 %v1076
        %v1100 = vunpack.c.l.b16 %v1077
        %v1101 = vpack.c.b16 %v1094, %v1093
        %v1102 = vpack.c.b16 %v1096, %v1095
        %v1103 = vpack.c.b16 %v1098, %v1097
        %v1104 = vpack.c.b16 %v1100, %v1099
        %vm1109 = vcmask 523264
        %v1111 = vsel %vm1109, %v1069, 0
        %1113 = vmatprep.subr.bf16.mxu0 0
        %1114 = vmatpush1.bf16.msra.mxu0 %v1101
        %1115 = vmatprep.subr.bf16.mxu0 0
        %1116 = vmatpush1.bf16.msra.mxu0 %v1102
        %1117 = vmatprep.subr.bf16.mxu0 0
        %1118 = vmatpush1.bf16.msra.mxu0 %v1103
        %1119 = vmatprep.subr.bf16.mxu0 0
        %1120 = vmatpush1.bf16.msra.mxu0 %v1104
        %1121 = vmatprep.subr.bf16.mxu0 0
        %1122 = vmatpush1.bf16.msra.mxu0 0
        %1123 = vmatprep.subr.bf16.mxu0 0
        %1124 = vmatpush1.bf16.msra.mxu0 0
        %1125 = vmatprep.subr.bf16.mxu0 0
        %1126 = vmatpush1.bf16.msra.mxu0 0
        %1127 = vmatprep.subr.bf16.mxu0 0
        %1128 = vmatpush1.bf16.msra.mxu0 0
        %1129 = vmatprep.subr.bf16.mxu0 0
        %1130 = vmatpush1.bf16.msra.mxu0 0
        %1131 = vmatprep.subr.bf16.mxu0 0
        %1132 = vmatpush1.bf16.msra.mxu0 0
        %1133 = vmatprep.subr.bf16.mxu0 0
        %1134 = vmatpush1.bf16.msra.mxu0 0
        %1135 = vmatprep.subr.bf16.mxu0 0
        %1136 = vmatpush1.bf16.msra.mxu0 0
        %1137 = vmatprep.subr.bf16.mxu0 0
        %1138 = vmatpush1.bf16.msra.mxu0 0
        %1139 = vmatprep.subr.bf16.mxu0 0
        %1140 = vmatpush1.bf16.msra.mxu0 0
        %1141 = vmatprep.subr.bf16.mxu0 0
        %1142 = vmatpush1.bf16.msra.mxu0 0
        %1143 = vmatprep.subr.bf16.mxu0 0
        %1144 = vmatpush1.bf16.msra.mxu0 0
        %1145 = vmatprep.mubr.bf16.mxu0 0
        %1146 = vmatmul.mubr.bf16.gmra.mrb[0].mxu0 %v1111
        %v1147 = vpop.f32.mrb[0].mxu0
        %v1148 = vadd.f32 %v1083, %v1147
        %v1149 = vpop.f32.mrb[0].mxu0
        %v1150 = vpop.f32.mrb[0].mxu0
        %v1151 = vpop.f32.mrb[0].mxu0
        %1152 = vdwg.mxu0
        %v1153 = vadd.f32 %v1148, %v1000
        %v1154 = vld [vmem:[%s10] sm:$0x1]
        %v1155 = vld [vmem:[%s11] sm:$0x1]
        %v1156 = vsel %vm535, %v1153, 0.0
        %1157 = vadd.xlane.f32.xlu0 %v1156
        %v1158 = vpop.xlane.xlu0 %1157
        %v1159 = vmul.f32 %v1158, %v976
        %v1160 = vsub.f32 %v1153, %v1159
        %v1161 = vmul.f32 %v1160, %v1160
        %v1162 = vsel %vm535, %v1161, 0.0
        %1163 = vadd.xlane.f32.xlu0 %v1162
        %v1164 = vpop.xlane.xlu0 %1163
        %v1165 = vmul.f32 %v1164, %v976
        %v1166 = vadd.f32 %v1165, 1e-05
        %v1167 = vrsqrt.pop %v1166
        %v1168 = vmul.f32 %v1160, %v1167
        %v1170 = vlaneseq
        %v1171 = vshrl.u32 %v1170, 7
        %v1172 = vsub.s32 0, %v1171
        %v1173 = vrot.slane %v1154, %v1172
        %v1175 = vmul.f32 %v1168, %v1173
        %v1177 = vlaneseq
        %v1178 = vshrl.u32 %v1177, 7
        %v1179 = vsub.s32 0, %v1178
        %v1180 = vrot.slane %v1155, %v1179
        %v1182 = vadd.f32 %v1175, %v1180
        %v1183 = vadd.f32 %v1000, %v1182
        %v1184 = vld [vmem:[%s12] sm:$0x1]
        %v1185 = vld [vmem:[%s13] sm:$0x1]
        %v1186 = vsel %vm535, %v1183, 0.0
        %1187 = vadd.xlane.f32.xlu0 %v1186
        %v1188 = vpop.xlane.xlu0 %1187
        %v1189 = vmul.f32 %v1188, %v976
        %v1190 = vsub.f32 %v1183, %v1189
        %v1191 = vmul.f32 %v1190, %v1190
        %v1192 = vsel %vm535, %v1191, 0.0
        %1193 = vadd.xlane.f32.xlu0 %v1192
        %v1194 = vpop.xlane.xlu0 %1193
        %v1195 = vmul.f32 %v1194, %v976
        %v1196 = vadd.f32 %v1195, 1e-05
        %v1197 = vrsqrt.pop %v1196
        %v1198 = vmul.f32 %v1190, %v1197
        %v1200 = vlaneseq
        %v1201 = vshrl.u32 %v1200, 7
        %v1202 = vsub.s32 0, %v1201
        %v1203 = vrot.slane %v1184, %v1202
        %v1205 = vmul.f32 %v1198, %v1203
        %v1207 = vlaneseq
        %v1208 = vshrl.u32 %v1207, 7
        %v1209 = vsub.s32 0, %v1208
        %v1210 = vrot.slane %v1185, %v1209
        %v1212 = vadd.f32 %v1205, %v1210
        %1213 = vst.msk [vmem:[%s504] sm:$0xff] %vm535, %v1212
        %s1214 = sand.u32 %s341, 1
        %s1215 = scalar_lea.sflag [#allocation5], %s1214
        %s1216 = sand.u32 %s341, 1
        %s1217 = smul.addr %s1216, 8
        %s1218 = scalar_lea.vmem [#allocation6], %s1217
        %s1219 = sand.u32 %s367, 1
        %s1220 = scalar_lea.sflag [#allocation8], %s1219
        %s1221 = sand.u32 %s367, 1
        %s1222 = smul.addr %s1221, 8
        %s1223 = scalar_lea.vmem [#allocation7], %s1222
        // Predicated region
        $region81: #{tpu_custom_call.1} parent=75 // pred_check
          %p1224 = pneg %p351
        $region82: #{tpu_custom_call.1} parent=75 // pred_check_branch
          %1226 = sbr.rel (%p1224) target = $region84
        $region83: #{tpu_custom_call.1} parent=75 // pred_region
          %s1228 = ssub.s32 128, 128
          %1229 = vsyncadd %s1215, %s1228
          %s1230 = smul.addr %s34, 128
          %s1231 = scalar_lea.hbm %s14, %s1230
          %s1233 = sshll.u32 %s1218, 4
          %s1234 = int_to_ptr.vmem [resolvable:$true] %s1233
          %1236 = dma.vmem_to_hbm [thread:$0]  %s1234, 128, %s1231, %s1215
        $region84: #{tpu_custom_call.1} parent=75 // pred_fallthru
          _
        // Predicated region
        $region85: #{tpu_custom_call.1} parent=75 // pred_check
          %p1237 = pneg %p377
        $region86: #{tpu_custom_call.1} parent=75 // pred_check_branch
          %1239 = sbr.rel (%p1237) target = $region88
        $region87: #{tpu_custom_call.1} parent=75 // pred_region
          %s1241 = ssub.s32 128, 128
          %1242 = vsyncadd %s1220, %s1241
          %s1243 = smul.addr %s34, 2
          %s1244 = smul.addr %s1243, 64
          %s1245 = scalar_lea.hbm %s15, %s1244
          %s1246 = sshll.u32 %s1223, 4
          %s1247 = int_to_ptr.vmem [resolvable:$true] %s1246
          %1252 = dma.vmem_to_hbm [thread:$0]  %s1247, 128, %s1245, %s1220, 64, 64, 4
        $region88: #{tpu_custom_call.1} parent=75 // pred_fallthru
          _
      $region76: #{tpu_custom_call.1} parent=5 // pred_fallthru
        _
      %p1253 = scmp.le.s32.totalorder 2, %s29
      // Predicated region
      $region89: #{tpu_custom_call.1} parent=5 // pred_check
        %p1254 = pneg %p1253
      $region90: #{tpu_custom_call.1} parent=5 // pred_check_branch
        %1256 = sbr.rel (%p1254) target = $region92
      $region91: #{tpu_custom_call.1} parent=5 // pred_region
        %s1257 = ssub.s32 %s29, 2
        // Predicated region
        $region93: #{tpu_custom_call.1} parent=91 // pred_check
          %p1258 = pneg %p357
        $region94: #{tpu_custom_call.1} parent=91 // pred_check_branch
          %1260 = sbr.rel (%p1258) target = $region96
        $region95: #{tpu_custom_call.1} parent=91 // pred_region
          %s1261 = sand.u32 %s342, 1
          %s1262 = scalar_lea.sflag [#allocation5], %s1261
          %s1263 = sand.u32 %s342, 1
          %s1264 = smul.addr %s1263, 8
          %s1265 = scalar_lea.vmem [#allocation6], %s1264
          %1266 = dma.done %s1262, 128
        $region96: #{tpu_custom_call.1} parent=91 // pred_fallthru
          _
        // Predicated region
        $region97: #{tpu_custom_call.1} parent=91 // pred_check
          %p1267 = pneg %p383
        $region98: #{tpu_custom_call.1} parent=91 // pred_check_branch
          %1269 = sbr.rel (%p1267) target = $region100
        $region99: #{tpu_custom_call.1} parent=91 // pred_region
          %s1270 = sand.u32 %s368, 1
          %s1271 = scalar_lea.sflag [#allocation8], %s1270
          %s1272 = sand.u32 %s368, 1
          %s1273 = smul.addr %s1272, 8
          %s1274 = scalar_lea.vmem [#allocation7], %s1273
          %1275 = dma.done %s1271, 128
        $region100: #{tpu_custom_call.1} parent=91 // pred_fallthru
          _
      $region92: #{tpu_custom_call.1} parent=5 // pred_fallthru
        _
    $region6: #{tpu_custom_call.1} parent=1 // loop_footer
      %s33 = sadd.s32 1, %s29
    $region7: #{tpu_custom_call.1} parent=1 // loop_footer_branch
      %28 = sbr.rel target = $region3
    $region8: #{tpu_custom_call.1} parent=1 // loop_exit
      _
    %1276 = vsyncpa [#allocation4], 1
    %s1277 = scalar_lea.sflag [#allocation4], 1
    %1278 = vsyncpa %s1277, 1
    %1279 = vsyncpa [#allocation5], 1
    %s1280 = scalar_lea.sflag [#allocation5], 1
    %1281 = vsyncpa %s1280, 1
    %1282 = vsyncpa [#allocation8], 1
    %s1283 = scalar_lea.sflag [#allocation8], 1
    %1284 = vsyncpa %s1283, 1

</llo_original>
